<compile_context>
chip_gen: v5e
topology: v5e:2x2
jax: 0.10.0
libtpu: 0.0.40
codegen_flags: <defaults>
</compile_context>

<pallas_src>
import jax
import jax.numpy as jnp
from jax.experimental import pallas as pl
from jax.experimental.pallas import tpu as pltpu

INPUT_DIM = 36
OUTPUT_DIM = 4
TEMPERATURE = 1.5
INV_TEMPERATURE = 1.0 / TEMPERATURE


def _round_up(n: int, m: int) -> int:
    return ((n + m - 1) // m) * m


def _tpu_defaults():
    """(feature_major_max_tile, row_major_max_tile, vmem_limit_bytes) per chip."""
    try:
        kind = jax.devices()[0].device_kind.lower()
    except Exception:
        kind = ""
    if "v6" in kind:
        # 128 MiB physical VMEM, ~1.4 TB/s: big lane tiles amortize the
        # ~0.35 us per-grid-step overhead to a few percent.
        return 65536, 8192, 96 * 2**20
    if "v5" in kind:
        # v5e: 16384 lanes already keeps per-step overhead ~10%; the explicit
        # vmem limit (above the 16 MiB scoped default, far under 128 MiB
        # physical) is mainly for the row-major kernel's padded buffers.
        return 16384, 8192, 96 * 2**20
    # v7x (64 MiB physical VMEM per TC) and unknown chips: conservative sizing.
    return 32768, 8192, 48 * 2**20


def _pick_tile(batch: int, max_tile: int) -> int:
    """Batch rows (or lanes) handled per grid step.

    Multiple of 128 (full-width vregs), capped by max_tile, chosen so that
    (a) the grid has >=2 steps (>=4 for big batches) -> both v7x TensorCores
        are fed and the double-buffered DMA has something to overlap, and
    (b) the ragged last block is not mostly padding (e.g. batch=20000 no
        longer blows up to 32768 padded rows).
    """
    if batch <= 128:
        return 128
    # Only force extra grid steps if each step still gets >= ~1024 rows.
    min_tiles = min(4, max(1, pl.cdiv(batch, 1024)))
    num_tiles = max(pl.cdiv(batch, max_tile), min_tiles)
    return _round_up(pl.cdiv(batch, num_tiles), 128)


# ---------------------------------------------------------------------------
# Kernels
# ---------------------------------------------------------------------------

def _policy_kernel_feature_major(x_ref, w_ref, b_ref, o_ref):
    """Lane-dense path: batch on the LANE axis (HBM-roofline path).

    x_ref: (36, TILE_B) f32     w_ref: (4, 36) f32  (pre-scaled by 1/T)
    b_ref: (4, 1)       f32     o_ref: (4, TILE_B) f32
    """
    # (4,36)@(36,TILE_B) on the otherwise-idle MXU; the kernel is HBM-bound.
    logits = jnp.dot(w_ref[...], x_ref[...],
                     preferred_element_type=jnp.float32) + b_ref[...]
    # Numerically stable softmax over the 4 classes (sublane axis -> XLU,
    # whose issue slot is disjoint from the VPU/EUP work below).
    m = jnp.max(logits, axis=0, keepdims=True)
    e = jnp.exp(logits - m)                             # EUP
    denom = jnp.sum(e, axis=0, keepdims=True)
    inv = pl.reciprocal(denom, approx=True)             # EUP approx recip ...
    inv = inv * (2.0 - denom * inv)                     # ... + 1 Newton step
    o_ref[...] = (e * inv).astype(o_ref.dtype)


def _policy_kernel_row_major(x_ref, wt_ref, b_ref, o_ref):
    """Row-major path: module-native (B, 36) layout, no transposes anywhere.

    x_ref: (TILE_B, 36) f32     wt_ref: (36, 4) f32  (pre-scaled by 1/T)
    b_ref: (1, 4)       f32     o_ref: (TILE_B, 4) f32
    """
    # (TILE_B,36)@(36,4): w^T stays resident in the MXU, x streams from VMEM.
    logits = jnp.dot(x_ref[...], wt_ref[...],
                     preferred_element_type=jnp.float32) + b_ref[...]
    # Softmax over the 4 classes on the lane axis.  Lane utilisation is low,
    # but the op is HBM-bound and this avoids any big-array relayout.
    m = jnp.max(logits, axis=-1, keepdims=True)
    e = jnp.exp(logits - m)
    denom = jnp.sum(e, axis=-1, keepdims=True)
    inv = pl.reciprocal(denom, approx=True)
    inv = inv * (2.0 - denom * inv)
    o_ref[...] = (e * inv).astype(o_ref.dtype)


# ---------------------------------------------------------------------------
# Wrappers
# ---------------------------------------------------------------------------

def policy_forward_t(x_t, w, bias, *, max_tile_b=None):
    """Fast feature-major path: x_t (36, B) -> probs (4, B).

    Batch lives on the lane axis, so every vector load/store is full-width and
    the kernel runs at the HBM roofline.  Producers that can emit (36, B)
    activations directly should use this entry point (zero transposes).
    """
    d, batch = x_t.shape
    assert d == INPUT_DIM
    if x_t.dtype != jnp.float32:
        x_t = x_t.astype(jnp.float32)
    feat_tile, _, vmem_limit = _tpu_defaults()
    tile_b = _pick_tile(batch, max_tile_b or feat_tile)
    # Fold 1/temperature into the tiny parameters once, outside the kernel.
    w_s = (w * INV_TEMPERATURE).astype(jnp.float32)                       # (4, 36)
    b_s = (jnp.reshape(bias, (OUTPUT_DIM, 1)) * INV_TEMPERATURE).astype(jnp.float32)

    return pl.pallas_call(
        _policy_kernel_feature_major,
        out_shape=jax.ShapeDtypeStruct((OUTPUT_DIM, batch), jnp.float32),
        grid_spec=pl.GridSpec(
            # Ragged last block: OOB lanes are garbage on read (confined to
            # their own softmax columns) and masked on write.  No jnp.pad.
            grid=(pl.cdiv(batch, tile_b),),
            in_specs=[
                pl.BlockSpec((INPUT_DIM, tile_b), lambda i: (0, i)),
                pl.BlockSpec((OUTPUT_DIM, INPUT_DIM), lambda i: (0, 0)),
                pl.BlockSpec((OUTPUT_DIM, 1), lambda i: (0, 0)),
            ],
            out_specs=pl.BlockSpec((OUTPUT_DIM, tile_b), lambda i: (0, i)),
        ),
        compiler_params=pltpu.CompilerParams(
            dimension_semantics=("parallel",),   # shard tiles across v7x's 2 TCs
            vmem_limit_bytes=vmem_limit,
        ),
    )(x_t, w_s, b_s)


def policy_forward(x, w, bias, *, min_pallas_batch=4096, max_tile_rows=None):
    """Module-equivalent path: x (B, 36) -> probs (B, 4), no wrapper transposes.

    The kernel consumes the row-major (B, 36) array directly (contiguous HBM
    blocks) and stores the narrow (tile, 4) output (16 B/row, so the masked
    store penalty is negligible).  End-to-end HBM traffic is ~160 B/row — the
    minimum — vs ~480 B/row for the previous x.T / out.T wrapper path.
    Tiny batches dispatch to plain XLA matmul+softmax instead of a kernel.
    """
    batch, d = x.shape
    assert d == INPUT_DIM
    if x.dtype != jnp.float32:
        x = x.astype(jnp.float32)
    w_s = (w * INV_TEMPERATURE).astype(jnp.float32)                       # (4, 36)
    b_row = (jnp.reshape(bias, (1, OUTPUT_DIM)) * INV_TEMPERATURE).astype(jnp.float32)

    if batch < min_pallas_batch:
        # Small-batch fallback: the whole problem is a few KB.
        return jax.nn.softmax(x @ w_s.T + b_row, axis=-1)

    _, row_tile, vmem_limit = _tpu_defaults()
    tile_b = _pick_tile(batch, max_tile_rows or row_tile)

    return pl.pallas_call(
        _policy_kernel_row_major,
        out_shape=jax.ShapeDtypeStruct((batch, OUTPUT_DIM), jnp.float32),
        grid_spec=pl.GridSpec(
            grid=(pl.cdiv(batch, tile_b),),     # ragged last block, no jnp.pad
            in_specs=[
                pl.BlockSpec((tile_b, INPUT_DIM), lambda i: (i, 0)),
                pl.BlockSpec((INPUT_DIM, OUTPUT_DIM), lambda i: (0, 0)),
                pl.BlockSpec((1, OUTPUT_DIM), lambda i: (0, 0)),
            ],
            out_specs=pl.BlockSpec((tile_b, OUTPUT_DIM), lambda i: (i, 0)),
        ),
        compiler_params=pltpu.CompilerParams(
            dimension_semantics=("parallel",),
            vmem_limit_bytes=vmem_limit,
        ),
    )(x, w_s.T, b_row)


# ---------------------------------------------------------------------------
# Params / reference
# ---------------------------------------------------------------------------

def init_params(key):
    """nn.Linear default init: U(-1/sqrt(fan_in), 1/sqrt(fan_in)).

    Weight in the PyTorch (out_features, in_features) = (4, 36) layout,
    bias as a flat (4,) vector (same as nn.Linear).
    """
    kw, kb = jax.random.split(key)
    bound = 1.0 / jnp.sqrt(float(INPUT_DIM))
    w = jax.random.uniform(
        kw, (OUTPUT_DIM, INPUT_DIM), jnp.float32, minval=-bound, maxval=bound
    )
    bias = jax.random.uniform(
        kb, (OUTPUT_DIM,), jnp.float32, minval=-bound, maxval=bound
    )
    return w, bias


def reference_forward(x, w, bias):
    logits = x @ w.T + bias
    return jax.nn.softmax(logits / TEMPERATURE, axis=-1)


if __name__ == "__main__":
    key = jax.random.PRNGKey(0)
    kx, kp = jax.random.split(key)
    w, bias = init_params(kp)

    # Batch chosen so the Pallas paths exercise a multi-step grid (4 tiles of
    # 1152 rows) with a ragged last block — still only ~630 KB of input.
    batch = 4396
    x = jax.random.normal(kx, (batch, INPUT_DIM), jnp.float32)
    ref = reference_forward(x, w, bias)

    # 1) Row-major module-equivalent kernel (forced past the XLA fallback).
    out = jax.block_until_ready(policy_forward(x, w, bias, min_pallas_batch=0))
    assert out.shape == (batch, OUTPUT_DIM)
    assert jnp.allclose(out, ref, atol=1e-4, rtol=1e-4)
    assert jnp.allclose(jnp.sum(out, axis=-1), 1.0, atol=1e-5)

    # 2) Feature-major lane-dense fast path.  (The x.T here is test plumbing
    #    only — real feature-major callers produce (36, B) directly.)
    out_t = jax.block_until_ready(policy_forward_t(x.T, w, bias))
    assert out_t.shape == (OUTPUT_DIM, batch)
    assert jnp.allclose(out_t, ref.T, atol=1e-4, rtol=1e-4)

    # 3) Single ragged tile (300 rows < one 384-row block).
    out_small = jax.block_until_ready(
        policy_forward(x[:300], w, bias, min_pallas_batch=0)
    )
    assert jnp.allclose(out_small, ref[:300], atol=1e-4, rtol=1e-4)

    # 4) Tiny batch (module-scale example) -> XLA fallback, same semantics.
    out_tiny = jax.block_until_ready(policy_forward(x[:8], w, bias))
    assert out_tiny.shape == (8, OUTPUT_DIM)
    assert jnp.allclose(out_tiny, ref[:8], atol=1e-4, rtol=1e-4)

    print("KERNEL_OK")
</pallas_src>

<mosaic_0001>
module attributes {stable_mosaic.version = 11 : i64} {
  func.func @_policy_kernel_row_major(%arg0: i32, %arg1: memref<1152x36xf32, #tpu.memory_space<vmem>>, %arg2: memref<36x4xf32, #tpu.memory_space<vmem>>, %arg3: memref<1x4xf32, #tpu.memory_space<vmem>>, %arg4: memref<1152x4xf32, #tpu.memory_space<vmem>>) attributes {dimension_semantics = [#tpu.dimension_semantics<parallel>], iteration_bounds = array<i64: 4>, scalar_prefetch = 0 : i64, scratch_operands = 0 : i64, tpu.core_type = #tpu.core_type<tc>, window_params = [{transform_indices = @transform_0, window_bounds = array<i64: 1152, 36>}, {pipeline_mode = #tpu.pipeline_mode<synchronous>, transform_indices = @transform_1, window_bounds = array<i64: 36, 4>}, {pipeline_mode = #tpu.pipeline_mode<synchronous>, transform_indices = @transform_2, window_bounds = array<i64: 1, 4>}, {transform_indices = @transform_3, window_bounds = array<i64: 1152, 4>}]} {
    %c0 = arith.constant 0 : index
    %c0_0 = arith.constant 0 : index
    %0 = vector.load %arg1[%c0, %c0_0] : memref<1152x36xf32, #tpu.memory_space<vmem>>, vector<1152x36xf32>
    %c0_1 = arith.constant 0 : index
    %c0_2 = arith.constant 0 : index
    %1 = vector.load %arg2[%c0_1, %c0_2] : memref<36x4xf32, #tpu.memory_space<vmem>>, vector<36x4xf32>
    %cst = arith.constant dense<0.000000e+00> : vector<1152x4xf32>
    %2 = tpu.matmul %0, %1, %cst {dimension_numbers = #tpu.dot_dimension_numbers<[1], [0], [0], [1], [0, 0, 1, 1], [], []>} : vector<1152x36xf32>, vector<36x4xf32>, vector<1152x4xf32> -> vector<1152x4xf32>
    %c0_3 = arith.constant 0 : index
    %c0_4 = arith.constant 0 : index
    %3 = vector.load %arg3[%c0_3, %c0_4] : memref<1x4xf32, #tpu.memory_space<vmem>>, vector<1x4xf32>
    %4 = vector.broadcast %3 : vector<1x4xf32> to vector<1152x4xf32>
    %5 = arith.addf %2, %4 : vector<1152x4xf32>
    %cst_5 = arith.constant dense<0xFF800000> : vector<1152xf32>
    %6 = vector.multi_reduction <maximumf>, %5, %cst_5 [1] : vector<1152x4xf32> to vector<1152xf32>
    %7 = vector.shape_cast %6 : vector<1152xf32> to vector<1152x1xf32>
    %8 = vector.broadcast %7 : vector<1152x1xf32> to vector<1152x4xf32>
    %9 = arith.subf %5, %8 : vector<1152x4xf32>
    %10 = math.exp %9 : vector<1152x4xf32>
    %cst_6 = arith.constant dense<0.000000e+00> : vector<1152xf32>
    %11 = vector.multi_reduction <add>, %10, %cst_6 [1] : vector<1152x4xf32> to vector<1152xf32>
    %12 = vector.shape_cast %11 : vector<1152xf32> to vector<1152x1xf32>
    %13 = tpu.reciprocal %12 {approx = true} : vector<1152x1xf32> -> vector<1152x1xf32>
    %14 = arith.mulf %12, %13 : vector<1152x1xf32>
    %cst_7 = arith.constant 2.000000e+00 : f32
    %15 = vector.broadcast %cst_7 : f32 to vector<1152x1xf32>
    %16 = arith.subf %15, %14 : vector<1152x1xf32>
    %17 = arith.mulf %13, %16 : vector<1152x1xf32>
    %18 = vector.broadcast %17 : vector<1152x1xf32> to vector<1152x4xf32>
    %19 = arith.mulf %10, %18 : vector<1152x4xf32>
    %c0_8 = arith.constant 0 : index
    %c0_9 = arith.constant 0 : index
    %20 = vector.load %arg4[%c0_8, %c0_9] : memref<1152x4xf32, #tpu.memory_space<vmem>>, vector<1152x4xf32>
    tpu.vector_store %arg4[%c0_8, %c0_9], %19 {strides = array<i32>} : memref<1152x4xf32, #tpu.memory_space<vmem>>, vector<1152x4xf32>,
    return
  }
  func.func @transform_0(%arg0: i32) -> (i32, i32) {
    %c0_i32 = arith.constant 0 : i32
    %c0_i32_0 = arith.constant 0 : i32
    return %arg0, %c0_i32 : i32, i32
  }
  func.func @transform_1(%arg0: i32) -> (i32, i32) {
    %c0_i32 = arith.constant 0 : i32
    %c0_i32_0 = arith.constant 0 : i32
    %c0_i32_1 = arith.constant 0 : i32
    return %c0_i32, %c0_i32_0 : i32, i32
  }
  func.func @transform_2(%arg0: i32) -> (i32, i32) {
    %c0_i32 = arith.constant 0 : i32
    %c0_i32_0 = arith.constant 0 : i32
    %c0_i32_1 = arith.constant 0 : i32
    return %c0_i32, %c0_i32_0 : i32, i32
  }
  func.func @transform_3(%arg0: i32) -> (i32, i32) {
    %c0_i32 = arith.constant 0 : i32
    %c0_i32_0 = arith.constant 0 : i32
    return %arg0, %c0_i32 : i32, i32
  }
}

</mosaic_0001>

<llo_original>
// kernel: tpu_custom_call.1
$region0: #{tpu_custom_call.1}
  #allocation0 [shape = 'u32[]', space=smem, size = 0x4, offset = 0x4, fixed_abs, tag = 'smem constant byte address 0x4 - core index']
  #allocation1 [shape = 'u32[72,128]{1,0:T(1,128)}', space=vmem, size = 0x9000, scoped, tag = 'internal scratch']
  %s0 = inlined_call_operand.vmem [shape: f32[4396,36], index: 0, kind: input, shape index: {}]
  %s1 = inlined_call_operand.vmem [shape: f32[36,4], index: 1, kind: input, shape index: {}]
  %s2 = inlined_call_operand.vmem [shape: f32[1,4], index: 2, kind: input, shape index: {}]
  %s3 = inlined_call_operand.vmem [shape: f32[4396,4], index: 3, kind: output, shape index: {}]
  %s4 = sld [smem:[#allocation0]]
  $region93: #{tpu_custom_call.1} parent=0
    _
  %s6 = ssub.s32 1, %s4
  %s7 = scalar_select 0, %s6, %s4
  $region1: #{tpu_custom_call.1} parent=0
    #allocation2 [shape = 'u8[1179648]{0}', space=vmem, size = 0x120000, scoped, tag = 'output window, operand 0']
    loop: start=0, step=1, limit=6
    $region2: #{tpu_custom_call.1} parent=1 // loop_pre_header
      _
    $region3: #{tpu_custom_call.1} parent=1 // loop_header
      %s9 = sphi 0, %s13
      %p10 = scmp.ge.s32.totalorder %s9, 6
      %s19 = sphi 0, %s21
      %s22 = sphi 0, %s19
      %s23 = sphi 0, %s22
      %s39 = sphi 0, %s23
      %s43 = sphi 0, %s43
      %s45 = sphi 0, %s43
      %s46 = sphi 0, %s45
      %s60 = sphi 0, %s46
      %s64 = sphi 0, %s64
      %s66 = sphi 0, %s64
      %s67 = sphi 0, %s66
      %s81 = sphi 0, %s67
      %s87 = sphi 0, %s89
      %s90 = sphi 0, %s87
      %s91 = sphi 0, %s90
      %s107 = sphi 0, %s91
    $region4: #{tpu_custom_call.1} parent=1 // loop_header_branch
      %12 = sbr.rel (%p10) target = $region8
    $region5: #{tpu_custom_call.1} parent=1 // loop_body
      %s14 = ssub.s32 %s9, 1
      %s15 = ssub.s32 %s9, 2
      %s16 = sadd.s32 %s9, 1
      %s17 = ssub.s32 %s9, %s16
      %p18 = scmp.eq.s32.totalorder %s17, 0
      %s20 = sadd.s32 %s19, 1
      %s21 = scalar_select %p18, %s19, %s20
      %p24 = pneg %p18
      %p25 = scmp.eq.s32.totalorder %s9, 3
      %p26 = por %p24, %p25
      %p27 = scmp.ne.s32.totalorder %s19, %s22
      %p28 = scmp.eq.s32.totalorder %s9, 0
      %p29 = por %p27, %p28
      %p30 = scmp.ne.s32.totalorder %s19, %s22
      %p31 = scmp.eq.s32.totalorder %s14, 3
      %p32 = por %p30, %p31
      %p33 = scmp.ne.s32.totalorder %s22, %s23
      %p34 = scmp.eq.s32.totalorder %s14, 0
      %p35 = por %p33, %p34
      %p36 = scmp.ne.s32.totalorder %s22, %s23
      %p37 = scmp.eq.s32.totalorder %s15, 3
      %p38 = por %p36, %p37
      %p40 = scmp.ne.s32.totalorder %s23, %s39
      %p41 = scmp.eq.s32.totalorder %s15, 0
      %p42 = por %p40, %p41
      %s44 = sadd.s32 %s43, 1
      %p47 = scmp.eq.s32.totalorder %s9, 3
      %p48 = scmp.ne.s32.totalorder %s43, %s45
      %p49 = scmp.eq.s32.totalorder %s9, 0
      %p50 = por %p48, %p49
      %p51 = scmp.ne.s32.totalorder %s43, %s45
      %p52 = scmp.eq.s32.totalorder %s14, 3
      %p53 = por %p51, %p52
      %p54 = scmp.ne.s32.totalorder %s45, %s46
      %p55 = scmp.eq.s32.totalorder %s14, 0
      %p56 = por %p54, %p55
      %p57 = scmp.ne.s32.totalorder %s45, %s46
      %p58 = scmp.eq.s32.totalorder %s15, 3
      %p59 = por %p57, %p58
      %p61 = scmp.ne.s32.totalorder %s46, %s60
      %p62 = scmp.eq.s32.totalorder %s15, 0
      %p63 = por %p61, %p62
      %s65 = sadd.s32 %s64, 1
      %p68 = scmp.eq.s32.totalorder %s9, 3
      %p69 = scmp.ne.s32.totalorder %s64, %s66
      %p70 = scmp.eq.s32.totalorder %s9, 0
      %p71 = por %p69, %p70
      %p72 = scmp.ne.s32.totalorder %s64, %s66
      %p73 = scmp.eq.s32.totalorder %s14, 3
      %p74 = por %p72, %p73
      %p75 = scmp.ne.s32.totalorder %s66, %s67
      %p76 = scmp.eq.s32.totalorder %s14, 0
      %p77 = por %p75, %p76
      %p78 = scmp.ne.s32.totalorder %s66, %s67
      %p79 = scmp.eq.s32.totalorder %s15, 3
      %p80 = por %p78, %p79
      %p82 = scmp.ne.s32.totalorder %s67, %s81
      %p83 = scmp.eq.s32.totalorder %s15, 0
      %p84 = por %p82, %p83
      %s85 = ssub.s32 %s9, %s16
      %p86 = scmp.eq.s32.totalorder %s85, 0
      %s88 = sadd.s32 %s87, 1
      %s89 = scalar_select %p86, %s87, %s88
      %p92 = pneg %p86
      %p93 = scmp.eq.s32.totalorder %s9, 3
      %p94 = por %p92, %p93
      %p95 = scmp.ne.s32.totalorder %s87, %s90
      %p96 = scmp.eq.s32.totalorder %s9, 0
      %p97 = por %p95, %p96
      %p98 = scmp.ne.s32.totalorder %s87, %s90
      %p99 = scmp.eq.s32.totalorder %s14, 3
      %p100 = por %p98, %p99
      %p101 = scmp.ne.s32.totalorder %s90, %s91
      %p102 = scmp.eq.s32.totalorder %s14, 0
      %p103 = por %p101, %p102
      %p104 = scmp.ne.s32.totalorder %s90, %s91
      %p105 = scmp.eq.s32.totalorder %s15, 3
      %p106 = por %p104, %p105
      %p108 = scmp.ne.s32.totalorder %s91, %s107
      %p109 = scmp.eq.s32.totalorder %s15, 0
      %p110 = por %p108, %p109
      %p111 = scmp.le.s32.totalorder 1, %s9
      %p112 = scmp.lt.s32.totalorder %s9, 5
      %p113 = pnand %p111, %p112
      %p114 = pneg %p113
      // Predicated region
      $region9: #{tpu_custom_call.1} parent=5 // pred_check
        _
      $region10: #{tpu_custom_call.1} parent=5 // pred_check_branch
        %116 = sbr.rel (%p113) target = $region12
      $region11: #{tpu_custom_call.1} parent=5 // pred_region
        %s117 = ssub.s32 %s9, 1
        // Predicated region
        $region13: #{tpu_custom_call.1} parent=11 // pred_check
          %p118 = pneg %p56
        $region14: #{tpu_custom_call.1} parent=11 // pred_check_branch
          %120 = sbr.rel (%p118) target = $region16
        $region15: #{tpu_custom_call.1} parent=11 // pred_region
          _
        $region16: #{tpu_custom_call.1} parent=11 // pred_fallthru
          _
        // Predicated region
        $region17: #{tpu_custom_call.1} parent=11 // pred_check
          %p121 = pneg %p77
        $region18: #{tpu_custom_call.1} parent=11 // pred_check_branch
          %123 = sbr.rel (%p121) target = $region20
        $region19: #{tpu_custom_call.1} parent=11 // pred_region
          _
        $region20: #{tpu_custom_call.1} parent=11 // pred_fallthru
          _
      $region12: #{tpu_custom_call.1} parent=5 // pred_fallthru
        _
      %p124 = scmp.lt.s32.totalorder %s9, 4
      // Predicated region
      $region21: #{tpu_custom_call.1} parent=5 // pred_check
        %p125 = pneg %p124
      $region22: #{tpu_custom_call.1} parent=5 // pred_check_branch
        %127 = sbr.rel (%p125) target = $region24
      $region23: #{tpu_custom_call.1} parent=5 // pred_region
        // Predicated region
        $region25: #{tpu_custom_call.1} parent=23 // pred_check
          %p128 = pneg %p29
        $region26: #{tpu_custom_call.1} parent=23 // pred_check_branch
          %130 = sbr.rel (%p128) target = $region28
        $region27: #{tpu_custom_call.1} parent=23 // pred_region
          %s131 = smul.u32 144, %s9
          %s132 = ssub.s32 550, %s131
          %p133 = scmp.lt.s32.totalorder %s132, 144
          %s134 = scalar_select %p133, %s132, 144
          %s135 = smul.u32 8, %s134
          %p136 = scmp.lt.s32.totalorder %s131, 549
          %s137 = scalar_select %p136, %s131, 549
          %s138 = smul.addr %s137, 8
          %s139 = scalar_lea.vmem %s0, %s138
          %s140 = smul.u32 144, %s9
          %s141 = ssub.s32 550, %s140
          %p142 = scmp.lt.s32.totalorder %s141, 144
          %s143 = scalar_select %p142, %s141, 144
          %s144 = smul.u32 8, %s143
        $region28: #{tpu_custom_call.1} parent=23 // pred_fallthru
          _
      $region24: #{tpu_custom_call.1} parent=5 // pred_fallthru
        _
      %p145 = scmp.le.s32.totalorder 1, %s9
      %p146 = scmp.lt.s32.totalorder %s9, 5
      %p147 = pnand %p145, %p146
      %p148 = pneg %p147
      // Predicated region
      $region29: #{tpu_custom_call.1} parent=5 // pred_check
        _
      $region30: #{tpu_custom_call.1} parent=5 // pred_check_branch
        %150 = sbr.rel (%p147) target = $region32
      $region31: #{tpu_custom_call.1} parent=5 // pred_region
        %s151 = ssub.s32 %s9, 1
        %s152 = smul.u32 144, %s14
        %s153 = ssub.s32 550, %s152
        %p154 = scmp.lt.s32.totalorder %s153, 144
        %s155 = scalar_select %p154, %s153, 144
        %s156 = smul.u32 8, %s155
        %p157 = scmp.lt.s32.totalorder %s152, 549
        %s158 = scalar_select %p157, %s152, 549
        %s159 = smul.addr %s158, 8
        %s160 = scalar_lea.vmem %s0, %s159
        %p161 = pneg %p35
        %p162 = pneg %p32
        %p163 = pneg %p56
        %p164 = pneg %p53
        %p165 = pneg %p77
        %p166 = pneg %p74
        %p167 = pneg %p103
        %p168 = pneg %p100
        %s169 = sand.u32 %s90, 1
        %s170 = sand.u32 %s90, 1
        %s171 = smul.addr %s170, 1152
        %s172 = scalar_lea.vmem [#allocation2], %s171
        %s173 = smul.u32 144, %s14
        %s174 = ssub.s32 550, %s173
        %p175 = scmp.lt.s32.totalorder %s174, 144
        %s176 = scalar_select %p175, %s174, 144
        %s177 = smul.u32 8, %s176
        %p178 = scmp.lt.s32.totalorder %s173, 549
        %s179 = scalar_select %p178, %s173, 549
        %s180 = smul.addr %s179, 8
        %s181 = scalar_lea.vmem %s0, %s180
        %s182 = smul.u32 144, %s14
        %s183 = ssub.s32 550, %s182
        %p184 = scmp.lt.s32.totalorder %s183, 144
        %s185 = scalar_select %p184, %s183, 144
        %s186 = smul.u32 8, %s185
        %s187 = smul.u32 144, %s14
        %s188 = ssub.s32 550, %s187
        %p189 = scmp.lt.s32.totalorder %s188, 144
        %s190 = scalar_select %p189, %s188, 144
        %s191 = smul.u32 8, %s190
        %v192 = vld [vmem:[%s181] sm:$0xff]
        %v193 = vld [vmem:[%s181 + $0x8] sm:$0xff]
        %v194 = vld [vmem:[%s181 + $0x10] sm:$0xff]
        %v195 = vld [vmem:[%s181 + $0x18] sm:$0xff]
        %v196 = vld [vmem:[%s181 + $0x20] sm:$0xff]
        %v197 = vld [vmem:[%s181 + $0x28] sm:$0xff]
        %v198 = vld [vmem:[%s181 + $0x30] sm:$0xff]
        %v199 = vld [vmem:[%s181 + $0x38] sm:$0xff]
        %v200 = vld [vmem:[%s181 + $0x40] sm:$0xff]
        %v201 = vld [vmem:[%s181 + $0x48] sm:$0xff]
        %v202 = vld [vmem:[%s181 + $0x50] sm:$0xff]
        %v203 = vld [vmem:[%s181 + $0x58] sm:$0xff]
        %v204 = vld [vmem:[%s181 + $0x60] sm:$0xff]
        %v205 = vld [vmem:[%s181 + $0x68] sm:$0xff]
        %v206 = vld [vmem:[%s181 + $0x70] sm:$0xff]
        %v207 = vld [vmem:[%s181 + $0x78] sm:$0xff]
        %v208 = vld [vmem:[%s181 + $0x80] sm:$0xff]
        %v209 = vld [vmem:[%s181 + $0x88] sm:$0xff]
        %v210 = vld [vmem:[%s181 + $0x90] sm:$0xff]
        %v211 = vld [vmem:[%s181 + $0x98] sm:$0xff]
        %v212 = vld [vmem:[%s181 + $0xa0] sm:$0xff]
        %v213 = vld [vmem:[%s181 + $0xa8] sm:$0xff]
        %v214 = vld [vmem:[%s181 + $0xb0] sm:$0xff]
        %v215 = vld [vmem:[%s181 + $0xb8] sm:$0xff]
        %v216 = vld [vmem:[%s181 + $0xc0] sm:$0xff]
        %v217 = vld [vmem:[%s181 + $0xc8] sm:$0xff]
        %v218 = vld [vmem:[%s181 + $0xd0] sm:$0xff]
        %v219 = vld [vmem:[%s181 + $0xd8] sm:$0xff]
        %v220 = vld [vmem:[%s181 + $0xe0] sm:$0xff]
        %v221 = vld [vmem:[%s181 + $0xe8] sm:$0xff]
        %v222 = vld [vmem:[%s181 + $0xf0] sm:$0xff]
        %v223 = vld [vmem:[%s181 + $0xf8] sm:$0xff]
        %v224 = vld [vmem:[%s181 + $0x100] sm:$0xff]
        %v225 = vld [vmem:[%s181 + $0x108] sm:$0xff]
        %v226 = vld [vmem:[%s181 + $0x110] sm:$0xff]
        %v227 = vld [vmem:[%s181 + $0x118] sm:$0xff]
        %v228 = vld [vmem:[%s181 + $0x120] sm:$0xff]
        %v229 = vld [vmem:[%s181 + $0x128] sm:$0xff]
        %v230 = vld [vmem:[%s181 + $0x130] sm:$0xff]
        %v231 = vld [vmem:[%s181 + $0x138] sm:$0xff]
        %v232 = vld [vmem:[%s181 + $0x140] sm:$0xff]
        %v233 = vld [vmem:[%s181 + $0x148] sm:$0xff]
        %v234 = vld [vmem:[%s181 + $0x150] sm:$0xff]
        %v235 = vld [vmem:[%s181 + $0x158] sm:$0xff]
        %v236 = vld [vmem:[%s181 + $0x160] sm:$0xff]
        %v237 = vld [vmem:[%s181 + $0x168] sm:$0xff]
        %v238 = vld [vmem:[%s181 + $0x170] sm:$0xff]
        %v239 = vld [vmem:[%s181 + $0x178] sm:$0xff]
        %v240 = vld [vmem:[%s181 + $0x180] sm:$0xff]
        %v241 = vld [vmem:[%s181 + $0x188] sm:$0xff]
        %v242 = vld [vmem:[%s181 + $0x190] sm:$0xff]
        %v243 = vld [vmem:[%s181 + $0x198] sm:$0xff]
        %v244 = vld [vmem:[%s181 + $0x1a0] sm:$0xff]
        %v245 = vld [vmem:[%s181 + $0x1a8] sm:$0xff]
        %v246 = vld [vmem:[%s181 + $0x1b0] sm:$0xff]
        %v247 = vld [vmem:[%s181 + $0x1b8] sm:$0xff]
        %v248 = vld [vmem:[%s181 + $0x1c0] sm:$0xff]
        %v249 = vld [vmem:[%s181 + $0x1c8] sm:$0xff]
        %v250 = vld [vmem:[%s181 + $0x1d0] sm:$0xff]
        %v251 = vld [vmem:[%s181 + $0x1d8] sm:$0xff]
        %v252 = vld [vmem:[%s181 + $0x1e0] sm:$0xff]
        %v253 = vld [vmem:[%s181 + $0x1e8] sm:$0xff]
        %v254 = vld [vmem:[%s181 + $0x1f0] sm:$0xff]
        %v255 = vld [vmem:[%s181 + $0x1f8] sm:$0xff]
        %v256 = vld [vmem:[%s181 + $0x200] sm:$0xff]
        %v257 = vld [vmem:[%s181 + $0x208] sm:$0xff]
        %v258 = vld [vmem:[%s181 + $0x210] sm:$0xff]
        %v259 = vld [vmem:[%s181 + $0x218] sm:$0xff]
        %v260 = vld [vmem:[%s181 + $0x220] sm:$0xff]
        %v261 = vld [vmem:[%s181 + $0x228] sm:$0xff]
        %v262 = vld [vmem:[%s181 + $0x230] sm:$0xff]
        %v263 = vld [vmem:[%s181 + $0x238] sm:$0xff]
        %v264 = vld [vmem:[%s181 + $0x240] sm:$0xff]
        %v265 = vld [vmem:[%s181 + $0x248] sm:$0xff]
        %v266 = vld [vmem:[%s181 + $0x250] sm:$0xff]
        %v267 = vld [vmem:[%s181 + $0x258] sm:$0xff]
        %v268 = vld [vmem:[%s181 + $0x260] sm:$0xff]
        %v269 = vld [vmem:[%s181 + $0x268] sm:$0xff]
        %v270 = vld [vmem:[%s181 + $0x270] sm:$0xff]
        %v271 = vld [vmem:[%s181 + $0x278] sm:$0xff]
        %v272 = vld [vmem:[%s181 + $0x280] sm:$0xff]
        %v273 = vld [vmem:[%s181 + $0x288] sm:$0xff]
        %v274 = vld [vmem:[%s181 + $0x290] sm:$0xff]
        %v275 = vld [vmem:[%s181 + $0x298] sm:$0xff]
        %v276 = vld [vmem:[%s181 + $0x2a0] sm:$0xff]
        %v277 = vld [vmem:[%s181 + $0x2a8] sm:$0xff]
        %v278 = vld [vmem:[%s181 + $0x2b0] sm:$0xff]
        %v279 = vld [vmem:[%s181 + $0x2b8] sm:$0xff]
        %v280 = vld [vmem:[%s181 + $0x2c0] sm:$0xff]
        %v281 = vld [vmem:[%s181 + $0x2c8] sm:$0xff]
        %v282 = vld [vmem:[%s181 + $0x2d0] sm:$0xff]
        %v283 = vld [vmem:[%s181 + $0x2d8] sm:$0xff]
        %v284 = vld [vmem:[%s181 + $0x2e0] sm:$0xff]
        %v285 = vld [vmem:[%s181 + $0x2e8] sm:$0xff]
        %v286 = vld [vmem:[%s181 + $0x2f0] sm:$0xff]
        %v287 = vld [vmem:[%s181 + $0x2f8] sm:$0xff]
        %v288 = vld [vmem:[%s181 + $0x300] sm:$0xff]
        %v289 = vld [vmem:[%s181 + $0x308] sm:$0xff]
        %v290 = vld [vmem:[%s181 + $0x310] sm:$0xff]
        %v291 = vld [vmem:[%s181 + $0x318] sm:$0xff]
        %v292 = vld [vmem:[%s181 + $0x320] sm:$0xff]
        %v293 = vld [vmem:[%s181 + $0x328] sm:$0xff]
        %v294 = vld [vmem:[%s181 + $0x330] sm:$0xff]
        %v295 = vld [vmem:[%s181 + $0x338] sm:$0xff]
        %v296 = vld [vmem:[%s181 + $0x340] sm:$0xff]
        %v297 = vld [vmem:[%s181 + $0x348] sm:$0xff]
        %v298 = vld [vmem:[%s181 + $0x350] sm:$0xff]
        %v299 = vld [vmem:[%s181 + $0x358] sm:$0xff]
        %v300 = vld [vmem:[%s181 + $0x360] sm:$0xff]
        %v301 = vld [vmem:[%s181 + $0x368] sm:$0xff]
        %v302 = vld [vmem:[%s181 + $0x370] sm:$0xff]
        %v303 = vld [vmem:[%s181 + $0x378] sm:$0xff]
        %v304 = vld [vmem:[%s181 + $0x380] sm:$0xff]
        %v305 = vld [vmem:[%s181 + $0x388] sm:$0xff]
        %v306 = vld [vmem:[%s181 + $0x390] sm:$0xff]
        %v307 = vld [vmem:[%s181 + $0x398] sm:$0xff]
        %v308 = vld [vmem:[%s181 + $0x3a0] sm:$0xff]
        %v309 = vld [vmem:[%s181 + $0x3a8] sm:$0xff]
        %v310 = vld [vmem:[%s181 + $0x3b0] sm:$0xff]
        %v311 = vld [vmem:[%s181 + $0x3b8] sm:$0xff]
        %v312 = vld [vmem:[%s181 + $0x3c0] sm:$0xff]
        %v313 = vld [vmem:[%s181 + $0x3c8] sm:$0xff]
        %v314 = vld [vmem:[%s181 + $0x3d0] sm:$0xff]
        %v315 = vld [vmem:[%s181 + $0x3d8] sm:$0xff]
        %v316 = vld [vmem:[%s181 + $0x3e0] sm:$0xff]
        %v317 = vld [vmem:[%s181 + $0x3e8] sm:$0xff]
        %v318 = vld [vmem:[%s181 + $0x3f0] sm:$0xff]
        %v319 = vld [vmem:[%s181 + $0x3f8] sm:$0xff]
        %v320 = vld [vmem:[%s181 + $0x400] sm:$0xff]
        %v321 = vld [vmem:[%s181 + $0x408] sm:$0xff]
        %v322 = vld [vmem:[%s181 + $0x410] sm:$0xff]
        %v323 = vld [vmem:[%s181 + $0x418] sm:$0xff]
        %v324 = vld [vmem:[%s181 + $0x420] sm:$0xff]
        %v325 = vld [vmem:[%s181 + $0x428] sm:$0xff]
        %v326 = vld [vmem:[%s181 + $0x430] sm:$0xff]
        %v327 = vld [vmem:[%s181 + $0x438] sm:$0xff]
        %v328 = vld [vmem:[%s181 + $0x440] sm:$0xff]
        %v329 = vld [vmem:[%s181 + $0x448] sm:$0xff]
        %v330 = vld [vmem:[%s181 + $0x450] sm:$0xff]
        %v331 = vld [vmem:[%s181 + $0x458] sm:$0xff]
        %v332 = vld [vmem:[%s181 + $0x460] sm:$0xff]
        %v333 = vld [vmem:[%s181 + $0x468] sm:$0xff]
        %v334 = vld [vmem:[%s181 + $0x470] sm:$0xff]
        %v335 = vld [vmem:[%s181 + $0x478] sm:$0xff]
        %v336 = vld [vmem:[%s1] sm:$0xff]
        %v337 = vld [vmem:[%s1 + $0x8] sm:$0xff]
        %v338 = vld [vmem:[%s1 + $0x10] sm:$0xff]
        %v339 = vld [vmem:[%s1 + $0x18] sm:$0xff]
        %v340 = vld [vmem:[%s1 + $0x20] sm:$0xf]
        %v341 = vld [vmem:[%s2] sm:$0x1]
        %v343 = vperm.slane %v341, 0
        %vm345 = vcmask 293888
        %v347 = vsel %vm345, %v192, 0
        %v350 = vsel %vm345, %v193, 0
        %v353 = vsel %vm345, %v194, 0
        %v356 = vsel %vm345, %v195, 0
        %v359 = vsel %vm345, %v196, 0
        %v362 = vsel %vm345, %v197, 0
        %v365 = vsel %vm345, %v198, 0
        %v368 = vsel %vm345, %v199, 0
        %v371 = vsel %vm345, %v200, 0
        %v374 = vsel %vm345, %v201, 0
        %v377 = vsel %vm345, %v202, 0
        %v380 = vsel %vm345, %v203, 0
        %v383 = vsel %vm345, %v204, 0
        %v386 = vsel %vm345, %v205, 0
        %v389 = vsel %vm345, %v206, 0
        %v392 = vsel %vm345, %v207, 0
        %v395 = vsel %vm345, %v208, 0
        %v398 = vsel %vm345, %v209, 0
        %v401 = vsel %vm345, %v210, 0
        %v404 = vsel %vm345, %v211, 0
        %v407 = vsel %vm345, %v212, 0
        %v410 = vsel %vm345, %v213, 0
        %v413 = vsel %vm345, %v214, 0
        %v416 = vsel %vm345, %v215, 0
        %v419 = vsel %vm345, %v216, 0
        %v422 = vsel %vm345, %v217, 0
        %v425 = vsel %vm345, %v218, 0
        %v428 = vsel %vm345, %v219, 0
        %v431 = vsel %vm345, %v220, 0
        %v434 = vsel %vm345, %v221, 0
        %v437 = vsel %vm345, %v222, 0
        %v440 = vsel %vm345, %v223, 0
        %v443 = vsel %vm345, %v224, 0
        %v446 = vsel %vm345, %v225, 0
        %v449 = vsel %vm345, %v226, 0
        %v452 = vsel %vm345, %v227, 0
        %v455 = vsel %vm345, %v228, 0
        %v458 = vsel %vm345, %v229, 0
        %v461 = vsel %vm345, %v230, 0
        %v464 = vsel %vm345, %v231, 0
        %v467 = vsel %vm345, %v232, 0
        %v470 = vsel %vm345, %v233, 0
        %v473 = vsel %vm345, %v234, 0
        %v476 = vsel %vm345, %v235, 0
        %v479 = vsel %vm345, %v236, 0
        %v482 = vsel %vm345, %v237, 0
        %v485 = vsel %vm345, %v238, 0
        %v488 = vsel %vm345, %v239, 0
        %v491 = vsel %vm345, %v240, 0
        %v494 = vsel %vm345, %v241, 0
        %v497 = vsel %vm345, %v242, 0
        %v500 = vsel %vm345, %v243, 0
        %v503 = vsel %vm345, %v244, 0
        %v506 = vsel %vm345, %v245, 0
        %v509 = vsel %vm345, %v246, 0
        %v512 = vsel %vm345, %v247, 0
        %v515 = vsel %vm345, %v248, 0
        %v518 = vsel %vm345, %v249, 0
        %v521 = vsel %vm345, %v250, 0
        %v524 = vsel %vm345, %v251, 0
        %v527 = vsel %vm345, %v252, 0
        %v530 = vsel %vm345, %v253, 0
        %v533 = vsel %vm345, %v254, 0
        %v536 = vsel %vm345, %v255, 0
        %v539 = vsel %vm345, %v256, 0
        %v542 = vsel %vm345, %v257, 0
        %v545 = vsel %vm345, %v258, 0
        %v548 = vsel %vm345, %v259, 0
        %v551 = vsel %vm345, %v260, 0
        %v554 = vsel %vm345, %v261, 0
        %v557 = vsel %vm345, %v262, 0
        %v560 = vsel %vm345, %v263, 0
        %v563 = vsel %vm345, %v264, 0
        %v566 = vsel %vm345, %v265, 0
        %v569 = vsel %vm345, %v266, 0
        %v572 = vsel %vm345, %v267, 0
        %v575 = vsel %vm345, %v268, 0
        %v578 = vsel %vm345, %v269, 0
        %v581 = vsel %vm345, %v270, 0
        %v584 = vsel %vm345, %v271, 0
        %v587 = vsel %vm345, %v272, 0
        %v590 = vsel %vm345, %v273, 0
        %v593 = vsel %vm345, %v274, 0
        %v596 = vsel %vm345, %v275, 0
        %v599 = vsel %vm345, %v276, 0
        %v602 = vsel %vm345, %v277, 0
        %v605 = vsel %vm345, %v278, 0
        %v608 = vsel %vm345, %v279, 0
        %v611 = vsel %vm345, %v280, 0
        %v614 = vsel %vm345, %v281, 0
        %v617 = vsel %vm345, %v282, 0
        %v620 = vsel %vm345, %v283, 0
        %v623 = vsel %vm345, %v284, 0
        %v626 = vsel %vm345, %v285, 0
        %v629 = vsel %vm345, %v286, 0
        %v632 = vsel %vm345, %v287, 0
        %v635 = vsel %vm345, %v288, 0
        %v638 = vsel %vm345, %v289, 0
        %v641 = vsel %vm345, %v290, 0
        %v644 = vsel %vm345, %v291, 0
        %v647 = vsel %vm345, %v292, 0
        %v650 = vsel %vm345, %v293, 0
        %v653 = vsel %vm345, %v294, 0
        %v656 = vsel %vm345, %v295, 0
        %v659 = vsel %vm345, %v296, 0
        %v662 = vsel %vm345, %v297, 0
        %v665 = vsel %vm345, %v298, 0
        %v668 = vsel %vm345, %v299, 0
        %v671 = vsel %vm345, %v300, 0
        %v674 = vsel %vm345, %v301, 0
        %v677 = vsel %vm345, %v302, 0
        %v680 = vsel %vm345, %v303, 0
        %v683 = vsel %vm345, %v304, 0
        %v686 = vsel %vm345, %v305, 0
        %v689 = vsel %vm345, %v306, 0
        %v692 = vsel %vm345, %v307, 0
        %v695 = vsel %vm345, %v308, 0
        %v698 = vsel %vm345, %v309, 0
        %v701 = vsel %vm345, %v310, 0
        %v704 = vsel %vm345, %v311, 0
        %v707 = vsel %vm345, %v312, 0
        %v710 = vsel %vm345, %v313, 0
        %v713 = vsel %vm345, %v314, 0
        %v716 = vsel %vm345, %v315, 0
        %v719 = vsel %vm345, %v316, 0
        %v722 = vsel %vm345, %v317, 0
        %v725 = vsel %vm345, %v318, 0
        %v728 = vsel %vm345, %v319, 0
        %v731 = vsel %vm345, %v320, 0
        %v734 = vsel %vm345, %v321, 0
        %v737 = vsel %vm345, %v322, 0
        %v740 = vsel %vm345, %v323, 0
        %v743 = vsel %vm345, %v324, 0
        %v746 = vsel %vm345, %v325, 0
        %v749 = vsel %vm345, %v326, 0
        %v752 = vsel %vm345, %v327, 0
        %v755 = vsel %vm345, %v328, 0
        %v758 = vsel %vm345, %v329, 0
        %v761 = vsel %vm345, %v330, 0
        %v764 = vsel %vm345, %v331, 0
        %v767 = vsel %vm345, %v332, 0
        %v770 = vsel %vm345, %v333, 0
        %v773 = vsel %vm345, %v334, 0
        %v776 = vsel %vm345, %v335, 0
        %vm778 = vcmask 1043456
        %v780 = vsel %vm778, %v340, 0
        %782 = vmatpush.msra.mxu0 0.0
        %783 = vmatpush.msra.mxu0 0.0
        %784 = vmatpush.msra.mxu0 0.0
        %785 = vmatpush.msra.mxu0 0.0
        %786 = vmatpush.msra.mxu0 0.0
        %787 = vmatpush.msra.mxu0 0.0
        %788 = vmatpush.msra.mxu0 0.0
        %789 = vmatpush.msra.mxu0 0.0
        %790 = vmatpush.msra.mxu0 0.0
        %791 = vmatpush.msra.mxu0 0.0
        %792 = vmatpush.msra.mxu0 0.0
        %793 = vmatpush.msra.mxu0 %v780
        %794 = vmatpush.msra.mxu0 %v339
        %795 = vmatpush.msra.mxu0 %v338
        %796 = vmatpush.msra.mxu0 %v337
        %797 = vmatpush.msra.mxu0 %v336
        %798 = vmatmul.f32.gmra.mxu0 %v347
        %v799 = vpop.f32.mrf.mxu0
        %v800 = vadd.f32 %v343, %v799
        %801 = vmatmul.f32.gmra.mxu0 %v350
        %v802 = vpop.f32.mrf.mxu0
        %v803 = vadd.f32 %v343, %v802
        %804 = vmatmul.f32.gmra.mxu0 %v353
        %v805 = vpop.f32.mrf.mxu0
        %v806 = vadd.f32 %v343, %v805
        %807 = vmatmul.f32.gmra.mxu0 %v356
        %v808 = vpop.f32.mrf.mxu0
        %v809 = vadd.f32 %v343, %v808
        %810 = vmatmul.f32.gmra.mxu0 %v359
        %v811 = vpop.f32.mrf.mxu0
        %v812 = vadd.f32 %v343, %v811
        %813 = vmatmul.f32.gmra.mxu0 %v362
        %v814 = vpop.f32.mrf.mxu0
        %v815 = vadd.f32 %v343, %v814
        %816 = vmatmul.f32.gmra.mxu0 %v365
        %v817 = vpop.f32.mrf.mxu0
        %v818 = vadd.f32 %v343, %v817
        %819 = vmatmul.f32.gmra.mxu0 %v368
        %v820 = vpop.f32.mrf.mxu0
        %v821 = vadd.f32 %v343, %v820
        %822 = vmatmul.f32.gmra.mxu0 %v371
        %v823 = vpop.f32.mrf.mxu0
        %v824 = vadd.f32 %v343, %v823
        %825 = vmatmul.f32.gmra.mxu0 %v374
        %v826 = vpop.f32.mrf.mxu0
        %v827 = vadd.f32 %v343, %v826
        %828 = vmatmul.f32.gmra.mxu0 %v377
        %v829 = vpop.f32.mrf.mxu0
        %v830 = vadd.f32 %v343, %v829
        %831 = vmatmul.f32.gmra.mxu0 %v380
        %v832 = vpop.f32.mrf.mxu0
        %v833 = vadd.f32 %v343, %v832
        %834 = vmatmul.f32.gmra.mxu0 %v383
        %v835 = vpop.f32.mrf.mxu0
        %v836 = vadd.f32 %v343, %v835
        %837 = vmatmul.f32.gmra.mxu0 %v386
        %v838 = vpop.f32.mrf.mxu0
        %v839 = vadd.f32 %v343, %v838
        %840 = vmatmul.f32.gmra.mxu0 %v389
        %v841 = vpop.f32.mrf.mxu0
        %v842 = vadd.f32 %v343, %v841
        %843 = vmatmul.f32.gmra.mxu0 %v392
        %v844 = vpop.f32.mrf.mxu0
        %v845 = vadd.f32 %v343, %v844
        %846 = vmatmul.f32.gmra.mxu0 %v395
        %v847 = vpop.f32.mrf.mxu0
        %v848 = vadd.f32 %v343, %v847
        %849 = vmatmul.f32.gmra.mxu0 %v398
        %v850 = vpop.f32.mrf.mxu0
        %v851 = vadd.f32 %v343, %v850
        %852 = vmatmul.f32.gmra.mxu0 %v401
        %v853 = vpop.f32.mrf.mxu0
        %v854 = vadd.f32 %v343, %v853
        %855 = vmatmul.f32.gmra.mxu0 %v404
        %v856 = vpop.f32.mrf.mxu0
        %v857 = vadd.f32 %v343, %v856
        %858 = vmatmul.f32.gmra.mxu0 %v407
        %v859 = vpop.f32.mrf.mxu0
        %v860 = vadd.f32 %v343, %v859
        %861 = vmatmul.f32.gmra.mxu0 %v410
        %v862 = vpop.f32.mrf.mxu0
        %v863 = vadd.f32 %v343, %v862
        %864 = vmatmul.f32.gmra.mxu0 %v413
        %v865 = vpop.f32.mrf.mxu0
        %v866 = vadd.f32 %v343, %v865
        %867 = vmatmul.f32.gmra.mxu0 %v416
        %v868 = vpop.f32.mrf.mxu0
        %v869 = vadd.f32 %v343, %v868
        %870 = vmatmul.f32.gmra.mxu0 %v419
        %v871 = vpop.f32.mrf.mxu0
        %v872 = vadd.f32 %v343, %v871
        %873 = vmatmul.f32.gmra.mxu0 %v422
        %v874 = vpop.f32.mrf.mxu0
        %v875 = vadd.f32 %v343, %v874
        %876 = vmatmul.f32.gmra.mxu0 %v425
        %v877 = vpop.f32.mrf.mxu0
        %v878 = vadd.f32 %v343, %v877
        %879 = vmatmul.f32.gmra.mxu0 %v428
        %v880 = vpop.f32.mrf.mxu0
        %v881 = vadd.f32 %v343, %v880
        %882 = vmatmul.f32.gmra.mxu0 %v431
        %v883 = vpop.f32.mrf.mxu0
        %v884 = vadd.f32 %v343, %v883
        %885 = vmatmul.f32.gmra.mxu0 %v434
        %v886 = vpop.f32.mrf.mxu0
        %v887 = vadd.f32 %v343, %v886
        %888 = vmatmul.f32.gmra.mxu0 %v437
        %v889 = vpop.f32.mrf.mxu0
        %v890 = vadd.f32 %v343, %v889
        %891 = vmatmul.f32.gmra.mxu0 %v440
        %v892 = vpop.f32.mrf.mxu0
        %v893 = vadd.f32 %v343, %v892
        %894 = vmatmul.f32.gmra.mxu0 %v443
        %v895 = vpop.f32.mrf.mxu0
        %v896 = vadd.f32 %v343, %v895
        %897 = vmatmul.f32.gmra.mxu0 %v446
        %v898 = vpop.f32.mrf.mxu0
        %v899 = vadd.f32 %v343, %v898
        %900 = vmatmul.f32.gmra.mxu0 %v449
        %v901 = vpop.f32.mrf.mxu0
        %v902 = vadd.f32 %v343, %v901
        %903 = vmatmul.f32.gmra.mxu0 %v452
        %v904 = vpop.f32.mrf.mxu0
        %v905 = vadd.f32 %v343, %v904
        %906 = vmatmul.f32.gmra.mxu0 %v455
        %v907 = vpop.f32.mrf.mxu0
        %v908 = vadd.f32 %v343, %v907
        %909 = vmatmul.f32.gmra.mxu0 %v458
        %v910 = vpop.f32.mrf.mxu0
        %v911 = vadd.f32 %v343, %v910
        %912 = vmatmul.f32.gmra.mxu0 %v461
        %v913 = vpop.f32.mrf.mxu0
        %v914 = vadd.f32 %v343, %v913
        %915 = vmatmul.f32.gmra.mxu0 %v464
        %v916 = vpop.f32.mrf.mxu0
        %v917 = vadd.f32 %v343, %v916
        %918 = vmatmul.f32.gmra.mxu0 %v467
        %v919 = vpop.f32.mrf.mxu0
        %v920 = vadd.f32 %v343, %v919
        %921 = vmatmul.f32.gmra.mxu0 %v470
        %v922 = vpop.f32.mrf.mxu0
        %v923 = vadd.f32 %v343, %v922
        %924 = vmatmul.f32.gmra.mxu0 %v473
        %v925 = vpop.f32.mrf.mxu0
        %v926 = vadd.f32 %v343, %v925
        %927 = vmatmul.f32.gmra.mxu0 %v476
        %v928 = vpop.f32.mrf.mxu0
        %v929 = vadd.f32 %v343, %v928
        %930 = vmatmul.f32.gmra.mxu0 %v479
        %v931 = vpop.f32.mrf.mxu0
        %v932 = vadd.f32 %v343, %v931
        %933 = vmatmul.f32.gmra.mxu0 %v482
        %v934 = vpop.f32.mrf.mxu0
        %v935 = vadd.f32 %v343, %v934
        %936 = vmatmul.f32.gmra.mxu0 %v485
        %v937 = vpop.f32.mrf.mxu0
        %v938 = vadd.f32 %v343, %v937
        %939 = vmatmul.f32.gmra.mxu0 %v488
        %v940 = vpop.f32.mrf.mxu0
        %v941 = vadd.f32 %v343, %v940
        %942 = vmatmul.f32.gmra.mxu0 %v491
        %v943 = vpop.f32.mrf.mxu0
        %v944 = vadd.f32 %v343, %v943
        %945 = vmatmul.f32.gmra.mxu0 %v494
        %v946 = vpop.f32.mrf.mxu0
        %v947 = vadd.f32 %v343, %v946
        %948 = vmatmul.f32.gmra.mxu0 %v497
        %v949 = vpop.f32.mrf.mxu0
        %v950 = vadd.f32 %v343, %v949
        %951 = vmatmul.f32.gmra.mxu0 %v500
        %v952 = vpop.f32.mrf.mxu0
        %v953 = vadd.f32 %v343, %v952
        %954 = vmatmul.f32.gmra.mxu0 %v503
        %v955 = vpop.f32.mrf.mxu0
        %v956 = vadd.f32 %v343, %v955
        %957 = vmatmul.f32.gmra.mxu0 %v506
        %v958 = vpop.f32.mrf.mxu0
        %v959 = vadd.f32 %v343, %v958
        %960 = vmatmul.f32.gmra.mxu0 %v509
        %v961 = vpop.f32.mrf.mxu0
        %v962 = vadd.f32 %v343, %v961
        %963 = vmatmul.f32.gmra.mxu0 %v512
        %v964 = vpop.f32.mrf.mxu0
        %v965 = vadd.f32 %v343, %v964
        %966 = vmatmul.f32.gmra.mxu0 %v515
        %v967 = vpop.f32.mrf.mxu0
        %v968 = vadd.f32 %v343, %v967
        %969 = vmatmul.f32.gmra.mxu0 %v518
        %v970 = vpop.f32.mrf.mxu0
        %v971 = vadd.f32 %v343, %v970
        %972 = vmatmul.f32.gmra.mxu0 %v521
        %v973 = vpop.f32.mrf.mxu0
        %v974 = vadd.f32 %v343, %v973
        %975 = vmatmul.f32.gmra.mxu0 %v524
        %v976 = vpop.f32.mrf.mxu0
        %v977 = vadd.f32 %v343, %v976
        %978 = vmatmul.f32.gmra.mxu0 %v527
        %v979 = vpop.f32.mrf.mxu0
        %v980 = vadd.f32 %v343, %v979
        %981 = vmatmul.f32.gmra.mxu0 %v530
        %v982 = vpop.f32.mrf.mxu0
        %v983 = vadd.f32 %v343, %v982
        %984 = vmatmul.f32.gmra.mxu0 %v533
        %v985 = vpop.f32.mrf.mxu0
        %v986 = vadd.f32 %v343, %v985
        %987 = vmatmul.f32.gmra.mxu0 %v536
        %v988 = vpop.f32.mrf.mxu0
        %v989 = vadd.f32 %v343, %v988
        %990 = vmatmul.f32.gmra.mxu0 %v539
        %v991 = vpop.f32.mrf.mxu0
        %v992 = vadd.f32 %v343, %v991
        %993 = vmatmul.f32.gmra.mxu0 %v542
        %v994 = vpop.f32.mrf.mxu0
        %v995 = vadd.f32 %v343, %v994
        %996 = vmatmul.f32.gmra.mxu0 %v545
        %v997 = vpop.f32.mrf.mxu0
        %v998 = vadd.f32 %v343, %v997
        %999 = vmatmul.f32.gmra.mxu0 %v548
        %v1000 = vpop.f32.mrf.mxu0
        %v1001 = vadd.f32 %v343, %v1000
        %1002 = vmatmul.f32.gmra.mxu0 %v551
        %v1003 = vpop.f32.mrf.mxu0
        %v1004 = vadd.f32 %v343, %v1003
        %1005 = vmatmul.f32.gmra.mxu0 %v554
        %v1006 = vpop.f32.mrf.mxu0
        %v1007 = vadd.f32 %v343, %v1006
        %1008 = vmatmul.f32.gmra.mxu0 %v557
        %v1009 = vpop.f32.mrf.mxu0
        %v1010 = vadd.f32 %v343, %v1009
        %1011 = vmatmul.f32.gmra.mxu0 %v560
        %v1012 = vpop.f32.mrf.mxu0
        %v1013 = vadd.f32 %v343, %v1012
        %1014 = vmatmul.f32.gmra.mxu0 %v563
        %v1015 = vpop.f32.mrf.mxu0
        %v1016 = vadd.f32 %v343, %v1015
        %1017 = vmatmul.f32.gmra.mxu0 %v566
        %v1018 = vpop.f32.mrf.mxu0
        %v1019 = vadd.f32 %v343, %v1018
        %1020 = vmatmul.f32.gmra.mxu0 %v569
        %v1021 = vpop.f32.mrf.mxu0
        %v1022 = vadd.f32 %v343, %v1021
        %1023 = vmatmul.f32.gmra.mxu0 %v572
        %v1024 = vpop.f32.mrf.mxu0
        %v1025 = vadd.f32 %v343, %v1024
        %1026 = vmatmul.f32.gmra.mxu0 %v575
        %v1027 = vpop.f32.mrf.mxu0
        %v1028 = vadd.f32 %v343, %v1027
        %1029 = vmatmul.f32.gmra.mxu0 %v578
        %v1030 = vpop.f32.mrf.mxu0
        %v1031 = vadd.f32 %v343, %v1030
        %1032 = vmatmul.f32.gmra.mxu0 %v581
        %v1033 = vpop.f32.mrf.mxu0
        %v1034 = vadd.f32 %v343, %v1033
        %1035 = vmatmul.f32.gmra.mxu0 %v584
        %v1036 = vpop.f32.mrf.mxu0
        %v1037 = vadd.f32 %v343, %v1036
        %1038 = vmatmul.f32.gmra.mxu0 %v587
        %v1039 = vpop.f32.mrf.mxu0
        %v1040 = vadd.f32 %v343, %v1039
        %1041 = vmatmul.f32.gmra.mxu0 %v590
        %v1042 = vpop.f32.mrf.mxu0
        %v1043 = vadd.f32 %v343, %v1042
        %1044 = vmatmul.f32.gmra.mxu0 %v593
        %v1045 = vpop.f32.mrf.mxu0
        %v1046 = vadd.f32 %v343, %v1045
        %1047 = vmatmul.f32.gmra.mxu0 %v596
        %v1048 = vpop.f32.mrf.mxu0
        %v1049 = vadd.f32 %v343, %v1048
        %1050 = vmatmul.f32.gmra.mxu0 %v599
        %v1051 = vpop.f32.mrf.mxu0
        %v1052 = vadd.f32 %v343, %v1051
        %1053 = vmatmul.f32.gmra.mxu0 %v602
        %v1054 = vpop.f32.mrf.mxu0
        %v1055 = vadd.f32 %v343, %v1054
        %1056 = vmatmul.f32.gmra.mxu0 %v605
        %v1057 = vpop.f32.mrf.mxu0
        %v1058 = vadd.f32 %v343, %v1057
        %1059 = vmatmul.f32.gmra.mxu0 %v608
        %v1060 = vpop.f32.mrf.mxu0
        %v1061 = vadd.f32 %v343, %v1060
        %1062 = vmatmul.f32.gmra.mxu0 %v611
        %v1063 = vpop.f32.mrf.mxu0
        %v1064 = vadd.f32 %v343, %v1063
        %1065 = vmatmul.f32.gmra.mxu0 %v614
        %v1066 = vpop.f32.mrf.mxu0
        %v1067 = vadd.f32 %v343, %v1066
        %1068 = vmatmul.f32.gmra.mxu0 %v617
        %v1069 = vpop.f32.mrf.mxu0
        %v1070 = vadd.f32 %v343, %v1069
        %1071 = vmatmul.f32.gmra.mxu0 %v620
        %v1072 = vpop.f32.mrf.mxu0
        %v1073 = vadd.f32 %v343, %v1072
        %1074 = vmatmul.f32.gmra.mxu0 %v623
        %v1075 = vpop.f32.mrf.mxu0
        %v1076 = vadd.f32 %v343, %v1075
        %1077 = vmatmul.f32.gmra.mxu0 %v626
        %v1078 = vpop.f32.mrf.mxu0
        %v1079 = vadd.f32 %v343, %v1078
        %1080 = vmatmul.f32.gmra.mxu0 %v629
        %v1081 = vpop.f32.mrf.mxu0
        %v1082 = vadd.f32 %v343, %v1081
        %1083 = vmatmul.f32.gmra.mxu0 %v632
        %v1084 = vpop.f32.mrf.mxu0
        %v1085 = vadd.f32 %v343, %v1084
        %1086 = vmatmul.f32.gmra.mxu0 %v635
        %v1087 = vpop.f32.mrf.mxu0
        %v1088 = vadd.f32 %v343, %v1087
        %1089 = vmatmul.f32.gmra.mxu0 %v638
        %v1090 = vpop.f32.mrf.mxu0
        %v1091 = vadd.f32 %v343, %v1090
        %1092 = vmatmul.f32.gmra.mxu0 %v641
        %v1093 = vpop.f32.mrf.mxu0
        %v1094 = vadd.f32 %v343, %v1093
        %1095 = vmatmul.f32.gmra.mxu0 %v644
        %v1096 = vpop.f32.mrf.mxu0
        %v1097 = vadd.f32 %v343, %v1096
        %1098 = vmatmul.f32.gmra.mxu0 %v647
        %v1099 = vpop.f32.mrf.mxu0
        %v1100 = vadd.f32 %v343, %v1099
        %1101 = vmatmul.f32.gmra.mxu0 %v650
        %v1102 = vpop.f32.mrf.mxu0
        %v1103 = vadd.f32 %v343, %v1102
        %1104 = vmatmul.f32.gmra.mxu0 %v653
        %v1105 = vpop.f32.mrf.mxu0
        %v1106 = vadd.f32 %v343, %v1105
        %1107 = vmatmul.f32.gmra.mxu0 %v656
        %v1108 = vpop.f32.mrf.mxu0
        %v1109 = vadd.f32 %v343, %v1108
        %1110 = vmatmul.f32.gmra.mxu0 %v659
        %v1111 = vpop.f32.mrf.mxu0
        %v1112 = vadd.f32 %v343, %v1111
        %1113 = vmatmul.f32.gmra.mxu0 %v662
        %v1114 = vpop.f32.mrf.mxu0
        %v1115 = vadd.f32 %v343, %v1114
        %1116 = vmatmul.f32.gmra.mxu0 %v665
        %v1117 = vpop.f32.mrf.mxu0
        %v1118 = vadd.f32 %v343, %v1117
        %1119 = vmatmul.f32.gmra.mxu0 %v668
        %v1120 = vpop.f32.mrf.mxu0
        %v1121 = vadd.f32 %v343, %v1120
        %1122 = vmatmul.f32.gmra.mxu0 %v671
        %v1123 = vpop.f32.mrf.mxu0
        %v1124 = vadd.f32 %v343, %v1123
        %1125 = vmatmul.f32.gmra.mxu0 %v674
        %v1126 = vpop.f32.mrf.mxu0
        %v1127 = vadd.f32 %v343, %v1126
        %1128 = vmatmul.f32.gmra.mxu0 %v677
        %v1129 = vpop.f32.mrf.mxu0
        %v1130 = vadd.f32 %v343, %v1129
        %1131 = vmatmul.f32.gmra.mxu0 %v680
        %v1132 = vpop.f32.mrf.mxu0
        %v1133 = vadd.f32 %v343, %v1132
        %1134 = vmatmul.f32.gmra.mxu0 %v683
        %v1135 = vpop.f32.mrf.mxu0
        %v1136 = vadd.f32 %v343, %v1135
        %1137 = vmatmul.f32.gmra.mxu0 %v686
        %v1138 = vpop.f32.mrf.mxu0
        %v1139 = vadd.f32 %v343, %v1138
        %1140 = vmatmul.f32.gmra.mxu0 %v689
        %v1141 = vpop.f32.mrf.mxu0
        %v1142 = vadd.f32 %v343, %v1141
        %1143 = vmatmul.f32.gmra.mxu0 %v692
        %v1144 = vpop.f32.mrf.mxu0
        %v1145 = vadd.f32 %v343, %v1144
        %1146 = vmatmul.f32.gmra.mxu0 %v695
        %v1147 = vpop.f32.mrf.mxu0
        %v1148 = vadd.f32 %v343, %v1147
        %1149 = vmatmul.f32.gmra.mxu0 %v698
        %v1150 = vpop.f32.mrf.mxu0
        %v1151 = vadd.f32 %v343, %v1150
        %1152 = vmatmul.f32.gmra.mxu0 %v701
        %v1153 = vpop.f32.mrf.mxu0
        %v1154 = vadd.f32 %v343, %v1153
        %1155 = vmatmul.f32.gmra.mxu0 %v704
        %v1156 = vpop.f32.mrf.mxu0
        %v1157 = vadd.f32 %v343, %v1156
        %1158 = vmatmul.f32.gmra.mxu0 %v707
        %v1159 = vpop.f32.mrf.mxu0
        %v1160 = vadd.f32 %v343, %v1159
        %1161 = vmatmul.f32.gmra.mxu0 %v710
        %v1162 = vpop.f32.mrf.mxu0
        %v1163 = vadd.f32 %v343, %v1162
        %1164 = vmatmul.f32.gmra.mxu0 %v713
        %v1165 = vpop.f32.mrf.mxu0
        %v1166 = vadd.f32 %v343, %v1165
        %1167 = vmatmul.f32.gmra.mxu0 %v716
        %v1168 = vpop.f32.mrf.mxu0
        %v1169 = vadd.f32 %v343, %v1168
        %1170 = vmatmul.f32.gmra.mxu0 %v719
        %v1171 = vpop.f32.mrf.mxu0
        %v1172 = vadd.f32 %v343, %v1171
        %1173 = vmatmul.f32.gmra.mxu0 %v722
        %v1174 = vpop.f32.mrf.mxu0
        %v1175 = vadd.f32 %v343, %v1174
        %1176 = vmatmul.f32.gmra.mxu0 %v725
        %v1177 = vpop.f32.mrf.mxu0
        %v1178 = vadd.f32 %v343, %v1177
        %1179 = vmatmul.f32.gmra.mxu0 %v728
        %v1180 = vpop.f32.mrf.mxu0
        %v1181 = vadd.f32 %v343, %v1180
        %1182 = vmatmul.f32.gmra.mxu0 %v731
        %v1183 = vpop.f32.mrf.mxu0
        %v1184 = vadd.f32 %v343, %v1183
        %1185 = vmatmul.f32.gmra.mxu0 %v734
        %v1186 = vpop.f32.mrf.mxu0
        %v1187 = vadd.f32 %v343, %v1186
        %1188 = vmatmul.f32.gmra.mxu0 %v737
        %v1189 = vpop.f32.mrf.mxu0
        %v1190 = vadd.f32 %v343, %v1189
        %1191 = vmatmul.f32.gmra.mxu0 %v740
        %v1192 = vpop.f32.mrf.mxu0
        %v1193 = vadd.f32 %v343, %v1192
        %1194 = vmatmul.f32.gmra.mxu0 %v743
        %v1195 = vpop.f32.mrf.mxu0
        %v1196 = vadd.f32 %v343, %v1195
        %1197 = vmatmul.f32.gmra.mxu0 %v746
        %v1198 = vpop.f32.mrf.mxu0
        %v1199 = vadd.f32 %v343, %v1198
        %1200 = vmatmul.f32.gmra.mxu0 %v749
        %v1201 = vpop.f32.mrf.mxu0
        %v1202 = vadd.f32 %v343, %v1201
        %1203 = vmatmul.f32.gmra.mxu0 %v752
        %v1204 = vpop.f32.mrf.mxu0
        %v1205 = vadd.f32 %v343, %v1204
        %1206 = vmatmul.f32.gmra.mxu0 %v755
        %v1207 = vpop.f32.mrf.mxu0
        %v1208 = vadd.f32 %v343, %v1207
        %1209 = vmatmul.f32.gmra.mxu0 %v758
        %v1210 = vpop.f32.mrf.mxu0
        %v1211 = vadd.f32 %v343, %v1210
        %1212 = vmatmul.f32.gmra.mxu0 %v761
        %v1213 = vpop.f32.mrf.mxu0
        %v1214 = vadd.f32 %v343, %v1213
        %1215 = vmatmul.f32.gmra.mxu0 %v764
        %v1216 = vpop.f32.mrf.mxu0
        %v1217 = vadd.f32 %v343, %v1216
        %1218 = vmatmul.f32.gmra.mxu0 %v767
        %v1219 = vpop.f32.mrf.mxu0
        %v1220 = vadd.f32 %v343, %v1219
        %1221 = vmatmul.f32.gmra.mxu0 %v770
        %v1222 = vpop.f32.mrf.mxu0
        %v1223 = vadd.f32 %v343, %v1222
        %1224 = vmatmul.f32.gmra.mxu0 %v773
        %v1225 = vpop.f32.mrf.mxu0
        %v1226 = vadd.f32 %v343, %v1225
        %1227 = vmatmul.f32.gmra.mxu0 %v776
        %v1228 = vpop.f32.mrf.mxu0
        %v1229 = vadd.f32 %v343, %v1228
        %1230 = vdwg.mxu0
        %vm1231 = vcmask 31744
        %v1232 = vsel %vm1231, %v800, -inf
        %1233 = vmax.xlane.f32.xlu0 %v1232
        %v1234 = vpop.xlane.xlu0 %1233
        %v1235 = vsel %vm1231, %v803, -inf
        %1236 = vmax.xlane.f32.xlu0 %v1235
        %v1237 = vpop.xlane.xlu0 %1236
        %v1238 = vsel %vm1231, %v806, -inf
        %1239 = vmax.xlane.f32.xlu0 %v1238
        %v1240 = vpop.xlane.xlu0 %1239
        %v1241 = vsel %vm1231, %v809, -inf
        %1242 = vmax.xlane.f32.xlu0 %v1241
        %v1243 = vpop.xlane.xlu0 %1242
        %v1244 = vsel %vm1231, %v812, -inf
        %1245 = vmax.xlane.f32.xlu0 %v1244
        %v1246 = vpop.xlane.xlu0 %1245
        %v1247 = vsel %vm1231, %v815, -inf
        %1248 = vmax.xlane.f32.xlu0 %v1247
        %v1249 = vpop.xlane.xlu0 %1248
        %v1250 = vsel %vm1231, %v818, -inf
        %1251 = vmax.xlane.f32.xlu0 %v1250
        %v1252 = vpop.xlane.xlu0 %1251
        %v1253 = vsel %vm1231, %v821, -inf
        %1254 = vmax.xlane.f32.xlu0 %v1253
        %v1255 = vpop.xlane.xlu0 %1254
        %v1256 = vsel %vm1231, %v824, -inf
        %1257 = vmax.xlane.f32.xlu0 %v1256
        %v1258 = vpop.xlane.xlu0 %1257
        %v1259 = vsel %vm1231, %v827, -inf
        %1260 = vmax.xlane.f32.xlu0 %v1259
        %v1261 = vpop.xlane.xlu0 %1260
        %v1262 = vsel %vm1231, %v830, -inf
        %1263 = vmax.xlane.f32.xlu0 %v1262
        %v1264 = vpop.xlane.xlu0 %1263
        %v1265 = vsel %vm1231, %v833, -inf
        %1266 = vmax.xlane.f32.xlu0 %v1265
        %v1267 = vpop.xlane.xlu0 %1266
        %v1268 = vsel %vm1231, %v836, -inf
        %1269 = vmax.xlane.f32.xlu0 %v1268
        %v1270 = vpop.xlane.xlu0 %1269
        %v1271 = vsel %vm1231, %v839, -inf
        %1272 = vmax.xlane.f32.xlu0 %v1271
        %v1273 = vpop.xlane.xlu0 %1272
        %v1274 = vsel %vm1231, %v842, -inf
        %1275 = vmax.xlane.f32.xlu0 %v1274
        %v1276 = vpop.xlane.xlu0 %1275
        %v1277 = vsel %vm1231, %v845, -inf
        %1278 = vmax.xlane.f32.xlu0 %v1277
        %v1279 = vpop.xlane.xlu0 %1278
        %v1280 = vsel %vm1231, %v848, -inf
        %1281 = vmax.xlane.f32.xlu0 %v1280
        %v1282 = vpop.xlane.xlu0 %1281
        %v1283 = vsel %vm1231, %v851, -inf
        %1284 = vmax.xlane.f32.xlu0 %v1283
        %v1285 = vpop.xlane.xlu0 %1284
        %v1286 = vsel %vm1231, %v854, -inf
        %1287 = vmax.xlane.f32.xlu0 %v1286
        %v1288 = vpop.xlane.xlu0 %1287
        %v1289 = vsel %vm1231, %v857, -inf
        %1290 = vmax.xlane.f32.xlu0 %v1289
        %v1291 = vpop.xlane.xlu0 %1290
        %v1292 = vsel %vm1231, %v860, -inf
        %1293 = vmax.xlane.f32.xlu0 %v1292
        %v1294 = vpop.xlane.xlu0 %1293
        %v1295 = vsel %vm1231, %v863, -inf
        %1296 = vmax.xlane.f32.xlu0 %v1295
        %v1297 = vpop.xlane.xlu0 %1296
        %v1298 = vsel %vm1231, %v866, -inf
        %1299 = vmax.xlane.f32.xlu0 %v1298
        %v1300 = vpop.xlane.xlu0 %1299
        %v1301 = vsel %vm1231, %v869, -inf
        %1302 = vmax.xlane.f32.xlu0 %v1301
        %v1303 = vpop.xlane.xlu0 %1302
        %v1304 = vsel %vm1231, %v872, -inf
        %1305 = vmax.xlane.f32.xlu0 %v1304
        %v1306 = vpop.xlane.xlu0 %1305
        %v1307 = vsel %vm1231, %v875, -inf
        %1308 = vmax.xlane.f32.xlu0 %v1307
        %v1309 = vpop.xlane.xlu0 %1308
        %v1310 = vsel %vm1231, %v878, -inf
        %1311 = vmax.xlane.f32.xlu0 %v1310
        %v1312 = vpop.xlane.xlu0 %1311
        %v1313 = vsel %vm1231, %v881, -inf
        %1314 = vmax.xlane.f32.xlu0 %v1313
        %v1315 = vpop.xlane.xlu0 %1314
        %v1316 = vsel %vm1231, %v884, -inf
        %1317 = vmax.xlane.f32.xlu0 %v1316
        %v1318 = vpop.xlane.xlu0 %1317
        %v1319 = vsel %vm1231, %v887, -inf
        %1320 = vmax.xlane.f32.xlu0 %v1319
        %v1321 = vpop.xlane.xlu0 %1320
        %v1322 = vsel %vm1231, %v890, -inf
        %1323 = vmax.xlane.f32.xlu0 %v1322
        %v1324 = vpop.xlane.xlu0 %1323
        %v1325 = vsel %vm1231, %v893, -inf
        %1326 = vmax.xlane.f32.xlu0 %v1325
        %v1327 = vpop.xlane.xlu0 %1326
        %v1328 = vsel %vm1231, %v896, -inf
        %1329 = vmax.xlane.f32.xlu0 %v1328
        %v1330 = vpop.xlane.xlu0 %1329
        %v1331 = vsel %vm1231, %v899, -inf
        %1332 = vmax.xlane.f32.xlu0 %v1331
        %v1333 = vpop.xlane.xlu0 %1332
        %v1334 = vsel %vm1231, %v902, -inf
        %1335 = vmax.xlane.f32.xlu0 %v1334
        %v1336 = vpop.xlane.xlu0 %1335
        %v1337 = vsel %vm1231, %v905, -inf
        %1338 = vmax.xlane.f32.xlu0 %v1337
        %v1339 = vpop.xlane.xlu0 %1338
        %v1340 = vsel %vm1231, %v908, -inf
        %1341 = vmax.xlane.f32.xlu0 %v1340
        %v1342 = vpop.xlane.xlu0 %1341
        %v1343 = vsel %vm1231, %v911, -inf
        %1344 = vmax.xlane.f32.xlu0 %v1343
        %v1345 = vpop.xlane.xlu0 %1344
        %v1346 = vsel %vm1231, %v914, -inf
        %1347 = vmax.xlane.f32.xlu0 %v1346
        %v1348 = vpop.xlane.xlu0 %1347
        %v1349 = vsel %vm1231, %v917, -inf
        %1350 = vmax.xlane.f32.xlu0 %v1349
        %v1351 = vpop.xlane.xlu0 %1350
        %v1352 = vsel %vm1231, %v920, -inf
        %1353 = vmax.xlane.f32.xlu0 %v1352
        %v1354 = vpop.xlane.xlu0 %1353
        %v1355 = vsel %vm1231, %v923, -inf
        %1356 = vmax.xlane.f32.xlu0 %v1355
        %v1357 = vpop.xlane.xlu0 %1356
        %v1358 = vsel %vm1231, %v926, -inf
        %1359 = vmax.xlane.f32.xlu0 %v1358
        %v1360 = vpop.xlane.xlu0 %1359
        %v1361 = vsel %vm1231, %v929, -inf
        %1362 = vmax.xlane.f32.xlu0 %v1361
        %v1363 = vpop.xlane.xlu0 %1362
        %v1364 = vsel %vm1231, %v932, -inf
        %1365 = vmax.xlane.f32.xlu0 %v1364
        %v1366 = vpop.xlane.xlu0 %1365
        %v1367 = vsel %vm1231, %v935, -inf
        %1368 = vmax.xlane.f32.xlu0 %v1367
        %v1369 = vpop.xlane.xlu0 %1368
        %v1370 = vsel %vm1231, %v938, -inf
        %1371 = vmax.xlane.f32.xlu0 %v1370
        %v1372 = vpop.xlane.xlu0 %1371
        %v1373 = vsel %vm1231, %v941, -inf
        %1374 = vmax.xlane.f32.xlu0 %v1373
        %v1375 = vpop.xlane.xlu0 %1374
        %v1376 = vsel %vm1231, %v944, -inf
        %1377 = vmax.xlane.f32.xlu0 %v1376
        %v1378 = vpop.xlane.xlu0 %1377
        %v1379 = vsel %vm1231, %v947, -inf
        %1380 = vmax.xlane.f32.xlu0 %v1379
        %v1381 = vpop.xlane.xlu0 %1380
        %v1382 = vsel %vm1231, %v950, -inf
        %1383 = vmax.xlane.f32.xlu0 %v1382
        %v1384 = vpop.xlane.xlu0 %1383
        %v1385 = vsel %vm1231, %v953, -inf
        %1386 = vmax.xlane.f32.xlu0 %v1385
        %v1387 = vpop.xlane.xlu0 %1386
        %v1388 = vsel %vm1231, %v956, -inf
        %1389 = vmax.xlane.f32.xlu0 %v1388
        %v1390 = vpop.xlane.xlu0 %1389
        %v1391 = vsel %vm1231, %v959, -inf
        %1392 = vmax.xlane.f32.xlu0 %v1391
        %v1393 = vpop.xlane.xlu0 %1392
        %v1394 = vsel %vm1231, %v962, -inf
        %1395 = vmax.xlane.f32.xlu0 %v1394
        %v1396 = vpop.xlane.xlu0 %1395
        %v1397 = vsel %vm1231, %v965, -inf
        %1398 = vmax.xlane.f32.xlu0 %v1397
        %v1399 = vpop.xlane.xlu0 %1398
        %v1400 = vsel %vm1231, %v968, -inf
        %1401 = vmax.xlane.f32.xlu0 %v1400
        %v1402 = vpop.xlane.xlu0 %1401
        %v1403 = vsel %vm1231, %v971, -inf
        %1404 = vmax.xlane.f32.xlu0 %v1403
        %v1405 = vpop.xlane.xlu0 %1404
        %v1406 = vsel %vm1231, %v974, -inf
        %1407 = vmax.xlane.f32.xlu0 %v1406
        %v1408 = vpop.xlane.xlu0 %1407
        %v1409 = vsel %vm1231, %v977, -inf
        %1410 = vmax.xlane.f32.xlu0 %v1409
        %v1411 = vpop.xlane.xlu0 %1410
        %v1412 = vsel %vm1231, %v980, -inf
        %1413 = vmax.xlane.f32.xlu0 %v1412
        %v1414 = vpop.xlane.xlu0 %1413
        %v1415 = vsel %vm1231, %v983, -inf
        %1416 = vmax.xlane.f32.xlu0 %v1415
        %v1417 = vpop.xlane.xlu0 %1416
        %v1418 = vsel %vm1231, %v986, -inf
        %1419 = vmax.xlane.f32.xlu0 %v1418
        %v1420 = vpop.xlane.xlu0 %1419
        %v1421 = vsel %vm1231, %v989, -inf
        %1422 = vmax.xlane.f32.xlu0 %v1421
        %v1423 = vpop.xlane.xlu0 %1422
        %v1424 = vsel %vm1231, %v992, -inf
        %1425 = vmax.xlane.f32.xlu0 %v1424
        %v1426 = vpop.xlane.xlu0 %1425
        %v1427 = vsel %vm1231, %v995, -inf
        %1428 = vmax.xlane.f32.xlu0 %v1427
        %v1429 = vpop.xlane.xlu0 %1428
        %v1430 = vsel %vm1231, %v998, -inf
        %1431 = vmax.xlane.f32.xlu0 %v1430
        %v1432 = vpop.xlane.xlu0 %1431
        %v1433 = vsel %vm1231, %v1001, -inf
        %1434 = vmax.xlane.f32.xlu0 %v1433
        %v1435 = vpop.xlane.xlu0 %1434
        %v1436 = vsel %vm1231, %v1004, -inf
        %1437 = vmax.xlane.f32.xlu0 %v1436
        %v1438 = vpop.xlane.xlu0 %1437
        %v1439 = vsel %vm1231, %v1007, -inf
        %1440 = vmax.xlane.f32.xlu0 %v1439
        %v1441 = vpop.xlane.xlu0 %1440
        %v1442 = vsel %vm1231, %v1010, -inf
        %1443 = vmax.xlane.f32.xlu0 %v1442
        %v1444 = vpop.xlane.xlu0 %1443
        %v1445 = vsel %vm1231, %v1013, -inf
        %1446 = vmax.xlane.f32.xlu0 %v1445
        %v1447 = vpop.xlane.xlu0 %1446
        %v1448 = vsel %vm1231, %v1016, -inf
        %1449 = vmax.xlane.f32.xlu0 %v1448
        %v1450 = vpop.xlane.xlu0 %1449
        %v1451 = vsel %vm1231, %v1019, -inf
        %1452 = vmax.xlane.f32.xlu0 %v1451
        %v1453 = vpop.xlane.xlu0 %1452
        %v1454 = vsel %vm1231, %v1022, -inf
        %1455 = vmax.xlane.f32.xlu0 %v1454
        %v1456 = vpop.xlane.xlu0 %1455
        %v1457 = vsel %vm1231, %v1025, -inf
        %1458 = vmax.xlane.f32.xlu0 %v1457
        %v1459 = vpop.xlane.xlu0 %1458
        %v1460 = vsel %vm1231, %v1028, -inf
        %1461 = vmax.xlane.f32.xlu0 %v1460
        %v1462 = vpop.xlane.xlu0 %1461
        %v1463 = vsel %vm1231, %v1031, -inf
        %1464 = vmax.xlane.f32.xlu0 %v1463
        %v1465 = vpop.xlane.xlu0 %1464
        %v1466 = vsel %vm1231, %v1034, -inf
        %1467 = vmax.xlane.f32.xlu0 %v1466
        %v1468 = vpop.xlane.xlu0 %1467
        %v1469 = vsel %vm1231, %v1037, -inf
        %1470 = vmax.xlane.f32.xlu0 %v1469
        %v1471 = vpop.xlane.xlu0 %1470
        %v1472 = vsel %vm1231, %v1040, -inf
        %1473 = vmax.xlane.f32.xlu0 %v1472
        %v1474 = vpop.xlane.xlu0 %1473
        %v1475 = vsel %vm1231, %v1043, -inf
        %1476 = vmax.xlane.f32.xlu0 %v1475
        %v1477 = vpop.xlane.xlu0 %1476
        %v1478 = vsel %vm1231, %v1046, -inf
        %1479 = vmax.xlane.f32.xlu0 %v1478
        %v1480 = vpop.xlane.xlu0 %1479
        %v1481 = vsel %vm1231, %v1049, -inf
        %1482 = vmax.xlane.f32.xlu0 %v1481
        %v1483 = vpop.xlane.xlu0 %1482
        %v1484 = vsel %vm1231, %v1052, -inf
        %1485 = vmax.xlane.f32.xlu0 %v1484
        %v1486 = vpop.xlane.xlu0 %1485
        %v1487 = vsel %vm1231, %v1055, -inf
        %1488 = vmax.xlane.f32.xlu0 %v1487
        %v1489 = vpop.xlane.xlu0 %1488
        %v1490 = vsel %vm1231, %v1058, -inf
        %1491 = vmax.xlane.f32.xlu0 %v1490
        %v1492 = vpop.xlane.xlu0 %1491
        %v1493 = vsel %vm1231, %v1061, -inf
        %1494 = vmax.xlane.f32.xlu0 %v1493
        %v1495 = vpop.xlane.xlu0 %1494
        %v1496 = vsel %vm1231, %v1064, -inf
        %1497 = vmax.xlane.f32.xlu0 %v1496
        %v1498 = vpop.xlane.xlu0 %1497
        %v1499 = vsel %vm1231, %v1067, -inf
        %1500 = vmax.xlane.f32.xlu0 %v1499
        %v1501 = vpop.xlane.xlu0 %1500
        %v1502 = vsel %vm1231, %v1070, -inf
        %1503 = vmax.xlane.f32.xlu0 %v1502
        %v1504 = vpop.xlane.xlu0 %1503
        %v1505 = vsel %vm1231, %v1073, -inf
        %1506 = vmax.xlane.f32.xlu0 %v1505
        %v1507 = vpop.xlane.xlu0 %1506
        %v1508 = vsel %vm1231, %v1076, -inf
        %1509 = vmax.xlane.f32.xlu0 %v1508
        %v1510 = vpop.xlane.xlu0 %1509
        %v1511 = vsel %vm1231, %v1079, -inf
        %1512 = vmax.xlane.f32.xlu0 %v1511
        %v1513 = vpop.xlane.xlu0 %1512
        %v1514 = vsel %vm1231, %v1082, -inf
        %1515 = vmax.xlane.f32.xlu0 %v1514
        %v1516 = vpop.xlane.xlu0 %1515
        %v1517 = vsel %vm1231, %v1085, -inf
        %1518 = vmax.xlane.f32.xlu0 %v1517
        %v1519 = vpop.xlane.xlu0 %1518
        %v1520 = vsel %vm1231, %v1088, -inf
        %1521 = vmax.xlane.f32.xlu0 %v1520
        %v1522 = vpop.xlane.xlu0 %1521
        %v1523 = vsel %vm1231, %v1091, -inf
        %1524 = vmax.xlane.f32.xlu0 %v1523
        %v1525 = vpop.xlane.xlu0 %1524
        %v1526 = vsel %vm1231, %v1094, -inf
        %1527 = vmax.xlane.f32.xlu0 %v1526
        %v1528 = vpop.xlane.xlu0 %1527
        %v1529 = vsel %vm1231, %v1097, -inf
        %1530 = vmax.xlane.f32.xlu0 %v1529
        %v1531 = vpop.xlane.xlu0 %1530
        %v1532 = vsel %vm1231, %v1100, -inf
        %1533 = vmax.xlane.f32.xlu0 %v1532
        %v1534 = vpop.xlane.xlu0 %1533
        %v1535 = vsel %vm1231, %v1103, -inf
        %1536 = vmax.xlane.f32.xlu0 %v1535
        %v1537 = vpop.xlane.xlu0 %1536
        %v1538 = vsel %vm1231, %v1106, -inf
        %1539 = vmax.xlane.f32.xlu0 %v1538
        %v1540 = vpop.xlane.xlu0 %1539
        %v1541 = vsel %vm1231, %v1109, -inf
        %1542 = vmax.xlane.f32.xlu0 %v1541
        %v1543 = vpop.xlane.xlu0 %1542
        %v1544 = vsel %vm1231, %v1112, -inf
        %1545 = vmax.xlane.f32.xlu0 %v1544
        %v1546 = vpop.xlane.xlu0 %1545
        %v1547 = vsel %vm1231, %v1115, -inf
        %1548 = vmax.xlane.f32.xlu0 %v1547
        %v1549 = vpop.xlane.xlu0 %1548
        %v1550 = vsel %vm1231, %v1118, -inf
        %1551 = vmax.xlane.f32.xlu0 %v1550
        %v1552 = vpop.xlane.xlu0 %1551
        %v1553 = vsel %vm1231, %v1121, -inf
        %1554 = vmax.xlane.f32.xlu0 %v1553
        %v1555 = vpop.xlane.xlu0 %1554
        %v1556 = vsel %vm1231, %v1124, -inf
        %1557 = vmax.xlane.f32.xlu0 %v1556
        %v1558 = vpop.xlane.xlu0 %1557
        %v1559 = vsel %vm1231, %v1127, -inf
        %1560 = vmax.xlane.f32.xlu0 %v1559
        %v1561 = vpop.xlane.xlu0 %1560
        %v1562 = vsel %vm1231, %v1130, -inf
        %1563 = vmax.xlane.f32.xlu0 %v1562
        %v1564 = vpop.xlane.xlu0 %1563
        %v1565 = vsel %vm1231, %v1133, -inf
        %1566 = vmax.xlane.f32.xlu0 %v1565
        %v1567 = vpop.xlane.xlu0 %1566
        %v1568 = vsel %vm1231, %v1136, -inf
        %1569 = vmax.xlane.f32.xlu0 %v1568
        %v1570 = vpop.xlane.xlu0 %1569
        %v1571 = vsel %vm1231, %v1139, -inf
        %1572 = vmax.xlane.f32.xlu0 %v1571
        %v1573 = vpop.xlane.xlu0 %1572
        %v1574 = vsel %vm1231, %v1142, -inf
        %1575 = vmax.xlane.f32.xlu0 %v1574
        %v1576 = vpop.xlane.xlu0 %1575
        %v1577 = vsel %vm1231, %v1145, -inf
        %1578 = vmax.xlane.f32.xlu0 %v1577
        %v1579 = vpop.xlane.xlu0 %1578
        %v1580 = vsel %vm1231, %v1148, -inf
        %1581 = vmax.xlane.f32.xlu0 %v1580
        %v1582 = vpop.xlane.xlu0 %1581
        %v1583 = vsel %vm1231, %v1151, -inf
        %1584 = vmax.xlane.f32.xlu0 %v1583
        %v1585 = vpop.xlane.xlu0 %1584
        %v1586 = vsel %vm1231, %v1154, -inf
        %1587 = vmax.xlane.f32.xlu0 %v1586
        %v1588 = vpop.xlane.xlu0 %1587
        %v1589 = vsel %vm1231, %v1157, -inf
        %1590 = vmax.xlane.f32.xlu0 %v1589
        %v1591 = vpop.xlane.xlu0 %1590
        %v1592 = vsel %vm1231, %v1160, -inf
        %1593 = vmax.xlane.f32.xlu0 %v1592
        %v1594 = vpop.xlane.xlu0 %1593
        %v1595 = vsel %vm1231, %v1163, -inf
        %1596 = vmax.xlane.f32.xlu0 %v1595
        %v1597 = vpop.xlane.xlu0 %1596
        %v1598 = vsel %vm1231, %v1166, -inf
        %1599 = vmax.xlane.f32.xlu0 %v1598
        %v1600 = vpop.xlane.xlu0 %1599
        %v1601 = vsel %vm1231, %v1169, -inf
        %1602 = vmax.xlane.f32.xlu0 %v1601
        %v1603 = vpop.xlane.xlu0 %1602
        %v1604 = vsel %vm1231, %v1172, -inf
        %1605 = vmax.xlane.f32.xlu0 %v1604
        %v1606 = vpop.xlane.xlu0 %1605
        %v1607 = vsel %vm1231, %v1175, -inf
        %1608 = vmax.xlane.f32.xlu0 %v1607
        %v1609 = vpop.xlane.xlu0 %1608
        %v1610 = vsel %vm1231, %v1178, -inf
        %1611 = vmax.xlane.f32.xlu0 %v1610
        %v1612 = vpop.xlane.xlu0 %1611
        %v1613 = vsel %vm1231, %v1181, -inf
        %1614 = vmax.xlane.f32.xlu0 %v1613
        %v1615 = vpop.xlane.xlu0 %1614
        %v1616 = vsel %vm1231, %v1184, -inf
        %1617 = vmax.xlane.f32.xlu0 %v1616
        %v1618 = vpop.xlane.xlu0 %1617
        %v1619 = vsel %vm1231, %v1187, -inf
        %1620 = vmax.xlane.f32.xlu0 %v1619
        %v1621 = vpop.xlane.xlu0 %1620
        %v1622 = vsel %vm1231, %v1190, -inf
        %1623 = vmax.xlane.f32.xlu0 %v1622
        %v1624 = vpop.xlane.xlu0 %1623
        %v1625 = vsel %vm1231, %v1193, -inf
        %1626 = vmax.xlane.f32.xlu0 %v1625
        %v1627 = vpop.xlane.xlu0 %1626
        %v1628 = vsel %vm1231, %v1196, -inf
        %1629 = vmax.xlane.f32.xlu0 %v1628
        %v1630 = vpop.xlane.xlu0 %1629
        %v1631 = vsel %vm1231, %v1199, -inf
        %1632 = vmax.xlane.f32.xlu0 %v1631
        %v1633 = vpop.xlane.xlu0 %1632
        %v1634 = vsel %vm1231, %v1202, -inf
        %1635 = vmax.xlane.f32.xlu0 %v1634
        %v1636 = vpop.xlane.xlu0 %1635
        %v1637 = vsel %vm1231, %v1205, -inf
        %1638 = vmax.xlane.f32.xlu0 %v1637
        %v1639 = vpop.xlane.xlu0 %1638
        %v1640 = vsel %vm1231, %v1208, -inf
        %1641 = vmax.xlane.f32.xlu0 %v1640
        %v1642 = vpop.xlane.xlu0 %1641
        %v1643 = vsel %vm1231, %v1211, -inf
        %1644 = vmax.xlane.f32.xlu0 %v1643
        %v1645 = vpop.xlane.xlu0 %1644
        %v1646 = vsel %vm1231, %v1214, -inf
        %1647 = vmax.xlane.f32.xlu0 %v1646
        %v1648 = vpop.xlane.xlu0 %1647
        %v1649 = vsel %vm1231, %v1217, -inf
        %1650 = vmax.xlane.f32.xlu0 %v1649
        %v1651 = vpop.xlane.xlu0 %1650
        %v1652 = vsel %vm1231, %v1220, -inf
        %1653 = vmax.xlane.f32.xlu0 %v1652
        %v1654 = vpop.xlane.xlu0 %1653
        %v1655 = vsel %vm1231, %v1223, -inf
        %1656 = vmax.xlane.f32.xlu0 %v1655
        %v1657 = vpop.xlane.xlu0 %1656
        %v1658 = vsel %vm1231, %v1226, -inf
        %1659 = vmax.xlane.f32.xlu0 %v1658
        %v1660 = vpop.xlane.xlu0 %1659
        %v1661 = vsel %vm1231, %v1229, -inf
        %1662 = vmax.xlane.f32.xlu0 %v1661
        %v1663 = vpop.xlane.xlu0 %1662
        %v1664 = vsub.f32 %v800, %v1234
        %v1665 = vsub.f32 %v803, %v1237
        %v1666 = vsub.f32 %v806, %v1240
        %v1667 = vsub.f32 %v809, %v1243
        %v1668 = vsub.f32 %v812, %v1246
        %v1669 = vsub.f32 %v815, %v1249
        %v1670 = vsub.f32 %v818, %v1252
        %v1671 = vsub.f32 %v821, %v1255
        %v1672 = vsub.f32 %v824, %v1258
        %v1673 = vsub.f32 %v827, %v1261
        %v1674 = vsub.f32 %v830, %v1264
        %v1675 = vsub.f32 %v833, %v1267
        %v1676 = vsub.f32 %v836, %v1270
        %v1677 = vsub.f32 %v839, %v1273
        %v1678 = vsub.f32 %v842, %v1276
        %v1679 = vsub.f32 %v845, %v1279
        %v1680 = vsub.f32 %v848, %v1282
        %v1681 = vsub.f32 %v851, %v1285
        %v1682 = vsub.f32 %v854, %v1288
        %v1683 = vsub.f32 %v857, %v1291
        %v1684 = vsub.f32 %v860, %v1294
        %v1685 = vsub.f32 %v863, %v1297
        %v1686 = vsub.f32 %v866, %v1300
        %v1687 = vsub.f32 %v869, %v1303
        %v1688 = vsub.f32 %v872, %v1306
        %v1689 = vsub.f32 %v875, %v1309
        %v1690 = vsub.f32 %v878, %v1312
        %v1691 = vsub.f32 %v881, %v1315
        %v1692 = vsub.f32 %v884, %v1318
        %v1693 = vsub.f32 %v887, %v1321
        %v1694 = vsub.f32 %v890, %v1324
        %v1695 = vsub.f32 %v893, %v1327
        %v1696 = vsub.f32 %v896, %v1330
        %v1697 = vsub.f32 %v899, %v1333
        %v1698 = vsub.f32 %v902, %v1336
        %v1699 = vsub.f32 %v905, %v1339
        %v1700 = vsub.f32 %v908, %v1342
        %v1701 = vsub.f32 %v911, %v1345
        %v1702 = vsub.f32 %v914, %v1348
        %v1703 = vsub.f32 %v917, %v1351
        %v1704 = vsub.f32 %v920, %v1354
        %v1705 = vsub.f32 %v923, %v1357
        %v1706 = vsub.f32 %v926, %v1360
        %v1707 = vsub.f32 %v929, %v1363
        %v1708 = vsub.f32 %v932, %v1366
        %v1709 = vsub.f32 %v935, %v1369
        %v1710 = vsub.f32 %v938, %v1372
        %v1711 = vsub.f32 %v941, %v1375
        %v1712 = vsub.f32 %v944, %v1378
        %v1713 = vsub.f32 %v947, %v1381
        %v1714 = vsub.f32 %v950, %v1384
        %v1715 = vsub.f32 %v953, %v1387
        %v1716 = vsub.f32 %v956, %v1390
        %v1717 = vsub.f32 %v959, %v1393
        %v1718 = vsub.f32 %v962, %v1396
        %v1719 = vsub.f32 %v965, %v1399
        %v1720 = vsub.f32 %v968, %v1402
        %v1721 = vsub.f32 %v971, %v1405
        %v1722 = vsub.f32 %v974, %v1408
        %v1723 = vsub.f32 %v977, %v1411
        %v1724 = vsub.f32 %v980, %v1414
        %v1725 = vsub.f32 %v983, %v1417
        %v1726 = vsub.f32 %v986, %v1420
        %v1727 = vsub.f32 %v989, %v1423
        %v1728 = vsub.f32 %v992, %v1426
        %v1729 = vsub.f32 %v995, %v1429
        %v1730 = vsub.f32 %v998, %v1432
        %v1731 = vsub.f32 %v1001, %v1435
        %v1732 = vsub.f32 %v1004, %v1438
        %v1733 = vsub.f32 %v1007, %v1441
        %v1734 = vsub.f32 %v1010, %v1444
        %v1735 = vsub.f32 %v1013, %v1447
        %v1736 = vsub.f32 %v1016, %v1450
        %v1737 = vsub.f32 %v1019, %v1453
        %v1738 = vsub.f32 %v1022, %v1456
        %v1739 = vsub.f32 %v1025, %v1459
        %v1740 = vsub.f32 %v1028, %v1462
        %v1741 = vsub.f32 %v1031, %v1465
        %v1742 = vsub.f32 %v1034, %v1468
        %v1743 = vsub.f32 %v1037, %v1471
        %v1744 = vsub.f32 %v1040, %v1474
        %v1745 = vsub.f32 %v1043, %v1477
        %v1746 = vsub.f32 %v1046, %v1480
        %v1747 = vsub.f32 %v1049, %v1483
        %v1748 = vsub.f32 %v1052, %v1486
        %v1749 = vsub.f32 %v1055, %v1489
        %v1750 = vsub.f32 %v1058, %v1492
        %v1751 = vsub.f32 %v1061, %v1495
        %v1752 = vsub.f32 %v1064, %v1498
        %v1753 = vsub.f32 %v1067, %v1501
        %v1754 = vsub.f32 %v1070, %v1504
        %v1755 = vsub.f32 %v1073, %v1507
        %v1756 = vsub.f32 %v1076, %v1510
        %v1757 = vsub.f32 %v1079, %v1513
        %v1758 = vsub.f32 %v1082, %v1516
        %v1759 = vsub.f32 %v1085, %v1519
        %v1760 = vsub.f32 %v1088, %v1522
        %v1761 = vsub.f32 %v1091, %v1525
        %v1762 = vsub.f32 %v1094, %v1528
        %v1763 = vsub.f32 %v1097, %v1531
        %v1764 = vsub.f32 %v1100, %v1534
        %v1765 = vsub.f32 %v1103, %v1537
        %v1766 = vsub.f32 %v1106, %v1540
        %v1767 = vsub.f32 %v1109, %v1543
        %v1768 = vsub.f32 %v1112, %v1546
        %v1769 = vsub.f32 %v1115, %v1549
        %v1770 = vsub.f32 %v1118, %v1552
        %v1771 = vsub.f32 %v1121, %v1555
        %v1772 = vsub.f32 %v1124, %v1558
        %v1773 = vsub.f32 %v1127, %v1561
        %v1774 = vsub.f32 %v1130, %v1564
        %v1775 = vsub.f32 %v1133, %v1567
        %v1776 = vsub.f32 %v1136, %v1570
        %v1777 = vsub.f32 %v1139, %v1573
        %v1778 = vsub.f32 %v1142, %v1576
        %v1779 = vsub.f32 %v1145, %v1579
        %v1780 = vsub.f32 %v1148, %v1582
        %v1781 = vsub.f32 %v1151, %v1585
        %v1782 = vsub.f32 %v1154, %v1588
        %v1783 = vsub.f32 %v1157, %v1591
        %v1784 = vsub.f32 %v1160, %v1594
        %v1785 = vsub.f32 %v1163, %v1597
        %v1786 = vsub.f32 %v1166, %v1600
        %v1787 = vsub.f32 %v1169, %v1603
        %v1788 = vsub.f32 %v1172, %v1606
        %v1789 = vsub.f32 %v1175, %v1609
        %v1790 = vsub.f32 %v1178, %v1612
        %v1791 = vsub.f32 %v1181, %v1615
        %v1792 = vsub.f32 %v1184, %v1618
        %v1793 = vsub.f32 %v1187, %v1621
        %v1794 = vsub.f32 %v1190, %v1624
        %v1795 = vsub.f32 %v1193, %v1627
        %v1796 = vsub.f32 %v1196, %v1630
        %v1797 = vsub.f32 %v1199, %v1633
        %v1798 = vsub.f32 %v1202, %v1636
        %v1799 = vsub.f32 %v1205, %v1639
        %v1800 = vsub.f32 %v1208, %v1642
        %v1801 = vsub.f32 %v1211, %v1645
        %v1802 = vsub.f32 %v1214, %v1648
        %v1803 = vsub.f32 %v1217, %v1651
        %v1804 = vsub.f32 %v1220, %v1654
        %v1805 = vsub.f32 %v1223, %v1657
        %v1806 = vsub.f32 %v1226, %v1660
        %v1807 = vsub.f32 %v1229, %v1663
        %v1808 = vmul.f32 %v1664, 1.442695
        %v1809 = vpow.pop %v1808
        %v1810 = vmul.f32 %v1665, 1.442695
        %v1811 = vpow.pop %v1810
        %v1812 = vmul.f32 %v1666, 1.442695
        %v1813 = vpow.pop %v1812
        %v1814 = vmul.f32 %v1667, 1.442695
        %v1815 = vpow.pop %v1814
        %v1816 = vmul.f32 %v1668, 1.442695
        %v1817 = vpow.pop %v1816
        %v1818 = vmul.f32 %v1669, 1.442695
        %v1819 = vpow.pop %v1818
        %v1820 = vmul.f32 %v1670, 1.442695
        %v1821 = vpow.pop %v1820
        %v1822 = vmul.f32 %v1671, 1.442695
        %v1823 = vpow.pop %v1822
        %v1824 = vmul.f32 %v1672, 1.442695
        %v1825 = vpow.pop %v1824
        %v1826 = vmul.f32 %v1673, 1.442695
        %v1827 = vpow.pop %v1826
        %v1828 = vmul.f32 %v1674, 1.442695
        %v1829 = vpow.pop %v1828
        %v1830 = vmul.f32 %v1675, 1.442695
        %v1831 = vpow.pop %v1830
        %v1832 = vmul.f32 %v1676, 1.442695
        %v1833 = vpow.pop %v1832
        %v1834 = vmul.f32 %v1677, 1.442695
        %v1835 = vpow.pop %v1834
        %v1836 = vmul.f32 %v1678, 1.442695
        %v1837 = vpow.pop %v1836
        %v1838 = vmul.f32 %v1679, 1.442695
        %v1839 = vpow.pop %v1838
        %v1840 = vmul.f32 %v1680, 1.442695
        %v1841 = vpow.pop %v1840
        %v1842 = vmul.f32 %v1681, 1.442695
        %v1843 = vpow.pop %v1842
        %v1844 = vmul.f32 %v1682, 1.442695
        %v1845 = vpow.pop %v1844
        %v1846 = vmul.f32 %v1683, 1.442695
        %v1847 = vpow.pop %v1846
        %v1848 = vmul.f32 %v1684, 1.442695
        %v1849 = vpow.pop %v1848
        %v1850 = vmul.f32 %v1685, 1.442695
        %v1851 = vpow.pop %v1850
        %v1852 = vmul.f32 %v1686, 1.442695
        %v1853 = vpow.pop %v1852
        %v1854 = vmul.f32 %v1687, 1.442695
        %v1855 = vpow.pop %v1854
        %v1856 = vmul.f32 %v1688, 1.442695
        %v1857 = vpow.pop %v1856
        %v1858 = vmul.f32 %v1689, 1.442695
        %v1859 = vpow.pop %v1858
        %v1860 = vmul.f32 %v1690, 1.442695
        %v1861 = vpow.pop %v1860
        %v1862 = vmul.f32 %v1691, 1.442695
        %v1863 = vpow.pop %v1862
        %v1864 = vmul.f32 %v1692, 1.442695
        %v1865 = vpow.pop %v1864
        %v1866 = vmul.f32 %v1693, 1.442695
        %v1867 = vpow.pop %v1866
        %v1868 = vmul.f32 %v1694, 1.442695
        %v1869 = vpow.pop %v1868
        %v1870 = vmul.f32 %v1695, 1.442695
        %v1871 = vpow.pop %v1870
        %v1872 = vmul.f32 %v1696, 1.442695
        %v1873 = vpow.pop %v1872
        %v1874 = vmul.f32 %v1697, 1.442695
        %v1875 = vpow.pop %v1874
        %v1876 = vmul.f32 %v1698, 1.442695
        %v1877 = vpow.pop %v1876
        %v1878 = vmul.f32 %v1699, 1.442695
        %v1879 = vpow.pop %v1878
        %v1880 = vmul.f32 %v1700, 1.442695
        %v1881 = vpow.pop %v1880
        %v1882 = vmul.f32 %v1701, 1.442695
        %v1883 = vpow.pop %v1882
        %v1884 = vmul.f32 %v1702, 1.442695
        %v1885 = vpow.pop %v1884
        %v1886 = vmul.f32 %v1703, 1.442695
        %v1887 = vpow.pop %v1886
        %v1888 = vmul.f32 %v1704, 1.442695
        %v1889 = vpow.pop %v1888
        %v1890 = vmul.f32 %v1705, 1.442695
        %v1891 = vpow.pop %v1890
        %v1892 = vmul.f32 %v1706, 1.442695
        %v1893 = vpow.pop %v1892
        %v1894 = vmul.f32 %v1707, 1.442695
        %v1895 = vpow.pop %v1894
        %v1896 = vmul.f32 %v1708, 1.442695
        %v1897 = vpow.pop %v1896
        %v1898 = vmul.f32 %v1709, 1.442695
        %v1899 = vpow.pop %v1898
        %v1900 = vmul.f32 %v1710, 1.442695
        %v1901 = vpow.pop %v1900
        %v1902 = vmul.f32 %v1711, 1.442695
        %v1903 = vpow.pop %v1902
        %v1904 = vmul.f32 %v1712, 1.442695
        %v1905 = vpow.pop %v1904
        %v1906 = vmul.f32 %v1713, 1.442695
        %v1907 = vpow.pop %v1906
        %v1908 = vmul.f32 %v1714, 1.442695
        %v1909 = vpow.pop %v1908
        %v1910 = vmul.f32 %v1715, 1.442695
        %v1911 = vpow.pop %v1910
        %v1912 = vmul.f32 %v1716, 1.442695
        %v1913 = vpow.pop %v1912
        %v1914 = vmul.f32 %v1717, 1.442695
        %v1915 = vpow.pop %v1914
        %v1916 = vmul.f32 %v1718, 1.442695
        %v1917 = vpow.pop %v1916
        %v1918 = vmul.f32 %v1719, 1.442695
        %v1919 = vpow.pop %v1918
        %v1920 = vmul.f32 %v1720, 1.442695
        %v1921 = vpow.pop %v1920
        %v1922 = vmul.f32 %v1721, 1.442695
        %v1923 = vpow.pop %v1922
        %v1924 = vmul.f32 %v1722, 1.442695
        %v1925 = vpow.pop %v1924
        %v1926 = vmul.f32 %v1723, 1.442695
        %v1927 = vpow.pop %v1926
        %v1928 = vmul.f32 %v1724, 1.442695
        %v1929 = vpow.pop %v1928
        %v1930 = vmul.f32 %v1725, 1.442695
        %v1931 = vpow.pop %v1930
        %v1932 = vmul.f32 %v1726, 1.442695
        %v1933 = vpow.pop %v1932
        %v1934 = vmul.f32 %v1727, 1.442695
        %v1935 = vpow.pop %v1934
        %v1936 = vmul.f32 %v1728, 1.442695
        %v1937 = vpow.pop %v1936
        %v1938 = vmul.f32 %v1729, 1.442695
        %v1939 = vpow.pop %v1938
        %v1940 = vmul.f32 %v1730, 1.442695
        %v1941 = vpow.pop %v1940
        %v1942 = vmul.f32 %v1731, 1.442695
        %v1943 = vpow.pop %v1942
        %v1944 = vmul.f32 %v1732, 1.442695
        %v1945 = vpow.pop %v1944
        %v1946 = vmul.f32 %v1733, 1.442695
        %v1947 = vpow.pop %v1946
        %v1948 = vmul.f32 %v1734, 1.442695
        %v1949 = vpow.pop %v1948
        %v1950 = vmul.f32 %v1735, 1.442695
        %v1951 = vpow.pop %v1950
        %v1952 = vmul.f32 %v1736, 1.442695
        %v1953 = vpow.pop %v1952
        %v1954 = vmul.f32 %v1737, 1.442695
        %v1955 = vpow.pop %v1954
        %v1956 = vmul.f32 %v1738, 1.442695
        %v1957 = vpow.pop %v1956
        %v1958 = vmul.f32 %v1739, 1.442695
        %v1959 = vpow.pop %v1958
        %v1960 = vmul.f32 %v1740, 1.442695
        %v1961 = vpow.pop %v1960
        %v1962 = vmul.f32 %v1741, 1.442695
        %v1963 = vpow.pop %v1962
        %v1964 = vmul.f32 %v1742, 1.442695
        %v1965 = vpow.pop %v1964
        %v1966 = vmul.f32 %v1743, 1.442695
        %v1967 = vpow.pop %v1966
        %v1968 = vmul.f32 %v1744, 1.442695
        %v1969 = vpow.pop %v1968
        %v1970 = vmul.f32 %v1745, 1.442695
        %v1971 = vpow.pop %v1970
        %v1972 = vmul.f32 %v1746, 1.442695
        %v1973 = vpow.pop %v1972
        %v1974 = vmul.f32 %v1747, 1.442695
        %v1975 = vpow.pop %v1974
        %v1976 = vmul.f32 %v1748, 1.442695
        %v1977 = vpow.pop %v1976
        %v1978 = vmul.f32 %v1749, 1.442695
        %v1979 = vpow.pop %v1978
        %v1980 = vmul.f32 %v1750, 1.442695
        %v1981 = vpow.pop %v1980
        %v1982 = vmul.f32 %v1751, 1.442695
        %v1983 = vpow.pop %v1982
        %v1984 = vmul.f32 %v1752, 1.442695
        %v1985 = vpow.pop %v1984
        %v1986 = vmul.f32 %v1753, 1.442695
        %v1987 = vpow.pop %v1986
        %v1988 = vmul.f32 %v1754, 1.442695
        %v1989 = vpow.pop %v1988
        %v1990 = vmul.f32 %v1755, 1.442695
        %v1991 = vpow.pop %v1990
        %v1992 = vmul.f32 %v1756, 1.442695
        %v1993 = vpow.pop %v1992
        %v1994 = vmul.f32 %v1757, 1.442695
        %v1995 = vpow.pop %v1994
        %v1996 = vmul.f32 %v1758, 1.442695
        %v1997 = vpow.pop %v1996
        %v1998 = vmul.f32 %v1759, 1.442695
        %v1999 = vpow.pop %v1998
        %v2000 = vmul.f32 %v1760, 1.442695
        %v2001 = vpow.pop %v2000
        %v2002 = vmul.f32 %v1761, 1.442695
        %v2003 = vpow.pop %v2002
        %v2004 = vmul.f32 %v1762, 1.442695
        %v2005 = vpow.pop %v2004
        %v2006 = vmul.f32 %v1763, 1.442695
        %v2007 = vpow.pop %v2006
        %v2008 = vmul.f32 %v1764, 1.442695
        %v2009 = vpow.pop %v2008
        %v2010 = vmul.f32 %v1765, 1.442695
        %v2011 = vpow.pop %v2010
        %v2012 = vmul.f32 %v1766, 1.442695
        %v2013 = vpow.pop %v2012
        %v2014 = vmul.f32 %v1767, 1.442695
        %v2015 = vpow.pop %v2014
        %v2016 = vmul.f32 %v1768, 1.442695
        %v2017 = vpow.pop %v2016
        %v2018 = vmul.f32 %v1769, 1.442695
        %v2019 = vpow.pop %v2018
        %v2020 = vmul.f32 %v1770, 1.442695
        %v2021 = vpow.pop %v2020
        %v2022 = vmul.f32 %v1771, 1.442695
        %v2023 = vpow.pop %v2022
        %v2024 = vmul.f32 %v1772, 1.442695
        %v2025 = vpow.pop %v2024
        %v2026 = vmul.f32 %v1773, 1.442695
        %v2027 = vpow.pop %v2026
        %v2028 = vmul.f32 %v1774, 1.442695
        %v2029 = vpow.pop %v2028
        %v2030 = vmul.f32 %v1775, 1.442695
        %v2031 = vpow.pop %v2030
        %v2032 = vmul.f32 %v1776, 1.442695
        %v2033 = vpow.pop %v2032
        %v2034 = vmul.f32 %v1777, 1.442695
        %v2035 = vpow.pop %v2034
        %v2036 = vmul.f32 %v1778, 1.442695
        %v2037 = vpow.pop %v2036
        %v2038 = vmul.f32 %v1779, 1.442695
        %v2039 = vpow.pop %v2038
        %v2040 = vmul.f32 %v1780, 1.442695
        %v2041 = vpow.pop %v2040
        %v2042 = vmul.f32 %v1781, 1.442695
        %v2043 = vpow.pop %v2042
        %v2044 = vmul.f32 %v1782, 1.442695
        %v2045 = vpow.pop %v2044
        %v2046 = vmul.f32 %v1783, 1.442695
        %v2047 = vpow.pop %v2046
        %v2048 = vmul.f32 %v1784, 1.442695
        %v2049 = vpow.pop %v2048
        %v2050 = vmul.f32 %v1785, 1.442695
        %v2051 = vpow.pop %v2050
        %v2052 = vmul.f32 %v1786, 1.442695
        %v2053 = vpow.pop %v2052
        %v2054 = vmul.f32 %v1787, 1.442695
        %v2055 = vpow.pop %v2054
        %v2056 = vmul.f32 %v1788, 1.442695
        %v2057 = vpow.pop %v2056
        %v2058 = vmul.f32 %v1789, 1.442695
        %v2059 = vpow.pop %v2058
        %v2060 = vmul.f32 %v1790, 1.442695
        %v2061 = vpow.pop %v2060
        %v2062 = vmul.f32 %v1791, 1.442695
        %v2063 = vpow.pop %v2062
        %v2064 = vmul.f32 %v1792, 1.442695
        %v2065 = vpow.pop %v2064
        %v2066 = vmul.f32 %v1793, 1.442695
        %v2067 = vpow.pop %v2066
        %v2068 = vmul.f32 %v1794, 1.442695
        %v2069 = vpow.pop %v2068
        %v2070 = vmul.f32 %v1795, 1.442695
        %v2071 = vpow.pop %v2070
        %v2072 = vmul.f32 %v1796, 1.442695
        %v2073 = vpow.pop %v2072
        %v2074 = vmul.f32 %v1797, 1.442695
        %v2075 = vpow.pop %v2074
        %v2076 = vmul.f32 %v1798, 1.442695
        %v2077 = vpow.pop %v2076
        %v2078 = vmul.f32 %v1799, 1.442695
        %v2079 = vpow.pop %v2078
        %v2080 = vmul.f32 %v1800, 1.442695
        %v2081 = vpow.pop %v2080
        %v2082 = vmul.f32 %v1801, 1.442695
        %v2083 = vpow.pop %v2082
        %v2084 = vmul.f32 %v1802, 1.442695
        %v2085 = vpow.pop %v2084
        %v2086 = vmul.f32 %v1803, 1.442695
        %v2087 = vpow.pop %v2086
        %v2088 = vmul.f32 %v1804, 1.442695
        %v2089 = vpow.pop %v2088
        %v2090 = vmul.f32 %v1805, 1.442695
        %v2091 = vpow.pop %v2090
        %v2092 = vmul.f32 %v1806, 1.442695
        %v2093 = vpow.pop %v2092
        %v2094 = vmul.f32 %v1807, 1.442695
        %v2095 = vpow.pop %v2094
        %v2096 = vsel %vm1231, %v1809, 0.0
        %2097 = vadd.xlane.f32.xlu0 %v2096
        %v2098 = vpop.xlane.xlu0 %2097
        %v2099 = vsel %vm1231, %v1811, 0.0
        %2100 = vadd.xlane.f32.xlu0 %v2099
        %v2101 = vpop.xlane.xlu0 %2100
        %v2102 = vsel %vm1231, %v1813, 0.0
        %2103 = vadd.xlane.f32.xlu0 %v2102
        %v2104 = vpop.xlane.xlu0 %2103
        %v2105 = vsel %vm1231, %v1815, 0.0
        %2106 = vadd.xlane.f32.xlu0 %v2105
        %v2107 = vpop.xlane.xlu0 %2106
        %v2108 = vsel %vm1231, %v1817, 0.0
        %2109 = vadd.xlane.f32.xlu0 %v2108
        %v2110 = vpop.xlane.xlu0 %2109
        %v2111 = vsel %vm1231, %v1819, 0.0
        %2112 = vadd.xlane.f32.xlu0 %v2111
        %v2113 = vpop.xlane.xlu0 %2112
        %v2114 = vsel %vm1231, %v1821, 0.0
        %2115 = vadd.xlane.f32.xlu0 %v2114
        %v2116 = vpop.xlane.xlu0 %2115
        %v2117 = vsel %vm1231, %v1823, 0.0
        %2118 = vadd.xlane.f32.xlu0 %v2117
        %v2119 = vpop.xlane.xlu0 %2118
        %v2120 = vsel %vm1231, %v1825, 0.0
        %2121 = vadd.xlane.f32.xlu0 %v2120
        %v2122 = vpop.xlane.xlu0 %2121
        %v2123 = vsel %vm1231, %v1827, 0.0
        %2124 = vadd.xlane.f32.xlu0 %v2123
        %v2125 = vpop.xlane.xlu0 %2124
        %v2126 = vsel %vm1231, %v1829, 0.0
        %2127 = vadd.xlane.f32.xlu0 %v2126
        %v2128 = vpop.xlane.xlu0 %2127
        %v2129 = vsel %vm1231, %v1831, 0.0
        %2130 = vadd.xlane.f32.xlu0 %v2129
        %v2131 = vpop.xlane.xlu0 %2130
        %v2132 = vsel %vm1231, %v1833, 0.0
        %2133 = vadd.xlane.f32.xlu0 %v2132
        %v2134 = vpop.xlane.xlu0 %2133
        %v2135 = vsel %vm1231, %v1835, 0.0
        %2136 = vadd.xlane.f32.xlu0 %v2135
        %v2137 = vpop.xlane.xlu0 %2136
        %v2138 = vsel %vm1231, %v1837, 0.0
        %2139 = vadd.xlane.f32.xlu0 %v2138
        %v2140 = vpop.xlane.xlu0 %2139
        %v2141 = vsel %vm1231, %v1839, 0.0
        %2142 = vadd.xlane.f32.xlu0 %v2141
        %v2143 = vpop.xlane.xlu0 %2142
        %v2144 = vsel %vm1231, %v1841, 0.0
        %2145 = vadd.xlane.f32.xlu0 %v2144
        %v2146 = vpop.xlane.xlu0 %2145
        %v2147 = vsel %vm1231, %v1843, 0.0
        %2148 = vadd.xlane.f32.xlu0 %v2147
        %v2149 = vpop.xlane.xlu0 %2148
        %v2150 = vsel %vm1231, %v1845, 0.0
        %2151 = vadd.xlane.f32.xlu0 %v2150
        %v2152 = vpop.xlane.xlu0 %2151
        %v2153 = vsel %vm1231, %v1847, 0.0
        %2154 = vadd.xlane.f32.xlu0 %v2153
        %v2155 = vpop.xlane.xlu0 %2154
        %v2156 = vsel %vm1231, %v1849, 0.0
        %2157 = vadd.xlane.f32.xlu0 %v2156
        %v2158 = vpop.xlane.xlu0 %2157
        %v2159 = vsel %vm1231, %v1851, 0.0
        %2160 = vadd.xlane.f32.xlu0 %v2159
        %v2161 = vpop.xlane.xlu0 %2160
        %v2162 = vsel %vm1231, %v1853, 0.0
        %2163 = vadd.xlane.f32.xlu0 %v2162
        %v2164 = vpop.xlane.xlu0 %2163
        %v2165 = vsel %vm1231, %v1855, 0.0
        %2166 = vadd.xlane.f32.xlu0 %v2165
        %v2167 = vpop.xlane.xlu0 %2166
        %v2168 = vsel %vm1231, %v1857, 0.0
        %2169 = vadd.xlane.f32.xlu0 %v2168
        %v2170 = vpop.xlane.xlu0 %2169
        %v2171 = vsel %vm1231, %v1859, 0.0
        %2172 = vadd.xlane.f32.xlu0 %v2171
        %v2173 = vpop.xlane.xlu0 %2172
        %v2174 = vsel %vm1231, %v1861, 0.0
        %2175 = vadd.xlane.f32.xlu0 %v2174
        %v2176 = vpop.xlane.xlu0 %2175
        %v2177 = vsel %vm1231, %v1863, 0.0
        %2178 = vadd.xlane.f32.xlu0 %v2177
        %v2179 = vpop.xlane.xlu0 %2178
        %v2180 = vsel %vm1231, %v1865, 0.0
        %2181 = vadd.xlane.f32.xlu0 %v2180
        %v2182 = vpop.xlane.xlu0 %2181
        %v2183 = vsel %vm1231, %v1867, 0.0
        %2184 = vadd.xlane.f32.xlu0 %v2183
        %v2185 = vpop.xlane.xlu0 %2184
        %v2186 = vsel %vm1231, %v1869, 0.0
        %2187 = vadd.xlane.f32.xlu0 %v2186
        %v2188 = vpop.xlane.xlu0 %2187
        %v2189 = vsel %vm1231, %v1871, 0.0
        %2190 = vadd.xlane.f32.xlu0 %v2189
        %v2191 = vpop.xlane.xlu0 %2190
        %v2192 = vsel %vm1231, %v1873, 0.0
        %2193 = vadd.xlane.f32.xlu0 %v2192
        %v2194 = vpop.xlane.xlu0 %2193
        %v2195 = vsel %vm1231, %v1875, 0.0
        %2196 = vadd.xlane.f32.xlu0 %v2195
        %v2197 = vpop.xlane.xlu0 %2196
        %v2198 = vsel %vm1231, %v1877, 0.0
        %2199 = vadd.xlane.f32.xlu0 %v2198
        %v2200 = vpop.xlane.xlu0 %2199
        %v2201 = vsel %vm1231, %v1879, 0.0
        %2202 = vadd.xlane.f32.xlu0 %v2201
        %v2203 = vpop.xlane.xlu0 %2202
        %v2204 = vsel %vm1231, %v1881, 0.0
        %2205 = vadd.xlane.f32.xlu0 %v2204
        %v2206 = vpop.xlane.xlu0 %2205
        %v2207 = vsel %vm1231, %v1883, 0.0
        %2208 = vadd.xlane.f32.xlu0 %v2207
        %v2209 = vpop.xlane.xlu0 %2208
        %v2210 = vsel %vm1231, %v1885, 0.0
        %2211 = vadd.xlane.f32.xlu0 %v2210
        %v2212 = vpop.xlane.xlu0 %2211
        %v2213 = vsel %vm1231, %v1887, 0.0
        %2214 = vadd.xlane.f32.xlu0 %v2213
        %v2215 = vpop.xlane.xlu0 %2214
        %v2216 = vsel %vm1231, %v1889, 0.0
        %2217 = vadd.xlane.f32.xlu0 %v2216
        %v2218 = vpop.xlane.xlu0 %2217
        %v2219 = vsel %vm1231, %v1891, 0.0
        %2220 = vadd.xlane.f32.xlu0 %v2219
        %v2221 = vpop.xlane.xlu0 %2220
        %v2222 = vsel %vm1231, %v1893, 0.0
        %2223 = vadd.xlane.f32.xlu0 %v2222
        %v2224 = vpop.xlane.xlu0 %2223
        %v2225 = vsel %vm1231, %v1895, 0.0
        %2226 = vadd.xlane.f32.xlu0 %v2225
        %v2227 = vpop.xlane.xlu0 %2226
        %v2228 = vsel %vm1231, %v1897, 0.0
        %2229 = vadd.xlane.f32.xlu0 %v2228
        %v2230 = vpop.xlane.xlu0 %2229
        %v2231 = vsel %vm1231, %v1899, 0.0
        %2232 = vadd.xlane.f32.xlu0 %v2231
        %v2233 = vpop.xlane.xlu0 %2232
        %v2234 = vsel %vm1231, %v1901, 0.0
        %2235 = vadd.xlane.f32.xlu0 %v2234
        %v2236 = vpop.xlane.xlu0 %2235
        %v2237 = vsel %vm1231, %v1903, 0.0
        %2238 = vadd.xlane.f32.xlu0 %v2237
        %v2239 = vpop.xlane.xlu0 %2238
        %v2240 = vsel %vm1231, %v1905, 0.0
        %2241 = vadd.xlane.f32.xlu0 %v2240
        %v2242 = vpop.xlane.xlu0 %2241
        %v2243 = vsel %vm1231, %v1907, 0.0
        %2244 = vadd.xlane.f32.xlu0 %v2243
        %v2245 = vpop.xlane.xlu0 %2244
        %v2246 = vsel %vm1231, %v1909, 0.0
        %2247 = vadd.xlane.f32.xlu0 %v2246
        %v2248 = vpop.xlane.xlu0 %2247
        %v2249 = vsel %vm1231, %v1911, 0.0
        %2250 = vadd.xlane.f32.xlu0 %v2249
        %v2251 = vpop.xlane.xlu0 %2250
        %v2252 = vsel %vm1231, %v1913, 0.0
        %2253 = vadd.xlane.f32.xlu0 %v2252
        %v2254 = vpop.xlane.xlu0 %2253
        %v2255 = vsel %vm1231, %v1915, 0.0
        %2256 = vadd.xlane.f32.xlu0 %v2255
        %v2257 = vpop.xlane.xlu0 %2256
        %v2258 = vsel %vm1231, %v1917, 0.0
        %2259 = vadd.xlane.f32.xlu0 %v2258
        %v2260 = vpop.xlane.xlu0 %2259
        %v2261 = vsel %vm1231, %v1919, 0.0
        %2262 = vadd.xlane.f32.xlu0 %v2261
        %v2263 = vpop.xlane.xlu0 %2262
        %v2264 = vsel %vm1231, %v1921, 0.0
        %2265 = vadd.xlane.f32.xlu0 %v2264
        %v2266 = vpop.xlane.xlu0 %2265
        %v2267 = vsel %vm1231, %v1923, 0.0
        %2268 = vadd.xlane.f32.xlu0 %v2267
        %v2269 = vpop.xlane.xlu0 %2268
        %v2270 = vsel %vm1231, %v1925, 0.0
        %2271 = vadd.xlane.f32.xlu0 %v2270
        %v2272 = vpop.xlane.xlu0 %2271
        %v2273 = vsel %vm1231, %v1927, 0.0
        %2274 = vadd.xlane.f32.xlu0 %v2273
        %v2275 = vpop.xlane.xlu0 %2274
        %v2276 = vsel %vm1231, %v1929, 0.0
        %2277 = vadd.xlane.f32.xlu0 %v2276
        %v2278 = vpop.xlane.xlu0 %2277
        %v2279 = vsel %vm1231, %v1931, 0.0
        %2280 = vadd.xlane.f32.xlu0 %v2279
        %v2281 = vpop.xlane.xlu0 %2280
        %v2282 = vsel %vm1231, %v1933, 0.0
        %2283 = vadd.xlane.f32.xlu0 %v2282
        %v2284 = vpop.xlane.xlu0 %2283
        %v2285 = vsel %vm1231, %v1935, 0.0
        %2286 = vadd.xlane.f32.xlu0 %v2285
        %v2287 = vpop.xlane.xlu0 %2286
        %v2288 = vsel %vm1231, %v1937, 0.0
        %2289 = vadd.xlane.f32.xlu0 %v2288
        %v2290 = vpop.xlane.xlu0 %2289
        %v2291 = vsel %vm1231, %v1939, 0.0
        %2292 = vadd.xlane.f32.xlu0 %v2291
        %v2293 = vpop.xlane.xlu0 %2292
        %v2294 = vsel %vm1231, %v1941, 0.0
        %2295 = vadd.xlane.f32.xlu0 %v2294
        %v2296 = vpop.xlane.xlu0 %2295
        %v2297 = vsel %vm1231, %v1943, 0.0
        %2298 = vadd.xlane.f32.xlu0 %v2297
        %v2299 = vpop.xlane.xlu0 %2298
        %v2300 = vsel %vm1231, %v1945, 0.0
        %2301 = vadd.xlane.f32.xlu0 %v2300
        %v2302 = vpop.xlane.xlu0 %2301
        %v2303 = vsel %vm1231, %v1947, 0.0
        %2304 = vadd.xlane.f32.xlu0 %v2303
        %v2305 = vpop.xlane.xlu0 %2304
        %v2306 = vsel %vm1231, %v1949, 0.0
        %2307 = vadd.xlane.f32.xlu0 %v2306
        %v2308 = vpop.xlane.xlu0 %2307
        %v2309 = vsel %vm1231, %v1951, 0.0
        %2310 = vadd.xlane.f32.xlu0 %v2309
        %v2311 = vpop.xlane.xlu0 %2310
        %v2312 = vsel %vm1231, %v1953, 0.0
        %2313 = vadd.xlane.f32.xlu0 %v2312
        %v2314 = vpop.xlane.xlu0 %2313
        %v2315 = vsel %vm1231, %v1955, 0.0
        %2316 = vadd.xlane.f32.xlu0 %v2315
        %v2317 = vpop.xlane.xlu0 %2316
        %v2318 = vsel %vm1231, %v1957, 0.0
        %2319 = vadd.xlane.f32.xlu0 %v2318
        %v2320 = vpop.xlane.xlu0 %2319
        %v2321 = vsel %vm1231, %v1959, 0.0
        %2322 = vadd.xlane.f32.xlu0 %v2321
        %v2323 = vpop.xlane.xlu0 %2322
        %v2324 = vsel %vm1231, %v1961, 0.0
        %2325 = vadd.xlane.f32.xlu0 %v2324
        %v2326 = vpop.xlane.xlu0 %2325
        %v2327 = vsel %vm1231, %v1963, 0.0
        %2328 = vadd.xlane.f32.xlu0 %v2327
        %v2329 = vpop.xlane.xlu0 %2328
        %v2330 = vsel %vm1231, %v1965, 0.0
        %2331 = vadd.xlane.f32.xlu0 %v2330
        %v2332 = vpop.xlane.xlu0 %2331
        %v2333 = vsel %vm1231, %v1967, 0.0
        %2334 = vadd.xlane.f32.xlu0 %v2333
        %v2335 = vpop.xlane.xlu0 %2334
        %v2336 = vsel %vm1231, %v1969, 0.0
        %2337 = vadd.xlane.f32.xlu0 %v2336
        %v2338 = vpop.xlane.xlu0 %2337
        %v2339 = vsel %vm1231, %v1971, 0.0
        %2340 = vadd.xlane.f32.xlu0 %v2339
        %v2341 = vpop.xlane.xlu0 %2340
        %v2342 = vsel %vm1231, %v1973, 0.0
        %2343 = vadd.xlane.f32.xlu0 %v2342
        %v2344 = vpop.xlane.xlu0 %2343
        %v2345 = vsel %vm1231, %v1975, 0.0
        %2346 = vadd.xlane.f32.xlu0 %v2345
        %v2347 = vpop.xlane.xlu0 %2346
        %v2348 = vsel %vm1231, %v1977, 0.0
        %2349 = vadd.xlane.f32.xlu0 %v2348
        %v2350 = vpop.xlane.xlu0 %2349
        %v2351 = vsel %vm1231, %v1979, 0.0
        %2352 = vadd.xlane.f32.xlu0 %v2351
        %v2353 = vpop.xlane.xlu0 %2352
        %v2354 = vsel %vm1231, %v1981, 0.0
        %2355 = vadd.xlane.f32.xlu0 %v2354
        %v2356 = vpop.xlane.xlu0 %2355
        %v2357 = vsel %vm1231, %v1983, 0.0
        %2358 = vadd.xlane.f32.xlu0 %v2357
        %v2359 = vpop.xlane.xlu0 %2358
        %v2360 = vsel %vm1231, %v1985, 0.0
        %2361 = vadd.xlane.f32.xlu0 %v2360
        %v2362 = vpop.xlane.xlu0 %2361
        %v2363 = vsel %vm1231, %v1987, 0.0
        %2364 = vadd.xlane.f32.xlu0 %v2363
        %v2365 = vpop.xlane.xlu0 %2364
        %v2366 = vsel %vm1231, %v1989, 0.0
        %2367 = vadd.xlane.f32.xlu0 %v2366
        %v2368 = vpop.xlane.xlu0 %2367
        %v2369 = vsel %vm1231, %v1991, 0.0
        %2370 = vadd.xlane.f32.xlu0 %v2369
        %v2371 = vpop.xlane.xlu0 %2370
        %v2372 = vsel %vm1231, %v1993, 0.0
        %2373 = vadd.xlane.f32.xlu0 %v2372
        %v2374 = vpop.xlane.xlu0 %2373
        %v2375 = vsel %vm1231, %v1995, 0.0
        %2376 = vadd.xlane.f32.xlu0 %v2375
        %v2377 = vpop.xlane.xlu0 %2376
        %v2378 = vsel %vm1231, %v1997, 0.0
        %2379 = vadd.xlane.f32.xlu0 %v2378
        %v2380 = vpop.xlane.xlu0 %2379
        %v2381 = vsel %vm1231, %v1999, 0.0
        %2382 = vadd.xlane.f32.xlu0 %v2381
        %v2383 = vpop.xlane.xlu0 %2382
        %v2384 = vsel %vm1231, %v2001, 0.0
        %2385 = vadd.xlane.f32.xlu0 %v2384
        %v2386 = vpop.xlane.xlu0 %2385
        %v2387 = vsel %vm1231, %v2003, 0.0
        %2388 = vadd.xlane.f32.xlu0 %v2387
        %v2389 = vpop.xlane.xlu0 %2388
        %v2390 = vsel %vm1231, %v2005, 0.0
        %2391 = vadd.xlane.f32.xlu0 %v2390
        %v2392 = vpop.xlane.xlu0 %2391
        %v2393 = vsel %vm1231, %v2007, 0.0
        %2394 = vadd.xlane.f32.xlu0 %v2393
        %v2395 = vpop.xlane.xlu0 %2394
        %v2396 = vsel %vm1231, %v2009, 0.0
        %2397 = vadd.xlane.f32.xlu0 %v2396
        %v2398 = vpop.xlane.xlu0 %2397
        %v2399 = vsel %vm1231, %v2011, 0.0
        %2400 = vadd.xlane.f32.xlu0 %v2399
        %v2401 = vpop.xlane.xlu0 %2400
        %v2402 = vsel %vm1231, %v2013, 0.0
        %2403 = vadd.xlane.f32.xlu0 %v2402
        %v2404 = vpop.xlane.xlu0 %2403
        %v2405 = vsel %vm1231, %v2015, 0.0
        %2406 = vadd.xlane.f32.xlu0 %v2405
        %v2407 = vpop.xlane.xlu0 %2406
        %v2408 = vsel %vm1231, %v2017, 0.0
        %2409 = vadd.xlane.f32.xlu0 %v2408
        %v2410 = vpop.xlane.xlu0 %2409
        %v2411 = vsel %vm1231, %v2019, 0.0
        %2412 = vadd.xlane.f32.xlu0 %v2411
        %v2413 = vpop.xlane.xlu0 %2412
        %v2414 = vsel %vm1231, %v2021, 0.0
        %2415 = vadd.xlane.f32.xlu0 %v2414
        %v2416 = vpop.xlane.xlu0 %2415
        %v2417 = vsel %vm1231, %v2023, 0.0
        %2418 = vadd.xlane.f32.xlu0 %v2417
        %v2419 = vpop.xlane.xlu0 %2418
        %v2420 = vsel %vm1231, %v2025, 0.0
        %2421 = vadd.xlane.f32.xlu0 %v2420
        %v2422 = vpop.xlane.xlu0 %2421
        %v2423 = vsel %vm1231, %v2027, 0.0
        %2424 = vadd.xlane.f32.xlu0 %v2423
        %v2425 = vpop.xlane.xlu0 %2424
        %v2426 = vsel %vm1231, %v2029, 0.0
        %2427 = vadd.xlane.f32.xlu0 %v2426
        %v2428 = vpop.xlane.xlu0 %2427
        %v2429 = vsel %vm1231, %v2031, 0.0
        %2430 = vadd.xlane.f32.xlu0 %v2429
        %v2431 = vpop.xlane.xlu0 %2430
        %v2432 = vsel %vm1231, %v2033, 0.0
        %2433 = vadd.xlane.f32.xlu0 %v2432
        %v2434 = vpop.xlane.xlu0 %2433
        %v2435 = vsel %vm1231, %v2035, 0.0
        %2436 = vadd.xlane.f32.xlu0 %v2435
        %v2437 = vpop.xlane.xlu0 %2436
        %v2438 = vsel %vm1231, %v2037, 0.0
        %2439 = vadd.xlane.f32.xlu0 %v2438
        %v2440 = vpop.xlane.xlu0 %2439
        %v2441 = vsel %vm1231, %v2039, 0.0
        %2442 = vadd.xlane.f32.xlu0 %v2441
        %v2443 = vpop.xlane.xlu0 %2442
        %v2444 = vsel %vm1231, %v2041, 0.0
        %2445 = vadd.xlane.f32.xlu0 %v2444
        %v2446 = vpop.xlane.xlu0 %2445
        %v2447 = vsel %vm1231, %v2043, 0.0
        %2448 = vadd.xlane.f32.xlu0 %v2447
        %v2449 = vpop.xlane.xlu0 %2448
        %v2450 = vsel %vm1231, %v2045, 0.0
        %2451 = vadd.xlane.f32.xlu0 %v2450
        %v2452 = vpop.xlane.xlu0 %2451
        %v2453 = vsel %vm1231, %v2047, 0.0
        %2454 = vadd.xlane.f32.xlu0 %v2453
        %v2455 = vpop.xlane.xlu0 %2454
        %v2456 = vsel %vm1231, %v2049, 0.0
        %2457 = vadd.xlane.f32.xlu0 %v2456
        %v2458 = vpop.xlane.xlu0 %2457
        %v2459 = vsel %vm1231, %v2051, 0.0
        %2460 = vadd.xlane.f32.xlu0 %v2459
        %v2461 = vpop.xlane.xlu0 %2460
        %v2462 = vsel %vm1231, %v2053, 0.0
        %2463 = vadd.xlane.f32.xlu0 %v2462
        %v2464 = vpop.xlane.xlu0 %2463
        %v2465 = vsel %vm1231, %v2055, 0.0
        %2466 = vadd.xlane.f32.xlu0 %v2465
        %v2467 = vpop.xlane.xlu0 %2466
        %v2468 = vsel %vm1231, %v2057, 0.0
        %2469 = vadd.xlane.f32.xlu0 %v2468
        %v2470 = vpop.xlane.xlu0 %2469
        %v2471 = vsel %vm1231, %v2059, 0.0
        %2472 = vadd.xlane.f32.xlu0 %v2471
        %v2473 = vpop.xlane.xlu0 %2472
        %v2474 = vsel %vm1231, %v2061, 0.0
        %2475 = vadd.xlane.f32.xlu0 %v2474
        %v2476 = vpop.xlane.xlu0 %2475
        %v2477 = vsel %vm1231, %v2063, 0.0
        %2478 = vadd.xlane.f32.xlu0 %v2477
        %v2479 = vpop.xlane.xlu0 %2478
        %v2480 = vsel %vm1231, %v2065, 0.0
        %2481 = vadd.xlane.f32.xlu0 %v2480
        %v2482 = vpop.xlane.xlu0 %2481
        %v2483 = vsel %vm1231, %v2067, 0.0
        %2484 = vadd.xlane.f32.xlu0 %v2483
        %v2485 = vpop.xlane.xlu0 %2484
        %v2486 = vsel %vm1231, %v2069, 0.0
        %2487 = vadd.xlane.f32.xlu0 %v2486
        %v2488 = vpop.xlane.xlu0 %2487
        %v2489 = vsel %vm1231, %v2071, 0.0
        %2490 = vadd.xlane.f32.xlu0 %v2489
        %v2491 = vpop.xlane.xlu0 %2490
        %v2492 = vsel %vm1231, %v2073, 0.0
        %2493 = vadd.xlane.f32.xlu0 %v2492
        %v2494 = vpop.xlane.xlu0 %2493
        %v2495 = vsel %vm1231, %v2075, 0.0
        %2496 = vadd.xlane.f32.xlu0 %v2495
        %v2497 = vpop.xlane.xlu0 %2496
        %v2498 = vsel %vm1231, %v2077, 0.0
        %2499 = vadd.xlane.f32.xlu0 %v2498
        %v2500 = vpop.xlane.xlu0 %2499
        %v2501 = vsel %vm1231, %v2079, 0.0
        %2502 = vadd.xlane.f32.xlu0 %v2501
        %v2503 = vpop.xlane.xlu0 %2502
        %v2504 = vsel %vm1231, %v2081, 0.0
        %2505 = vadd.xlane.f32.xlu0 %v2504
        %v2506 = vpop.xlane.xlu0 %2505
        %v2507 = vsel %vm1231, %v2083, 0.0
        %2508 = vadd.xlane.f32.xlu0 %v2507
        %v2509 = vpop.xlane.xlu0 %2508
        %v2510 = vsel %vm1231, %v2085, 0.0
        %2511 = vadd.xlane.f32.xlu0 %v2510
        %v2512 = vpop.xlane.xlu0 %2511
        %v2513 = vsel %vm1231, %v2087, 0.0
        %2514 = vadd.xlane.f32.xlu0 %v2513
        %v2515 = vpop.xlane.xlu0 %2514
        %v2516 = vsel %vm1231, %v2089, 0.0
        %2517 = vadd.xlane.f32.xlu0 %v2516
        %v2518 = vpop.xlane.xlu0 %2517
        %v2519 = vsel %vm1231, %v2091, 0.0
        %2520 = vadd.xlane.f32.xlu0 %v2519
        %v2521 = vpop.xlane.xlu0 %2520
        %v2522 = vsel %vm1231, %v2093, 0.0
        %2523 = vadd.xlane.f32.xlu0 %v2522
        %v2524 = vpop.xlane.xlu0 %2523
        %v2525 = vsel %vm1231, %v2095, 0.0
        %2526 = vadd.xlane.f32.xlu0 %v2525
        %v2527 = vpop.xlane.xlu0 %2526
        %v2528 = vrcp.pop %v2098
        %v2529 = vrcp.pop %v2101
        %v2530 = vrcp.pop %v2104
        %v2531 = vrcp.pop %v2107
        %v2532 = vrcp.pop %v2110
        %v2533 = vrcp.pop %v2113
        %v2534 = vrcp.pop %v2116
        %v2535 = vrcp.pop %v2119
        %v2536 = vrcp.pop %v2122
        %v2537 = vrcp.pop %v2125
        %v2538 = vrcp.pop %v2128
        %v2539 = vrcp.pop %v2131
        %v2540 = vrcp.pop %v2134
        %v2541 = vrcp.pop %v2137
        %v2542 = vrcp.pop %v2140
        %v2543 = vrcp.pop %v2143
        %v2544 = vrcp.pop %v2146
        %v2545 = vrcp.pop %v2149
        %v2546 = vrcp.pop %v2152
        %v2547 = vrcp.pop %v2155
        %v2548 = vrcp.pop %v2158
        %v2549 = vrcp.pop %v2161
        %v2550 = vrcp.pop %v2164
        %v2551 = vrcp.pop %v2167
        %v2552 = vrcp.pop %v2170
        %v2553 = vrcp.pop %v2173
        %v2554 = vrcp.pop %v2176
        %v2555 = vrcp.pop %v2179
        %v2556 = vrcp.pop %v2182
        %v2557 = vrcp.pop %v2185
        %v2558 = vrcp.pop %v2188
        %v2559 = vrcp.pop %v2191
        %v2560 = vrcp.pop %v2194
        %v2561 = vrcp.pop %v2197
        %v2562 = vrcp.pop %v2200
        %v2563 = vrcp.pop %v2203
        %v2564 = vrcp.pop %v2206
        %v2565 = vrcp.pop %v2209
        %v2566 = vrcp.pop %v2212
        %v2567 = vrcp.pop %v2215
        %v2568 = vrcp.pop %v2218
        %v2569 = vrcp.pop %v2221
        %v2570 = vrcp.pop %v2224
        %v2571 = vrcp.pop %v2227
        %v2572 = vrcp.pop %v2230
        %v2573 = vrcp.pop %v2233
        %v2574 = vrcp.pop %v2236
        %v2575 = vrcp.pop %v2239
        %v2576 = vrcp.pop %v2242
        %v2577 = vrcp.pop %v2245
        %v2578 = vrcp.pop %v2248
        %v2579 = vrcp.pop %v2251
        %v2580 = vrcp.pop %v2254
        %v2581 = vrcp.pop %v2257
        %v2582 = vrcp.pop %v2260
        %v2583 = vrcp.pop %v2263
        %v2584 = vrcp.pop %v2266
        %v2585 = vrcp.pop %v2269
        %v2586 = vrcp.pop %v2272
        %v2587 = vrcp.pop %v2275
        %v2588 = vrcp.pop %v2278
        %v2589 = vrcp.pop %v2281
        %v2590 = vrcp.pop %v2284
        %v2591 = vrcp.pop %v2287
        %v2592 = vrcp.pop %v2290
        %v2593 = vrcp.pop %v2293
        %v2594 = vrcp.pop %v2296
        %v2595 = vrcp.pop %v2299
        %v2596 = vrcp.pop %v2302
        %v2597 = vrcp.pop %v2305
        %v2598 = vrcp.pop %v2308
        %v2599 = vrcp.pop %v2311
        %v2600 = vrcp.pop %v2314
        %v2601 = vrcp.pop %v2317
        %v2602 = vrcp.pop %v2320
        %v2603 = vrcp.pop %v2323
        %v2604 = vrcp.pop %v2326
        %v2605 = vrcp.pop %v2329
        %v2606 = vrcp.pop %v2332
        %v2607 = vrcp.pop %v2335
        %v2608 = vrcp.pop %v2338
        %v2609 = vrcp.pop %v2341
        %v2610 = vrcp.pop %v2344
        %v2611 = vrcp.pop %v2347
        %v2612 = vrcp.pop %v2350
        %v2613 = vrcp.pop %v2353
        %v2614 = vrcp.pop %v2356
        %v2615 = vrcp.pop %v2359
        %v2616 = vrcp.pop %v2362
        %v2617 = vrcp.pop %v2365
        %v2618 = vrcp.pop %v2368
        %v2619 = vrcp.pop %v2371
        %v2620 = vrcp.pop %v2374
        %v2621 = vrcp.pop %v2377
        %v2622 = vrcp.pop %v2380
        %v2623 = vrcp.pop %v2383
        %v2624 = vrcp.pop %v2386
        %v2625 = vrcp.pop %v2389
        %v2626 = vrcp.pop %v2392
        %v2627 = vrcp.pop %v2395
        %v2628 = vrcp.pop %v2398
        %v2629 = vrcp.pop %v2401
        %v2630 = vrcp.pop %v2404
        %v2631 = vrcp.pop %v2407
        %v2632 = vrcp.pop %v2410
        %v2633 = vrcp.pop %v2413
        %v2634 = vrcp.pop %v2416
        %v2635 = vrcp.pop %v2419
        %v2636 = vrcp.pop %v2422
        %v2637 = vrcp.pop %v2425
        %v2638 = vrcp.pop %v2428
        %v2639 = vrcp.pop %v2431
        %v2640 = vrcp.pop %v2434
        %v2641 = vrcp.pop %v2437
        %v2642 = vrcp.pop %v2440
        %v2643 = vrcp.pop %v2443
        %v2644 = vrcp.pop %v2446
        %v2645 = vrcp.pop %v2449
        %v2646 = vrcp.pop %v2452
        %v2647 = vrcp.pop %v2455
        %v2648 = vrcp.pop %v2458
        %v2649 = vrcp.pop %v2461
        %v2650 = vrcp.pop %v2464
        %v2651 = vrcp.pop %v2467
        %v2652 = vrcp.pop %v2470
        %v2653 = vrcp.pop %v2473
        %v2654 = vrcp.pop %v2476
        %v2655 = vrcp.pop %v2479
        %v2656 = vrcp.pop %v2482
        %v2657 = vrcp.pop %v2485
        %v2658 = vrcp.pop %v2488
        %v2659 = vrcp.pop %v2491
        %v2660 = vrcp.pop %v2494
        %v2661 = vrcp.pop %v2497
        %v2662 = vrcp.pop %v2500
        %v2663 = vrcp.pop %v2503
        %v2664 = vrcp.pop %v2506
        %v2665 = vrcp.pop %v2509
        %v2666 = vrcp.pop %v2512
        %v2667 = vrcp.pop %v2515
        %v2668 = vrcp.pop %v2518
        %v2669 = vrcp.pop %v2521
        %v2670 = vrcp.pop %v2524
        %v2671 = vrcp.pop %v2527
        %v2672 = vmul.f32 %v2098, %v2528
        %v2673 = vmul.f32 %v2101, %v2529
        %v2674 = vmul.f32 %v2104, %v2530
        %v2675 = vmul.f32 %v2107, %v2531
        %v2676 = vmul.f32 %v2110, %v2532
        %v2677 = vmul.f32 %v2113, %v2533
        %v2678 = vmul.f32 %v2116, %v2534
        %v2679 = vmul.f32 %v2119, %v2535
        %v2680 = vmul.f32 %v2122, %v2536
        %v2681 = vmul.f32 %v2125, %v2537
        %v2682 = vmul.f32 %v2128, %v2538
        %v2683 = vmul.f32 %v2131, %v2539
        %v2684 = vmul.f32 %v2134, %v2540
        %v2685 = vmul.f32 %v2137, %v2541
        %v2686 = vmul.f32 %v2140, %v2542
        %v2687 = vmul.f32 %v2143, %v2543
        %v2688 = vmul.f32 %v2146, %v2544
        %v2689 = vmul.f32 %v2149, %v2545
        %v2690 = vmul.f32 %v2152, %v2546
        %v2691 = vmul.f32 %v2155, %v2547
        %v2692 = vmul.f32 %v2158, %v2548
        %v2693 = vmul.f32 %v2161, %v2549
        %v2694 = vmul.f32 %v2164, %v2550
        %v2695 = vmul.f32 %v2167, %v2551
        %v2696 = vmul.f32 %v2170, %v2552
        %v2697 = vmul.f32 %v2173, %v2553
        %v2698 = vmul.f32 %v2176, %v2554
        %v2699 = vmul.f32 %v2179, %v2555
        %v2700 = vmul.f32 %v2182, %v2556
        %v2701 = vmul.f32 %v2185, %v2557
        %v2702 = vmul.f32 %v2188, %v2558
        %v2703 = vmul.f32 %v2191, %v2559
        %v2704 = vmul.f32 %v2194, %v2560
        %v2705 = vmul.f32 %v2197, %v2561
        %v2706 = vmul.f32 %v2200, %v2562
        %v2707 = vmul.f32 %v2203, %v2563
        %v2708 = vmul.f32 %v2206, %v2564
        %v2709 = vmul.f32 %v2209, %v2565
        %v2710 = vmul.f32 %v2212, %v2566
        %v2711 = vmul.f32 %v2215, %v2567
        %v2712 = vmul.f32 %v2218, %v2568
        %v2713 = vmul.f32 %v2221, %v2569
        %v2714 = vmul.f32 %v2224, %v2570
        %v2715 = vmul.f32 %v2227, %v2571
        %v2716 = vmul.f32 %v2230, %v2572
        %v2717 = vmul.f32 %v2233, %v2573
        %v2718 = vmul.f32 %v2236, %v2574
        %v2719 = vmul.f32 %v2239, %v2575
        %v2720 = vmul.f32 %v2242, %v2576
        %v2721 = vmul.f32 %v2245, %v2577
        %v2722 = vmul.f32 %v2248, %v2578
        %v2723 = vmul.f32 %v2251, %v2579
        %v2724 = vmul.f32 %v2254, %v2580
        %v2725 = vmul.f32 %v2257, %v2581
        %v2726 = vmul.f32 %v2260, %v2582
        %v2727 = vmul.f32 %v2263, %v2583
        %v2728 = vmul.f32 %v2266, %v2584
        %v2729 = vmul.f32 %v2269, %v2585
        %v2730 = vmul.f32 %v2272, %v2586
        %v2731 = vmul.f32 %v2275, %v2587
        %v2732 = vmul.f32 %v2278, %v2588
        %v2733 = vmul.f32 %v2281, %v2589
        %v2734 = vmul.f32 %v2284, %v2590
        %v2735 = vmul.f32 %v2287, %v2591
        %v2736 = vmul.f32 %v2290, %v2592
        %v2737 = vmul.f32 %v2293, %v2593
        %v2738 = vmul.f32 %v2296, %v2594
        %v2739 = vmul.f32 %v2299, %v2595
        %v2740 = vmul.f32 %v2302, %v2596
        %v2741 = vmul.f32 %v2305, %v2597
        %v2742 = vmul.f32 %v2308, %v2598
        %v2743 = vmul.f32 %v2311, %v2599
        %v2744 = vmul.f32 %v2314, %v2600
        %v2745 = vmul.f32 %v2317, %v2601
        %v2746 = vmul.f32 %v2320, %v2602
        %v2747 = vmul.f32 %v2323, %v2603
        %v2748 = vmul.f32 %v2326, %v2604
        %v2749 = vmul.f32 %v2329, %v2605
        %v2750 = vmul.f32 %v2332, %v2606
        %v2751 = vmul.f32 %v2335, %v2607
        %v2752 = vmul.f32 %v2338, %v2608
        %v2753 = vmul.f32 %v2341, %v2609
        %v2754 = vmul.f32 %v2344, %v2610
        %v2755 = vmul.f32 %v2347, %v2611
        %v2756 = vmul.f32 %v2350, %v2612
        %v2757 = vmul.f32 %v2353, %v2613
        %v2758 = vmul.f32 %v2356, %v2614
        %v2759 = vmul.f32 %v2359, %v2615
        %v2760 = vmul.f32 %v2362, %v2616
        %v2761 = vmul.f32 %v2365, %v2617
        %v2762 = vmul.f32 %v2368, %v2618
        %v2763 = vmul.f32 %v2371, %v2619
        %v2764 = vmul.f32 %v2374, %v2620
        %v2765 = vmul.f32 %v2377, %v2621
        %v2766 = vmul.f32 %v2380, %v2622
        %v2767 = vmul.f32 %v2383, %v2623
        %v2768 = vmul.f32 %v2386, %v2624
        %v2769 = vmul.f32 %v2389, %v2625
        %v2770 = vmul.f32 %v2392, %v2626
        %v2771 = vmul.f32 %v2395, %v2627
        %v2772 = vmul.f32 %v2398, %v2628
        %v2773 = vmul.f32 %v2401, %v2629
        %v2774 = vmul.f32 %v2404, %v2630
        %v2775 = vmul.f32 %v2407, %v2631
        %v2776 = vmul.f32 %v2410, %v2632
        %v2777 = vmul.f32 %v2413, %v2633
        %v2778 = vmul.f32 %v2416, %v2634
        %v2779 = vmul.f32 %v2419, %v2635
        %v2780 = vmul.f32 %v2422, %v2636
        %v2781 = vmul.f32 %v2425, %v2637
        %v2782 = vmul.f32 %v2428, %v2638
        %v2783 = vmul.f32 %v2431, %v2639
        %v2784 = vmul.f32 %v2434, %v2640
        %v2785 = vmul.f32 %v2437, %v2641
        %v2786 = vmul.f32 %v2440, %v2642
        %v2787 = vmul.f32 %v2443, %v2643
        %v2788 = vmul.f32 %v2446, %v2644
        %v2789 = vmul.f32 %v2449, %v2645
        %v2790 = vmul.f32 %v2452, %v2646
        %v2791 = vmul.f32 %v2455, %v2647
        %v2792 = vmul.f32 %v2458, %v2648
        %v2793 = vmul.f32 %v2461, %v2649
        %v2794 = vmul.f32 %v2464, %v2650
        %v2795 = vmul.f32 %v2467, %v2651
        %v2796 = vmul.f32 %v2470, %v2652
        %v2797 = vmul.f32 %v2473, %v2653
        %v2798 = vmul.f32 %v2476, %v2654
        %v2799 = vmul.f32 %v2479, %v2655
        %v2800 = vmul.f32 %v2482, %v2656
        %v2801 = vmul.f32 %v2485, %v2657
        %v2802 = vmul.f32 %v2488, %v2658
        %v2803 = vmul.f32 %v2491, %v2659
        %v2804 = vmul.f32 %v2494, %v2660
        %v2805 = vmul.f32 %v2497, %v2661
        %v2806 = vmul.f32 %v2500, %v2662
        %v2807 = vmul.f32 %v2503, %v2663
        %v2808 = vmul.f32 %v2506, %v2664
        %v2809 = vmul.f32 %v2509, %v2665
        %v2810 = vmul.f32 %v2512, %v2666
        %v2811 = vmul.f32 %v2515, %v2667
        %v2812 = vmul.f32 %v2518, %v2668
        %v2813 = vmul.f32 %v2521, %v2669
        %v2814 = vmul.f32 %v2524, %v2670
        %v2815 = vmul.f32 %v2527, %v2671
        %v2816 = vsub.f32 2.0, %v2672
        %v2817 = vsub.f32 2.0, %v2673
        %v2818 = vsub.f32 2.0, %v2674
        %v2819 = vsub.f32 2.0, %v2675
        %v2820 = vsub.f32 2.0, %v2676
        %v2821 = vsub.f32 2.0, %v2677
        %v2822 = vsub.f32 2.0, %v2678
        %v2823 = vsub.f32 2.0, %v2679
        %v2824 = vsub.f32 2.0, %v2680
        %v2825 = vsub.f32 2.0, %v2681
        %v2826 = vsub.f32 2.0, %v2682
        %v2827 = vsub.f32 2.0, %v2683
        %v2828 = vsub.f32 2.0, %v2684
        %v2829 = vsub.f32 2.0, %v2685
        %v2830 = vsub.f32 2.0, %v2686
        %v2831 = vsub.f32 2.0, %v2687
        %v2832 = vsub.f32 2.0, %v2688
        %v2833 = vsub.f32 2.0, %v2689
        %v2834 = vsub.f32 2.0, %v2690
        %v2835 = vsub.f32 2.0, %v2691
        %v2836 = vsub.f32 2.0, %v2692
        %v2837 = vsub.f32 2.0, %v2693
        %v2838 = vsub.f32 2.0, %v2694
        %v2839 = vsub.f32 2.0, %v2695
        %v2840 = vsub.f32 2.0, %v2696
        %v2841 = vsub.f32 2.0, %v2697
        %v2842 = vsub.f32 2.0, %v2698
        %v2843 = vsub.f32 2.0, %v2699
        %v2844 = vsub.f32 2.0, %v2700
        %v2845 = vsub.f32 2.0, %v2701
        %v2846 = vsub.f32 2.0, %v2702
        %v2847 = vsub.f32 2.0, %v2703
        %v2848 = vsub.f32 2.0, %v2704
        %v2849 = vsub.f32 2.0, %v2705
        %v2850 = vsub.f32 2.0, %v2706
        %v2851 = vsub.f32 2.0, %v2707
        %v2852 = vsub.f32 2.0, %v2708
        %v2853 = vsub.f32 2.0, %v2709
        %v2854 = vsub.f32 2.0, %v2710
        %v2855 = vsub.f32 2.0, %v2711
        %v2856 = vsub.f32 2.0, %v2712
        %v2857 = vsub.f32 2.0, %v2713
        %v2858 = vsub.f32 2.0, %v2714
        %v2859 = vsub.f32 2.0, %v2715
        %v2860 = vsub.f32 2.0, %v2716
        %v2861 = vsub.f32 2.0, %v2717
        %v2862 = vsub.f32 2.0, %v2718
        %v2863 = vsub.f32 2.0, %v2719
        %v2864 = vsub.f32 2.0, %v2720
        %v2865 = vsub.f32 2.0, %v2721
        %v2866 = vsub.f32 2.0, %v2722
        %v2867 = vsub.f32 2.0, %v2723
        %v2868 = vsub.f32 2.0, %v2724
        %v2869 = vsub.f32 2.0, %v2725
        %v2870 = vsub.f32 2.0, %v2726
        %v2871 = vsub.f32 2.0, %v2727
        %v2872 = vsub.f32 2.0, %v2728
        %v2873 = vsub.f32 2.0, %v2729
        %v2874 = vsub.f32 2.0, %v2730
        %v2875 = vsub.f32 2.0, %v2731
        %v2876 = vsub.f32 2.0, %v2732
        %v2877 = vsub.f32 2.0, %v2733
        %v2878 = vsub.f32 2.0, %v2734
        %v2879 = vsub.f32 2.0, %v2735
        %v2880 = vsub.f32 2.0, %v2736
        %v2881 = vsub.f32 2.0, %v2737
        %v2882 = vsub.f32 2.0, %v2738
        %v2883 = vsub.f32 2.0, %v2739
        %v2884 = vsub.f32 2.0, %v2740
        %v2885 = vsub.f32 2.0, %v2741
        %v2886 = vsub.f32 2.0, %v2742
        %v2887 = vsub.f32 2.0, %v2743
        %v2888 = vsub.f32 2.0, %v2744
        %v2889 = vsub.f32 2.0, %v2745
        %v2890 = vsub.f32 2.0, %v2746
        %v2891 = vsub.f32 2.0, %v2747
        %v2892 = vsub.f32 2.0, %v2748
        %v2893 = vsub.f32 2.0, %v2749
        %v2894 = vsub.f32 2.0, %v2750
        %v2895 = vsub.f32 2.0, %v2751
        %v2896 = vsub.f32 2.0, %v2752
        %v2897 = vsub.f32 2.0, %v2753
        %v2898 = vsub.f32 2.0, %v2754
        %v2899 = vsub.f32 2.0, %v2755
        %v2900 = vsub.f32 2.0, %v2756
        %v2901 = vsub.f32 2.0, %v2757
        %v2902 = vsub.f32 2.0, %v2758
        %v2903 = vsub.f32 2.0, %v2759
        %v2904 = vsub.f32 2.0, %v2760
        %v2905 = vsub.f32 2.0, %v2761
        %v2906 = vsub.f32 2.0, %v2762
        %v2907 = vsub.f32 2.0, %v2763
        %v2908 = vsub.f32 2.0, %v2764
        %v2909 = vsub.f32 2.0, %v2765
        %v2910 = vsub.f32 2.0, %v2766
        %v2911 = vsub.f32 2.0, %v2767
        %v2912 = vsub.f32 2.0, %v2768
        %v2913 = vsub.f32 2.0, %v2769
        %v2914 = vsub.f32 2.0, %v2770
        %v2915 = vsub.f32 2.0, %v2771
        %v2916 = vsub.f32 2.0, %v2772
        %v2917 = vsub.f32 2.0, %v2773
        %v2918 = vsub.f32 2.0, %v2774
        %v2919 = vsub.f32 2.0, %v2775
        %v2920 = vsub.f32 2.0, %v2776
        %v2921 = vsub.f32 2.0, %v2777
        %v2922 = vsub.f32 2.0, %v2778
        %v2923 = vsub.f32 2.0, %v2779
        %v2924 = vsub.f32 2.0, %v2780
        %v2925 = vsub.f32 2.0, %v2781
        %v2926 = vsub.f32 2.0, %v2782
        %v2927 = vsub.f32 2.0, %v2783
        %v2928 = vsub.f32 2.0, %v2784
        %v2929 = vsub.f32 2.0, %v2785
        %v2930 = vsub.f32 2.0, %v2786
        %v2931 = vsub.f32 2.0, %v2787
        %v2932 = vsub.f32 2.0, %v2788
        %v2933 = vsub.f32 2.0, %v2789
        %v2934 = vsub.f32 2.0, %v2790
        %v2935 = vsub.f32 2.0, %v2791
        %v2936 = vsub.f32 2.0, %v2792
        %v2937 = vsub.f32 2.0, %v2793
        %v2938 = vsub.f32 2.0, %v2794
        %v2939 = vsub.f32 2.0, %v2795
        %v2940 = vsub.f32 2.0, %v2796
        %v2941 = vsub.f32 2.0, %v2797
        %v2942 = vsub.f32 2.0, %v2798
        %v2943 = vsub.f32 2.0, %v2799
        %v2944 = vsub.f32 2.0, %v2800
        %v2945 = vsub.f32 2.0, %v2801
        %v2946 = vsub.f32 2.0, %v2802
        %v2947 = vsub.f32 2.0, %v2803
        %v2948 = vsub.f32 2.0, %v2804
        %v2949 = vsub.f32 2.0, %v2805
        %v2950 = vsub.f32 2.0, %v2806
        %v2951 = vsub.f32 2.0, %v2807
        %v2952 = vsub.f32 2.0, %v2808
        %v2953 = vsub.f32 2.0, %v2809
        %v2954 = vsub.f32 2.0, %v2810
        %v2955 = vsub.f32 2.0, %v2811
        %v2956 = vsub.f32 2.0, %v2812
        %v2957 = vsub.f32 2.0, %v2813
        %v2958 = vsub.f32 2.0, %v2814
        %v2959 = vsub.f32 2.0, %v2815
        %v2960 = vmul.f32 %v2528, %v2816
        %v2961 = vmul.f32 %v2529, %v2817
        %v2962 = vmul.f32 %v2530, %v2818
        %v2963 = vmul.f32 %v2531, %v2819
        %v2964 = vmul.f32 %v2532, %v2820
        %v2965 = vmul.f32 %v2533, %v2821
        %v2966 = vmul.f32 %v2534, %v2822
        %v2967 = vmul.f32 %v2535, %v2823
        %v2968 = vmul.f32 %v2536, %v2824
        %v2969 = vmul.f32 %v2537, %v2825
        %v2970 = vmul.f32 %v2538, %v2826
        %v2971 = vmul.f32 %v2539, %v2827
        %v2972 = vmul.f32 %v2540, %v2828
        %v2973 = vmul.f32 %v2541, %v2829
        %v2974 = vmul.f32 %v2542, %v2830
        %v2975 = vmul.f32 %v2543, %v2831
        %v2976 = vmul.f32 %v2544, %v2832
        %v2977 = vmul.f32 %v2545, %v2833
        %v2978 = vmul.f32 %v2546, %v2834
        %v2979 = vmul.f32 %v2547, %v2835
        %v2980 = vmul.f32 %v2548, %v2836
        %v2981 = vmul.f32 %v2549, %v2837
        %v2982 = vmul.f32 %v2550, %v2838
        %v2983 = vmul.f32 %v2551, %v2839
        %v2984 = vmul.f32 %v2552, %v2840
        %v2985 = vmul.f32 %v2553, %v2841
        %v2986 = vmul.f32 %v2554, %v2842
        %v2987 = vmul.f32 %v2555, %v2843
        %v2988 = vmul.f32 %v2556, %v2844
        %v2989 = vmul.f32 %v2557, %v2845
        %v2990 = vmul.f32 %v2558, %v2846
        %v2991 = vmul.f32 %v2559, %v2847
        %v2992 = vmul.f32 %v2560, %v2848
        %v2993 = vmul.f32 %v2561, %v2849
        %v2994 = vmul.f32 %v2562, %v2850
        %v2995 = vmul.f32 %v2563, %v2851
        %v2996 = vmul.f32 %v2564, %v2852
        %v2997 = vmul.f32 %v2565, %v2853
        %v2998 = vmul.f32 %v2566, %v2854
        %v2999 = vmul.f32 %v2567, %v2855
        %v3000 = vmul.f32 %v2568, %v2856
        %v3001 = vmul.f32 %v2569, %v2857
        %v3002 = vmul.f32 %v2570, %v2858
        %v3003 = vmul.f32 %v2571, %v2859
        %v3004 = vmul.f32 %v2572, %v2860
        %v3005 = vmul.f32 %v2573, %v2861
        %v3006 = vmul.f32 %v2574, %v2862
        %v3007 = vmul.f32 %v2575, %v2863
        %v3008 = vmul.f32 %v2576, %v2864
        %v3009 = vmul.f32 %v2577, %v2865
        %v3010 = vmul.f32 %v2578, %v2866
        %v3011 = vmul.f32 %v2579, %v2867
        %v3012 = vmul.f32 %v2580, %v2868
        %v3013 = vmul.f32 %v2581, %v2869
        %v3014 = vmul.f32 %v2582, %v2870
        %v3015 = vmul.f32 %v2583, %v2871
        %v3016 = vmul.f32 %v2584, %v2872
        %v3017 = vmul.f32 %v2585, %v2873
        %v3018 = vmul.f32 %v2586, %v2874
        %v3019 = vmul.f32 %v2587, %v2875
        %v3020 = vmul.f32 %v2588, %v2876
        %v3021 = vmul.f32 %v2589, %v2877
        %v3022 = vmul.f32 %v2590, %v2878
        %v3023 = vmul.f32 %v2591, %v2879
        %v3024 = vmul.f32 %v2592, %v2880
        %v3025 = vmul.f32 %v2593, %v2881
        %v3026 = vmul.f32 %v2594, %v2882
        %v3027 = vmul.f32 %v2595, %v2883
        %v3028 = vmul.f32 %v2596, %v2884
        %v3029 = vmul.f32 %v2597, %v2885
        %v3030 = vmul.f32 %v2598, %v2886
        %v3031 = vmul.f32 %v2599, %v2887
        %v3032 = vmul.f32 %v2600, %v2888
        %v3033 = vmul.f32 %v2601, %v2889
        %v3034 = vmul.f32 %v2602, %v2890
        %v3035 = vmul.f32 %v2603, %v2891
        %v3036 = vmul.f32 %v2604, %v2892
        %v3037 = vmul.f32 %v2605, %v2893
        %v3038 = vmul.f32 %v2606, %v2894
        %v3039 = vmul.f32 %v2607, %v2895
        %v3040 = vmul.f32 %v2608, %v2896
        %v3041 = vmul.f32 %v2609, %v2897
        %v3042 = vmul.f32 %v2610, %v2898
        %v3043 = vmul.f32 %v2611, %v2899
        %v3044 = vmul.f32 %v2612, %v2900
        %v3045 = vmul.f32 %v2613, %v2901
        %v3046 = vmul.f32 %v2614, %v2902
        %v3047 = vmul.f32 %v2615, %v2903
        %v3048 = vmul.f32 %v2616, %v2904
        %v3049 = vmul.f32 %v2617, %v2905
        %v3050 = vmul.f32 %v2618, %v2906
        %v3051 = vmul.f32 %v2619, %v2907
        %v3052 = vmul.f32 %v2620, %v2908
        %v3053 = vmul.f32 %v2621, %v2909
        %v3054 = vmul.f32 %v2622, %v2910
        %v3055 = vmul.f32 %v2623, %v2911
        %v3056 = vmul.f32 %v2624, %v2912
        %v3057 = vmul.f32 %v2625, %v2913
        %v3058 = vmul.f32 %v2626, %v2914
        %v3059 = vmul.f32 %v2627, %v2915
        %v3060 = vmul.f32 %v2628, %v2916
        %v3061 = vmul.f32 %v2629, %v2917
        %v3062 = vmul.f32 %v2630, %v2918
        %v3063 = vmul.f32 %v2631, %v2919
        %v3064 = vmul.f32 %v2632, %v2920
        %v3065 = vmul.f32 %v2633, %v2921
        %v3066 = vmul.f32 %v2634, %v2922
        %v3067 = vmul.f32 %v2635, %v2923
        %v3068 = vmul.f32 %v2636, %v2924
        %v3069 = vmul.f32 %v2637, %v2925
        %v3070 = vmul.f32 %v2638, %v2926
        %v3071 = vmul.f32 %v2639, %v2927
        %v3072 = vmul.f32 %v2640, %v2928
        %v3073 = vmul.f32 %v2641, %v2929
        %v3074 = vmul.f32 %v2642, %v2930
        %v3075 = vmul.f32 %v2643, %v2931
        %v3076 = vmul.f32 %v2644, %v2932
        %v3077 = vmul.f32 %v2645, %v2933
        %v3078 = vmul.f32 %v2646, %v2934
        %v3079 = vmul.f32 %v2647, %v2935
        %v3080 = vmul.f32 %v2648, %v2936
        %v3081 = vmul.f32 %v2649, %v2937
        %v3082 = vmul.f32 %v2650, %v2938
        %v3083 = vmul.f32 %v2651, %v2939
        %v3084 = vmul.f32 %v2652, %v2940
        %v3085 = vmul.f32 %v2653, %v2941
        %v3086 = vmul.f32 %v2654, %v2942
        %v3087 = vmul.f32 %v2655, %v2943
        %v3088 = vmul.f32 %v2656, %v2944
        %v3089 = vmul.f32 %v2657, %v2945
        %v3090 = vmul.f32 %v2658, %v2946
        %v3091 = vmul.f32 %v2659, %v2947
        %v3092 = vmul.f32 %v2660, %v2948
        %v3093 = vmul.f32 %v2661, %v2949
        %v3094 = vmul.f32 %v2662, %v2950
        %v3095 = vmul.f32 %v2663, %v2951
        %v3096 = vmul.f32 %v2664, %v2952
        %v3097 = vmul.f32 %v2665, %v2953
        %v3098 = vmul.f32 %v2666, %v2954
        %v3099 = vmul.f32 %v2667, %v2955
        %v3100 = vmul.f32 %v2668, %v2956
        %v3101 = vmul.f32 %v2669, %v2957
        %v3102 = vmul.f32 %v2670, %v2958
        %v3103 = vmul.f32 %v2671, %v2959
        %v3104 = vmul.f32 %v1809, %v2960
        %v3105 = vmul.f32 %v1811, %v2961
        %v3106 = vmul.f32 %v1813, %v2962
        %v3107 = vmul.f32 %v1815, %v2963
        %v3108 = vmul.f32 %v1817, %v2964
        %v3109 = vmul.f32 %v1819, %v2965
        %v3110 = vmul.f32 %v1821, %v2966
        %v3111 = vmul.f32 %v1823, %v2967
        %v3112 = vmul.f32 %v1825, %v2968
        %v3113 = vmul.f32 %v1827, %v2969
        %v3114 = vmul.f32 %v1829, %v2970
        %v3115 = vmul.f32 %v1831, %v2971
        %v3116 = vmul.f32 %v1833, %v2972
        %v3117 = vmul.f32 %v1835, %v2973
        %v3118 = vmul.f32 %v1837, %v2974
        %v3119 = vmul.f32 %v1839, %v2975
        %v3120 = vmul.f32 %v1841, %v2976
        %v3121 = vmul.f32 %v1843, %v2977
        %v3122 = vmul.f32 %v1845, %v2978
        %v3123 = vmul.f32 %v1847, %v2979
        %v3124 = vmul.f32 %v1849, %v2980
        %v3125 = vmul.f32 %v1851, %v2981
        %v3126 = vmul.f32 %v1853, %v2982
        %v3127 = vmul.f32 %v1855, %v2983
        %v3128 = vmul.f32 %v1857, %v2984
        %v3129 = vmul.f32 %v1859, %v2985
        %v3130 = vmul.f32 %v1861, %v2986
        %v3131 = vmul.f32 %v1863, %v2987
        %v3132 = vmul.f32 %v1865, %v2988
        %v3133 = vmul.f32 %v1867, %v2989
        %v3134 = vmul.f32 %v1869, %v2990
        %v3135 = vmul.f32 %v1871, %v2991
        %v3136 = vmul.f32 %v1873, %v2992
        %v3137 = vmul.f32 %v1875, %v2993
        %v3138 = vmul.f32 %v1877, %v2994
        %v3139 = vmul.f32 %v1879, %v2995
        %v3140 = vmul.f32 %v1881, %v2996
        %v3141 = vmul.f32 %v1883, %v2997
        %v3142 = vmul.f32 %v1885, %v2998
        %v3143 = vmul.f32 %v1887, %v2999
        %v3144 = vmul.f32 %v1889, %v3000
        %v3145 = vmul.f32 %v1891, %v3001
        %v3146 = vmul.f32 %v1893, %v3002
        %v3147 = vmul.f32 %v1895, %v3003
        %v3148 = vmul.f32 %v1897, %v3004
        %v3149 = vmul.f32 %v1899, %v3005
        %v3150 = vmul.f32 %v1901, %v3006
        %v3151 = vmul.f32 %v1903, %v3007
        %v3152 = vmul.f32 %v1905, %v3008
        %v3153 = vmul.f32 %v1907, %v3009
        %v3154 = vmul.f32 %v1909, %v3010
        %v3155 = vmul.f32 %v1911, %v3011
        %v3156 = vmul.f32 %v1913, %v3012
        %v3157 = vmul.f32 %v1915, %v3013
        %v3158 = vmul.f32 %v1917, %v3014
        %v3159 = vmul.f32 %v1919, %v3015
        %v3160 = vmul.f32 %v1921, %v3016
        %v3161 = vmul.f32 %v1923, %v3017
        %v3162 = vmul.f32 %v1925, %v3018
        %v3163 = vmul.f32 %v1927, %v3019
        %v3164 = vmul.f32 %v1929, %v3020
        %v3165 = vmul.f32 %v1931, %v3021
        %v3166 = vmul.f32 %v1933, %v3022
        %v3167 = vmul.f32 %v1935, %v3023
        %v3168 = vmul.f32 %v1937, %v3024
        %v3169 = vmul.f32 %v1939, %v3025
        %v3170 = vmul.f32 %v1941, %v3026
        %v3171 = vmul.f32 %v1943, %v3027
        %v3172 = vmul.f32 %v1945, %v3028
        %v3173 = vmul.f32 %v1947, %v3029
        %v3174 = vmul.f32 %v1949, %v3030
        %v3175 = vmul.f32 %v1951, %v3031
        %v3176 = vmul.f32 %v1953, %v3032
        %v3177 = vmul.f32 %v1955, %v3033
        %v3178 = vmul.f32 %v1957, %v3034
        %v3179 = vmul.f32 %v1959, %v3035
        %v3180 = vmul.f32 %v1961, %v3036
        %v3181 = vmul.f32 %v1963, %v3037
        %v3182 = vmul.f32 %v1965, %v3038
        %v3183 = vmul.f32 %v1967, %v3039
        %v3184 = vmul.f32 %v1969, %v3040
        %v3185 = vmul.f32 %v1971, %v3041
        %v3186 = vmul.f32 %v1973, %v3042
        %v3187 = vmul.f32 %v1975, %v3043
        %v3188 = vmul.f32 %v1977, %v3044
        %v3189 = vmul.f32 %v1979, %v3045
        %v3190 = vmul.f32 %v1981, %v3046
        %v3191 = vmul.f32 %v1983, %v3047
        %v3192 = vmul.f32 %v1985, %v3048
        %v3193 = vmul.f32 %v1987, %v3049
        %v3194 = vmul.f32 %v1989, %v3050
        %v3195 = vmul.f32 %v1991, %v3051
        %v3196 = vmul.f32 %v1993, %v3052
        %v3197 = vmul.f32 %v1995, %v3053
        %v3198 = vmul.f32 %v1997, %v3054
        %v3199 = vmul.f32 %v1999, %v3055
        %v3200 = vmul.f32 %v2001, %v3056
        %v3201 = vmul.f32 %v2003, %v3057
        %v3202 = vmul.f32 %v2005, %v3058
        %v3203 = vmul.f32 %v2007, %v3059
        %v3204 = vmul.f32 %v2009, %v3060
        %v3205 = vmul.f32 %v2011, %v3061
        %v3206 = vmul.f32 %v2013, %v3062
        %v3207 = vmul.f32 %v2015, %v3063
        %v3208 = vmul.f32 %v2017, %v3064
        %v3209 = vmul.f32 %v2019, %v3065
        %v3210 = vmul.f32 %v2021, %v3066
        %v3211 = vmul.f32 %v2023, %v3067
        %v3212 = vmul.f32 %v2025, %v3068
        %v3213 = vmul.f32 %v2027, %v3069
        %v3214 = vmul.f32 %v2029, %v3070
        %v3215 = vmul.f32 %v2031, %v3071
        %v3216 = vmul.f32 %v2033, %v3072
        %v3217 = vmul.f32 %v2035, %v3073
        %v3218 = vmul.f32 %v2037, %v3074
        %v3219 = vmul.f32 %v2039, %v3075
        %v3220 = vmul.f32 %v2041, %v3076
        %v3221 = vmul.f32 %v2043, %v3077
        %v3222 = vmul.f32 %v2045, %v3078
        %v3223 = vmul.f32 %v2047, %v3079
        %v3224 = vmul.f32 %v2049, %v3080
        %v3225 = vmul.f32 %v2051, %v3081
        %v3226 = vmul.f32 %v2053, %v3082
        %v3227 = vmul.f32 %v2055, %v3083
        %v3228 = vmul.f32 %v2057, %v3084
        %v3229 = vmul.f32 %v2059, %v3085
        %v3230 = vmul.f32 %v2061, %v3086
        %v3231 = vmul.f32 %v2063, %v3087
        %v3232 = vmul.f32 %v2065, %v3088
        %v3233 = vmul.f32 %v2067, %v3089
        %v3234 = vmul.f32 %v2069, %v3090
        %v3235 = vmul.f32 %v2071, %v3091
        %v3236 = vmul.f32 %v2073, %v3092
        %v3237 = vmul.f32 %v2075, %v3093
        %v3238 = vmul.f32 %v2077, %v3094
        %v3239 = vmul.f32 %v2079, %v3095
        %v3240 = vmul.f32 %v2081, %v3096
        %v3241 = vmul.f32 %v2083, %v3097
        %v3242 = vmul.f32 %v2085, %v3098
        %v3243 = vmul.f32 %v2087, %v3099
        %v3244 = vmul.f32 %v2089, %v3100
        %v3245 = vmul.f32 %v2091, %v3101
        %v3246 = vmul.f32 %v2093, %v3102
        %v3247 = vmul.f32 %v2095, %v3103
        %3248 = vst.msk [vmem:[%s172] sm:$0xff] %vm1231, %v3104
        %3249 = vst.msk [vmem:[%s172 + $0x8] sm:$0xff] %vm1231, %v3105
        %3250 = vst.msk [vmem:[%s172 + $0x10] sm:$0xff] %vm1231, %v3106
        %3251 = vst.msk [vmem:[%s172 + $0x18] sm:$0xff] %vm1231, %v3107
        %3252 = vst.msk [vmem:[%s172 + $0x20] sm:$0xff] %vm1231, %v3108
        %3253 = vst.msk [vmem:[%s172 + $0x28] sm:$0xff] %vm1231, %v3109
        %3254 = vst.msk [vmem:[%s172 + $0x30] sm:$0xff] %vm1231, %v3110
        %3255 = vst.msk [vmem:[%s172 + $0x38] sm:$0xff] %vm1231, %v3111
        %3256 = vst.msk [vmem:[%s172 + $0x40] sm:$0xff] %vm1231, %v3112
        %3257 = vst.msk [vmem:[%s172 + $0x48] sm:$0xff] %vm1231, %v3113
        %3258 = vst.msk [vmem:[%s172 + $0x50] sm:$0xff] %vm1231, %v3114
        %3259 = vst.msk [vmem:[%s172 + $0x58] sm:$0xff] %vm1231, %v3115
        %3260 = vst.msk [vmem:[%s172 + $0x60] sm:$0xff] %vm1231, %v3116
        %3261 = vst.msk [vmem:[%s172 + $0x68] sm:$0xff] %vm1231, %v3117
        %3262 = vst.msk [vmem:[%s172 + $0x70] sm:$0xff] %vm1231, %v3118
        %3263 = vst.msk [vmem:[%s172 + $0x78] sm:$0xff] %vm1231, %v3119
        %3264 = vst.msk [vmem:[%s172 + $0x80] sm:$0xff] %vm1231, %v3120
        %3265 = vst.msk [vmem:[%s172 + $0x88] sm:$0xff] %vm1231, %v3121
        %3266 = vst.msk [vmem:[%s172 + $0x90] sm:$0xff] %vm1231, %v3122
        %3267 = vst.msk [vmem:[%s172 + $0x98] sm:$0xff] %vm1231, %v3123
        %3268 = vst.msk [vmem:[%s172 + $0xa0] sm:$0xff] %vm1231, %v3124
        %3269 = vst.msk [vmem:[%s172 + $0xa8] sm:$0xff] %vm1231, %v3125
        %3270 = vst.msk [vmem:[%s172 + $0xb0] sm:$0xff] %vm1231, %v3126
        %3271 = vst.msk [vmem:[%s172 + $0xb8] sm:$0xff] %vm1231, %v3127
        %3272 = vst.msk [vmem:[%s172 + $0xc0] sm:$0xff] %vm1231, %v3128
        %3273 = vst.msk [vmem:[%s172 + $0xc8] sm:$0xff] %vm1231, %v3129
        %3274 = vst.msk [vmem:[%s172 + $0xd0] sm:$0xff] %vm1231, %v3130
        %3275 = vst.msk [vmem:[%s172 + $0xd8] sm:$0xff] %vm1231, %v3131
        %3276 = vst.msk [vmem:[%s172 + $0xe0] sm:$0xff] %vm1231, %v3132
        %3277 = vst.msk [vmem:[%s172 + $0xe8] sm:$0xff] %vm1231, %v3133
        %3278 = vst.msk [vmem:[%s172 + $0xf0] sm:$0xff] %vm1231, %v3134
        %3279 = vst.msk [vmem:[%s172 + $0xf8] sm:$0xff] %vm1231, %v3135
        %3280 = vst.msk [vmem:[%s172 + $0x100] sm:$0xff] %vm1231, %v3136
        %3281 = vst.msk [vmem:[%s172 + $0x108] sm:$0xff] %vm1231, %v3137
        %3282 = vst.msk [vmem:[%s172 + $0x110] sm:$0xff] %vm1231, %v3138
        %3283 = vst.msk [vmem:[%s172 + $0x118] sm:$0xff] %vm1231, %v3139
        %3284 = vst.msk [vmem:[%s172 + $0x120] sm:$0xff] %vm1231, %v3140
        %3285 = vst.msk [vmem:[%s172 + $0x128] sm:$0xff] %vm1231, %v3141
        %3286 = vst.msk [vmem:[%s172 + $0x130] sm:$0xff] %vm1231, %v3142
        %3287 = vst.msk [vmem:[%s172 + $0x138] sm:$0xff] %vm1231, %v3143
        %3288 = vst.msk [vmem:[%s172 + $0x140] sm:$0xff] %vm1231, %v3144
        %3289 = vst.msk [vmem:[%s172 + $0x148] sm:$0xff] %vm1231, %v3145
        %3290 = vst.msk [vmem:[%s172 + $0x150] sm:$0xff] %vm1231, %v3146
        %3291 = vst.msk [vmem:[%s172 + $0x158] sm:$0xff] %vm1231, %v3147
        %3292 = vst.msk [vmem:[%s172 + $0x160] sm:$0xff] %vm1231, %v3148
        %3293 = vst.msk [vmem:[%s172 + $0x168] sm:$0xff] %vm1231, %v3149
        %3294 = vst.msk [vmem:[%s172 + $0x170] sm:$0xff] %vm1231, %v3150
        %3295 = vst.msk [vmem:[%s172 + $0x178] sm:$0xff] %vm1231, %v3151
        %3296 = vst.msk [vmem:[%s172 + $0x180] sm:$0xff] %vm1231, %v3152
        %3297 = vst.msk [vmem:[%s172 + $0x188] sm:$0xff] %vm1231, %v3153
        %3298 = vst.msk [vmem:[%s172 + $0x190] sm:$0xff] %vm1231, %v3154
        %3299 = vst.msk [vmem:[%s172 + $0x198] sm:$0xff] %vm1231, %v3155
        %3300 = vst.msk [vmem:[%s172 + $0x1a0] sm:$0xff] %vm1231, %v3156
        %3301 = vst.msk [vmem:[%s172 + $0x1a8] sm:$0xff] %vm1231, %v3157
        %3302 = vst.msk [vmem:[%s172 + $0x1b0] sm:$0xff] %vm1231, %v3158
        %3303 = vst.msk [vmem:[%s172 + $0x1b8] sm:$0xff] %vm1231, %v3159
        %3304 = vst.msk [vmem:[%s172 + $0x1c0] sm:$0xff] %vm1231, %v3160
        %3305 = vst.msk [vmem:[%s172 + $0x1c8] sm:$0xff] %vm1231, %v3161
        %3306 = vst.msk [vmem:[%s172 + $0x1d0] sm:$0xff] %vm1231, %v3162
        %3307 = vst.msk [vmem:[%s172 + $0x1d8] sm:$0xff] %vm1231, %v3163
        %3308 = vst.msk [vmem:[%s172 + $0x1e0] sm:$0xff] %vm1231, %v3164
        %3309 = vst.msk [vmem:[%s172 + $0x1e8] sm:$0xff] %vm1231, %v3165
        %3310 = vst.msk [vmem:[%s172 + $0x1f0] sm:$0xff] %vm1231, %v3166
        %3311 = vst.msk [vmem:[%s172 + $0x1f8] sm:$0xff] %vm1231, %v3167
        %3312 = vst.msk [vmem:[%s172 + $0x200] sm:$0xff] %vm1231, %v3168
        %3313 = vst.msk [vmem:[%s172 + $0x208] sm:$0xff] %vm1231, %v3169
        %3314 = vst.msk [vmem:[%s172 + $0x210] sm:$0xff] %vm1231, %v3170
        %3315 = vst.msk [vmem:[%s172 + $0x218] sm:$0xff] %vm1231, %v3171
        %3316 = vst.msk [vmem:[%s172 + $0x220] sm:$0xff] %vm1231, %v3172
        %3317 = vst.msk [vmem:[%s172 + $0x228] sm:$0xff] %vm1231, %v3173
        %3318 = vst.msk [vmem:[%s172 + $0x230] sm:$0xff] %vm1231, %v3174
        %3319 = vst.msk [vmem:[%s172 + $0x238] sm:$0xff] %vm1231, %v3175
        %3320 = vst.msk [vmem:[%s172 + $0x240] sm:$0xff] %vm1231, %v3176
        %3321 = vst.msk [vmem:[%s172 + $0x248] sm:$0xff] %vm1231, %v3177
        %3322 = vst.msk [vmem:[%s172 + $0x250] sm:$0xff] %vm1231, %v3178
        %3323 = vst.msk [vmem:[%s172 + $0x258] sm:$0xff] %vm1231, %v3179
        %3324 = vst.msk [vmem:[%s172 + $0x260] sm:$0xff] %vm1231, %v3180
        %3325 = vst.msk [vmem:[%s172 + $0x268] sm:$0xff] %vm1231, %v3181
        %3326 = vst.msk [vmem:[%s172 + $0x270] sm:$0xff] %vm1231, %v3182
        %3327 = vst.msk [vmem:[%s172 + $0x278] sm:$0xff] %vm1231, %v3183
        %3328 = vst.msk [vmem:[%s172 + $0x280] sm:$0xff] %vm1231, %v3184
        %3329 = vst.msk [vmem:[%s172 + $0x288] sm:$0xff] %vm1231, %v3185
        %3330 = vst.msk [vmem:[%s172 + $0x290] sm:$0xff] %vm1231, %v3186
        %3331 = vst.msk [vmem:[%s172 + $0x298] sm:$0xff] %vm1231, %v3187
        %3332 = vst.msk [vmem:[%s172 + $0x2a0] sm:$0xff] %vm1231, %v3188
        %3333 = vst.msk [vmem:[%s172 + $0x2a8] sm:$0xff] %vm1231, %v3189
        %3334 = vst.msk [vmem:[%s172 + $0x2b0] sm:$0xff] %vm1231, %v3190
        %3335 = vst.msk [vmem:[%s172 + $0x2b8] sm:$0xff] %vm1231, %v3191
        %3336 = vst.msk [vmem:[%s172 + $0x2c0] sm:$0xff] %vm1231, %v3192
        %3337 = vst.msk [vmem:[%s172 + $0x2c8] sm:$0xff] %vm1231, %v3193
        %3338 = vst.msk [vmem:[%s172 + $0x2d0] sm:$0xff] %vm1231, %v3194
        %3339 = vst.msk [vmem:[%s172 + $0x2d8] sm:$0xff] %vm1231, %v3195
        %3340 = vst.msk [vmem:[%s172 + $0x2e0] sm:$0xff] %vm1231, %v3196
        %3341 = vst.msk [vmem:[%s172 + $0x2e8] sm:$0xff] %vm1231, %v3197
        %3342 = vst.msk [vmem:[%s172 + $0x2f0] sm:$0xff] %vm1231, %v3198
        %3343 = vst.msk [vmem:[%s172 + $0x2f8] sm:$0xff] %vm1231, %v3199
        %3344 = vst.msk [vmem:[%s172 + $0x300] sm:$0xff] %vm1231, %v3200
        %3345 = vst.msk [vmem:[%s172 + $0x308] sm:$0xff] %vm1231, %v3201
        %3346 = vst.msk [vmem:[%s172 + $0x310] sm:$0xff] %vm1231, %v3202
        %3347 = vst.msk [vmem:[%s172 + $0x318] sm:$0xff] %vm1231, %v3203
        %3348 = vst.msk [vmem:[%s172 + $0x320] sm:$0xff] %vm1231, %v3204
        %3349 = vst.msk [vmem:[%s172 + $0x328] sm:$0xff] %vm1231, %v3205
        %3350 = vst.msk [vmem:[%s172 + $0x330] sm:$0xff] %vm1231, %v3206
        %3351 = vst.msk [vmem:[%s172 + $0x338] sm:$0xff] %vm1231, %v3207
        %3352 = vst.msk [vmem:[%s172 + $0x340] sm:$0xff] %vm1231, %v3208
        %3353 = vst.msk [vmem:[%s172 + $0x348] sm:$0xff] %vm1231, %v3209
        %3354 = vst.msk [vmem:[%s172 + $0x350] sm:$0xff] %vm1231, %v3210
        %3355 = vst.msk [vmem:[%s172 + $0x358] sm:$0xff] %vm1231, %v3211
        %3356 = vst.msk [vmem:[%s172 + $0x360] sm:$0xff] %vm1231, %v3212
        %3357 = vst.msk [vmem:[%s172 + $0x368] sm:$0xff] %vm1231, %v3213
        %3358 = vst.msk [vmem:[%s172 + $0x370] sm:$0xff] %vm1231, %v3214
        %3359 = vst.msk [vmem:[%s172 + $0x378] sm:$0xff] %vm1231, %v3215
        %3360 = vst.msk [vmem:[%s172 + $0x380] sm:$0xff] %vm1231, %v3216
        %3361 = vst.msk [vmem:[%s172 + $0x388] sm:$0xff] %vm1231, %v3217
        %3362 = vst.msk [vmem:[%s172 + $0x390] sm:$0xff] %vm1231, %v3218
        %3363 = vst.msk [vmem:[%s172 + $0x398] sm:$0xff] %vm1231, %v3219
        %3364 = vst.msk [vmem:[%s172 + $0x3a0] sm:$0xff] %vm1231, %v3220
        %3365 = vst.msk [vmem:[%s172 + $0x3a8] sm:$0xff] %vm1231, %v3221
        %3366 = vst.msk [vmem:[%s172 + $0x3b0] sm:$0xff] %vm1231, %v3222
        %3367 = vst.msk [vmem:[%s172 + $0x3b8] sm:$0xff] %vm1231, %v3223
        %3368 = vst.msk [vmem:[%s172 + $0x3c0] sm:$0xff] %vm1231, %v3224
        %3369 = vst.msk [vmem:[%s172 + $0x3c8] sm:$0xff] %vm1231, %v3225
        %3370 = vst.msk [vmem:[%s172 + $0x3d0] sm:$0xff] %vm1231, %v3226
        %3371 = vst.msk [vmem:[%s172 + $0x3d8] sm:$0xff] %vm1231, %v3227
        %3372 = vst.msk [vmem:[%s172 + $0x3e0] sm:$0xff] %vm1231, %v3228
        %3373 = vst.msk [vmem:[%s172 + $0x3e8] sm:$0xff] %vm1231, %v3229
        %3374 = vst.msk [vmem:[%s172 + $0x3f0] sm:$0xff] %vm1231, %v3230
        %3375 = vst.msk [vmem:[%s172 + $0x3f8] sm:$0xff] %vm1231, %v3231
        %3376 = vst.msk [vmem:[%s172 + $0x400] sm:$0xff] %vm1231, %v3232
        %3377 = vst.msk [vmem:[%s172 + $0x408] sm:$0xff] %vm1231, %v3233
        %3378 = vst.msk [vmem:[%s172 + $0x410] sm:$0xff] %vm1231, %v3234
        %3379 = vst.msk [vmem:[%s172 + $0x418] sm:$0xff] %vm1231, %v3235
        %3380 = vst.msk [vmem:[%s172 + $0x420] sm:$0xff] %vm1231, %v3236
        %3381 = vst.msk [vmem:[%s172 + $0x428] sm:$0xff] %vm1231, %v3237
        %3382 = vst.msk [vmem:[%s172 + $0x430] sm:$0xff] %vm1231, %v3238
        %3383 = vst.msk [vmem:[%s172 + $0x438] sm:$0xff] %vm1231, %v3239
        %3384 = vst.msk [vmem:[%s172 + $0x440] sm:$0xff] %vm1231, %v3240
        %3385 = vst.msk [vmem:[%s172 + $0x448] sm:$0xff] %vm1231, %v3241
        %3386 = vst.msk [vmem:[%s172 + $0x450] sm:$0xff] %vm1231, %v3242
        %3387 = vst.msk [vmem:[%s172 + $0x458] sm:$0xff] %vm1231, %v3243
        %3388 = vst.msk [vmem:[%s172 + $0x460] sm:$0xff] %vm1231, %v3244
        %3389 = vst.msk [vmem:[%s172 + $0x468] sm:$0xff] %vm1231, %v3245
        %3390 = vst.msk [vmem:[%s172 + $0x470] sm:$0xff] %vm1231, %v3246
        %3391 = vst.msk [vmem:[%s172 + $0x478] sm:$0xff] %vm1231, %v3247
        %s3392 = sand.u32 %s90, 1
        %s3393 = sand.u32 %s90, 1
        %s3394 = smul.addr %s3393, 1152
        %s3395 = scalar_lea.vmem [#allocation2], %s3394
        // Predicated region
        $region33: #{tpu_custom_call.1} parent=31 // pred_check
          %p3396 = pneg %p100
        $region34: #{tpu_custom_call.1} parent=31 // pred_check_branch
          %3398 = sbr.rel (%p3396) target = $region36
        $region35: #{tpu_custom_call.1} parent=31 // pred_region
          %s3399 = smul.u32 144, %s14
          %s3400 = ssub.s32 550, %s3399
          %p3401 = scmp.lt.s32.totalorder %s3400, 144
          %s3402 = scalar_select %p3401, %s3400, 144
          %s3403 = smul.u32 8, %s3402
          %p3404 = scmp.ne.s32.totalorder 0, %s3403
          %s3405 = smul.addr %s3399, 8
          %s3406 = scalar_lea.vmem %s3, %s3405
          // Predicated region
          $region37: #{tpu_custom_call.1} parent=35 // pred_check
            %p3407 = pneg %p3404
          $region38: #{tpu_custom_call.1} parent=35 // pred_check_branch
            %3409 = sbr.rel (%p3407) target = $region40
          $region39: #{tpu_custom_call.1} parent=35 // pred_region
            // Predicated region
            $region41: #{tpu_custom_call.1} parent=39 // pred_check
              _
            $region42: #{tpu_custom_call.1} parent=39 // pred_check_branch
              %3411 = sbr.rel (0) target = $region44
            $region43: #{tpu_custom_call.1} parent=39 // pred_region
              // Predicated region
              $region63: #{tpu_custom_call.1} parent=43 // pred_check
                _
              $region64: #{tpu_custom_call.1} parent=43 // pred_check_branch
                %3523 = sbr.rel (0) target = $region66
              $region65: #{tpu_custom_call.1} parent=43 // pred_region
                %s3524 = sshrl.u32 %s3402, 5
                // While loop
                $region67: #{tpu_custom_call.1} parent=65 // loop_pre_header
                  _
                $region68: #{tpu_custom_call.1} parent=65 // loop_header
                  %s3526 = sphi 0, %s3528
                  %p3527 = scmp.ge.s32.totalorder %s3526, %s3524
                  %s3531 = sphi 0, %s3600
                  %s3532 = sphi %s3395, %s3603
                  %s3533 = sphi %s3406, %s3604
                $region69: #{tpu_custom_call.1} parent=65 // loop_header_branch
                  %3530 = sbr.rel (%p3527) target = $region73
                $region70: #{tpu_custom_call.1} parent=65 // loop_body
                  %v3534 = vld [vmem:[%s3532] sm:$0xff]
                  %3535 = vst [vmem:[%s3533] sm:$0xff] %v3534
                  %v3536 = vld [vmem:[%s3532 + $0x8] sm:$0xff]
                  %3537 = vst [vmem:[%s3533 + $0x8] sm:$0xff] %v3536
                  %v3538 = vld [vmem:[%s3532 + $0x10] sm:$0xff]
                  %3539 = vst [vmem:[%s3533 + $0x10] sm:$0xff] %v3538
                  %v3540 = vld [vmem:[%s3532 + $0x18] sm:$0xff]
                  %3541 = vst [vmem:[%s3533 + $0x18] sm:$0xff] %v3540
                  %v3542 = vld [vmem:[%s3532 + $0x20] sm:$0xff]
                  %3543 = vst [vmem:[%s3533 + $0x20] sm:$0xff] %v3542
                  %v3544 = vld [vmem:[%s3532 + $0x28] sm:$0xff]
                  %3545 = vst [vmem:[%s3533 + $0x28] sm:$0xff] %v3544
                  %v3546 = vld [vmem:[%s3532 + $0x30] sm:$0xff]
                  %3547 = vst [vmem:[%s3533 + $0x30] sm:$0xff] %v3546
                  %v3548 = vld [vmem:[%s3532 + $0x38] sm:$0xff]
                  %3549 = vst [vmem:[%s3533 + $0x38] sm:$0xff] %v3548
                  %v3550 = vld [vmem:[%s3532 + $0x40] sm:$0xff]
                  %3551 = vst [vmem:[%s3533 + $0x40] sm:$0xff] %v3550
                  %v3552 = vld [vmem:[%s3532 + $0x48] sm:$0xff]
                  %3553 = vst [vmem:[%s3533 + $0x48] sm:$0xff] %v3552
                  %v3554 = vld [vmem:[%s3532 + $0x50] sm:$0xff]
                  %3555 = vst [vmem:[%s3533 + $0x50] sm:$0xff] %v3554
                  %v3556 = vld [vmem:[%s3532 + $0x58] sm:$0xff]
                  %3557 = vst [vmem:[%s3533 + $0x58] sm:$0xff] %v3556
                  %v3558 = vld [vmem:[%s3532 + $0x60] sm:$0xff]
                  %3559 = vst [vmem:[%s3533 + $0x60] sm:$0xff] %v3558
                  %v3560 = vld [vmem:[%s3532 + $0x68] sm:$0xff]
                  %3561 = vst [vmem:[%s3533 + $0x68] sm:$0xff] %v3560
                  %v3562 = vld [vmem:[%s3532 + $0x70] sm:$0xff]
                  %3563 = vst [vmem:[%s3533 + $0x70] sm:$0xff] %v3562
                  %v3564 = vld [vmem:[%s3532 + $0x78] sm:$0xff]
                  %3565 = vst [vmem:[%s3533 + $0x78] sm:$0xff] %v3564
                  %v3566 = vld [vmem:[%s3532 + $0x80] sm:$0xff]
                  %3567 = vst [vmem:[%s3533 + $0x80] sm:$0xff] %v3566
                  %v3568 = vld [vmem:[%s3532 + $0x88] sm:$0xff]
                  %3569 = vst [vmem:[%s3533 + $0x88] sm:$0xff] %v3568
                  %v3570 = vld [vmem:[%s3532 + $0x90] sm:$0xff]
                  %3571 = vst [vmem:[%s3533 + $0x90] sm:$0xff] %v3570
                  %v3572 = vld [vmem:[%s3532 + $0x98] sm:$0xff]
                  %3573 = vst [vmem:[%s3533 + $0x98] sm:$0xff] %v3572
                  %v3574 = vld [vmem:[%s3532 + $0xa0] sm:$0xff]
                  %3575 = vst [vmem:[%s3533 + $0xa0] sm:$0xff] %v3574
                  %v3576 = vld [vmem:[%s3532 + $0xa8] sm:$0xff]
                  %3577 = vst [vmem:[%s3533 + $0xa8] sm:$0xff] %v3576
                  %v3578 = vld [vmem:[%s3532 + $0xb0] sm:$0xff]
                  %3579 = vst [vmem:[%s3533 + $0xb0] sm:$0xff] %v3578
                  %v3580 = vld [vmem:[%s3532 + $0xb8] sm:$0xff]
                  %3581 = vst [vmem:[%s3533 + $0xb8] sm:$0xff] %v3580
                  %v3582 = vld [vmem:[%s3532 + $0xc0] sm:$0xff]
                  %3583 = vst [vmem:[%s3533 + $0xc0] sm:$0xff] %v3582
                  %v3584 = vld [vmem:[%s3532 + $0xc8] sm:$0xff]
                  %3585 = vst [vmem:[%s3533 + $0xc8] sm:$0xff] %v3584
                  %v3586 = vld [vmem:[%s3532 + $0xd0] sm:$0xff]
                  %3587 = vst [vmem:[%s3533 + $0xd0] sm:$0xff] %v3586
                  %v3588 = vld [vmem:[%s3532 + $0xd8] sm:$0xff]
                  %3589 = vst [vmem:[%s3533 + $0xd8] sm:$0xff] %v3588
                  %v3590 = vld [vmem:[%s3532 + $0xe0] sm:$0xff]
                  %3591 = vst [vmem:[%s3533 + $0xe0] sm:$0xff] %v3590
                  %v3592 = vld [vmem:[%s3532 + $0xe8] sm:$0xff]
                  %3593 = vst [vmem:[%s3533 + $0xe8] sm:$0xff] %v3592
                  %v3594 = vld [vmem:[%s3532 + $0xf0] sm:$0xff]
                  %3595 = vst [vmem:[%s3533 + $0xf0] sm:$0xff] %v3594
                  %v3596 = vld [vmem:[%s3532 + $0xf8] sm:$0xff]
                  %3597 = vst [vmem:[%s3533 + $0xf8] sm:$0xff] %v3596
                  %s3598 = sadd.s32 1, %s3531
                  %p3599 = scmp.ge.s32.totalorder %s3598, %s3524
                  %s3600 = scalar_select %p3599, 0, %s3598
                  %s3601 = smul.u32 %s3600, 256
                  %s3602 = smul.u32 %s3600, 256
                  %s3603 = scalar_lea.vmem %s3395, %s3601 [#allocation2]
                  %s3604 = scalar_lea.vmem %s3406, %s3602
                $region71: #{tpu_custom_call.1} parent=65 // loop_footer
                  %s3528 = sadd.s32 %s3526, 1
                $region72: #{tpu_custom_call.1} parent=65 // loop_footer_branch
                  %3525 = sbr.rel target = $region68
                $region73: #{tpu_custom_call.1} parent=65 // loop_exit
                  _
                %s3605 = sshrl.u32 %s3402, 5
                %s3606 = sand.u32 %s3402, 31
                %s3607 = smul.u32 %s3605, 32
                %s3608 = smul.u32 8, %s3607
                %s3609 = scalar_lea.vmem %s3395, %s3608 [#allocation2]
                %s3610 = smul.u32 8, %s3607
                %s3611 = scalar_lea.vmem %s3406, %s3610
                // While loop
                $region74: #{tpu_custom_call.1} parent=65 // loop_pre_header
                  _
                $region75: #{tpu_custom_call.1} parent=65 // loop_header
                  %s3613 = sphi 0, %s3615
                  %p3614 = scmp.ge.s32.totalorder %s3613, %s3606
                  %s3618 = sphi 0, %s3625
                  %s3619 = sphi %s3609, %s3628
                  %s3620 = sphi %s3611, %s3629
                $region76: #{tpu_custom_call.1} parent=65 // loop_header_branch
                  %3617 = sbr.rel (%p3614) target = $region80
                $region77: #{tpu_custom_call.1} parent=65 // loop_body
                  %v3621 = vld [vmem:[%s3619] sm:$0xff]
                  %3622 = vst [vmem:[%s3620] sm:$0xff] %v3621
                  %s3623 = sadd.s32 1, %s3618
                  %p3624 = scmp.ge.s32.totalorder %s3623, %s3606
                  %s3625 = scalar_select %p3624, 0, %s3623
                  %s3626 = smul.u32 %s3625, 8
                  %s3627 = smul.u32 %s3625, 8
                  %s3628 = scalar_lea.vmem %s3609, %s3626 [#allocation2]
                  %s3629 = scalar_lea.vmem %s3611, %s3627
                $region78: #{tpu_custom_call.1} parent=65 // loop_footer
                  %s3615 = sadd.s32 %s3613, 1
                $region79: #{tpu_custom_call.1} parent=65 // loop_footer_branch
                  %3612 = sbr.rel target = $region75
                $region80: #{tpu_custom_call.1} parent=65 // loop_exit
                  _
              $region66: #{tpu_custom_call.1} parent=43 // pred_fallthru
                _
              // Predicated region
              $region81: #{tpu_custom_call.1} parent=43 // pred_check
                _
              $region82: #{tpu_custom_call.1} parent=43 // pred_check_branch
                %3631 = sbr.rel target = $region84
              $region83: #{tpu_custom_call.1} parent=43 // pred_region
                _
              $region84: #{tpu_custom_call.1} parent=43 // pred_fallthru
                _
            $region44: #{tpu_custom_call.1} parent=39 // pred_fallthru
              _
            // Predicated region
            $region45: #{tpu_custom_call.1} parent=39 // pred_check
              _
            $region46: #{tpu_custom_call.1} parent=39 // pred_check_branch
              %3413 = sbr.rel target = $region48
            $region47: #{tpu_custom_call.1} parent=39 // pred_region
              %s3415 = ssub.s32 256, 1
              %s3416 = sshrl.u32 %s3402, 5
              // While loop
              $region49: #{tpu_custom_call.1} parent=47 // loop_pre_header
                _
              $region50: #{tpu_custom_call.1} parent=47 // loop_header
                %s3418 = sphi 0, %s3420
                %p3419 = scmp.ge.s32.totalorder %s3418, %s3416
                %s3423 = sphi 0, %s3492
                %s3424 = sphi %s3395, %s3495
                %s3425 = sphi %s3406, %s3496
              $region51: #{tpu_custom_call.1} parent=47 // loop_header_branch
                %3422 = sbr.rel (%p3419) target = $region55
              $region52: #{tpu_custom_call.1} parent=47 // loop_body
                %v3426 = vld [vmem:[%s3424] sm:%s3415]
                %3427 = vst [vmem:[%s3425] sm:%s3415] %v3426
                %v3428 = vld [vmem:[%s3424 + $0x8] sm:%s3415]
                %3429 = vst [vmem:[%s3425 + $0x8] sm:%s3415] %v3428
                %v3430 = vld [vmem:[%s3424 + $0x10] sm:%s3415]
                %3431 = vst [vmem:[%s3425 + $0x10] sm:%s3415] %v3430
                %v3432 = vld [vmem:[%s3424 + $0x18] sm:%s3415]
                %3433 = vst [vmem:[%s3425 + $0x18] sm:%s3415] %v3432
                %v3434 = vld [vmem:[%s3424 + $0x20] sm:%s3415]
                %3435 = vst [vmem:[%s3425 + $0x20] sm:%s3415] %v3434
                %v3436 = vld [vmem:[%s3424 + $0x28] sm:%s3415]
                %3437 = vst [vmem:[%s3425 + $0x28] sm:%s3415] %v3436
                %v3438 = vld [vmem:[%s3424 + $0x30] sm:%s3415]
                %3439 = vst [vmem:[%s3425 + $0x30] sm:%s3415] %v3438
                %v3440 = vld [vmem:[%s3424 + $0x38] sm:%s3415]
                %3441 = vst [vmem:[%s3425 + $0x38] sm:%s3415] %v3440
                %v3442 = vld [vmem:[%s3424 + $0x40] sm:%s3415]
                %3443 = vst [vmem:[%s3425 + $0x40] sm:%s3415] %v3442
                %v3444 = vld [vmem:[%s3424 + $0x48] sm:%s3415]
                %3445 = vst [vmem:[%s3425 + $0x48] sm:%s3415] %v3444
                %v3446 = vld [vmem:[%s3424 + $0x50] sm:%s3415]
                %3447 = vst [vmem:[%s3425 + $0x50] sm:%s3415] %v3446
                %v3448 = vld [vmem:[%s3424 + $0x58] sm:%s3415]
                %3449 = vst [vmem:[%s3425 + $0x58] sm:%s3415] %v3448
                %v3450 = vld [vmem:[%s3424 + $0x60] sm:%s3415]
                %3451 = vst [vmem:[%s3425 + $0x60] sm:%s3415] %v3450
                %v3452 = vld [vmem:[%s3424 + $0x68] sm:%s3415]
                %3453 = vst [vmem:[%s3425 + $0x68] sm:%s3415] %v3452
                %v3454 = vld [vmem:[%s3424 + $0x70] sm:%s3415]
                %3455 = vst [vmem:[%s3425 + $0x70] sm:%s3415] %v3454
                %v3456 = vld [vmem:[%s3424 + $0x78] sm:%s3415]
                %3457 = vst [vmem:[%s3425 + $0x78] sm:%s3415] %v3456
                %v3458 = vld [vmem:[%s3424 + $0x80] sm:%s3415]
                %3459 = vst [vmem:[%s3425 + $0x80] sm:%s3415] %v3458
                %v3460 = vld [vmem:[%s3424 + $0x88] sm:%s3415]
                %3461 = vst [vmem:[%s3425 + $0x88] sm:%s3415] %v3460
                %v3462 = vld [vmem:[%s3424 + $0x90] sm:%s3415]
                %3463 = vst [vmem:[%s3425 + $0x90] sm:%s3415] %v3462
                %v3464 = vld [vmem:[%s3424 + $0x98] sm:%s3415]
                %3465 = vst [vmem:[%s3425 + $0x98] sm:%s3415] %v3464
                %v3466 = vld [vmem:[%s3424 + $0xa0] sm:%s3415]
                %3467 = vst [vmem:[%s3425 + $0xa0] sm:%s3415] %v3466
                %v3468 = vld [vmem:[%s3424 + $0xa8] sm:%s3415]
                %3469 = vst [vmem:[%s3425 + $0xa8] sm:%s3415] %v3468
                %v3470 = vld [vmem:[%s3424 + $0xb0] sm:%s3415]
                %3471 = vst [vmem:[%s3425 + $0xb0] sm:%s3415] %v3470
                %v3472 = vld [vmem:[%s3424 + $0xb8] sm:%s3415]
                %3473 = vst [vmem:[%s3425 + $0xb8] sm:%s3415] %v3472
                %v3474 = vld [vmem:[%s3424 + $0xc0] sm:%s3415]
                %3475 = vst [vmem:[%s3425 + $0xc0] sm:%s3415] %v3474
                %v3476 = vld [vmem:[%s3424 + $0xc8] sm:%s3415]
                %3477 = vst [vmem:[%s3425 + $0xc8] sm:%s3415] %v3476
                %v3478 = vld [vmem:[%s3424 + $0xd0] sm:%s3415]
                %3479 = vst [vmem:[%s3425 + $0xd0] sm:%s3415] %v3478
                %v3480 = vld [vmem:[%s3424 + $0xd8] sm:%s3415]
                %3481 = vst [vmem:[%s3425 + $0xd8] sm:%s3415] %v3480
                %v3482 = vld [vmem:[%s3424 + $0xe0] sm:%s3415]
                %3483 = vst [vmem:[%s3425 + $0xe0] sm:%s3415] %v3482
                %v3484 = vld [vmem:[%s3424 + $0xe8] sm:%s3415]
                %3485 = vst [vmem:[%s3425 + $0xe8] sm:%s3415] %v3484
                %v3486 = vld [vmem:[%s3424 + $0xf0] sm:%s3415]
                %3487 = vst [vmem:[%s3425 + $0xf0] sm:%s3415] %v3486
                %v3488 = vld [vmem:[%s3424 + $0xf8] sm:%s3415]
                %3489 = vst [vmem:[%s3425 + $0xf8] sm:%s3415] %v3488
                %s3490 = sadd.s32 1, %s3423
                %p3491 = scmp.ge.s32.totalorder %s3490, %s3416
                %s3492 = scalar_select %p3491, 0, %s3490
                %s3493 = smul.u32 %s3492, 256
                %s3494 = smul.u32 %s3492, 256
                %s3495 = scalar_lea.vmem %s3395, %s3493 [#allocation2]
                %s3496 = scalar_lea.vmem %s3406, %s3494
              $region53: #{tpu_custom_call.1} parent=47 // loop_footer
                %s3420 = sadd.s32 %s3418, 1
              $region54: #{tpu_custom_call.1} parent=47 // loop_footer_branch
                %3417 = sbr.rel target = $region50
              $region55: #{tpu_custom_call.1} parent=47 // loop_exit
                _
              %s3497 = sshrl.u32 %s3402, 5
              %s3498 = sand.u32 %s3402, 31
              %s3499 = smul.u32 %s3497, 32
              %s3500 = smul.u32 8, %s3499
              %s3501 = scalar_lea.vmem %s3395, %s3500 [#allocation2]
              %s3502 = smul.u32 8, %s3499
              %s3503 = scalar_lea.vmem %s3406, %s3502
              // While loop
              $region56: #{tpu_custom_call.1} parent=47 // loop_pre_header
                _
              $region57: #{tpu_custom_call.1} parent=47 // loop_header
                %s3505 = sphi 0, %s3507
                %p3506 = scmp.ge.s32.totalorder %s3505, %s3498
                %s3510 = sphi 0, %s3517
                %s3511 = sphi %s3501, %s3520
                %s3512 = sphi %s3503, %s3521
              $region58: #{tpu_custom_call.1} parent=47 // loop_header_branch
                %3509 = sbr.rel (%p3506) target = $region62
              $region59: #{tpu_custom_call.1} parent=47 // loop_body
                %v3513 = vld [vmem:[%s3511] sm:%s3415]
                %3514 = vst [vmem:[%s3512] sm:%s3415] %v3513
                %s3515 = sadd.s32 1, %s3510
                %p3516 = scmp.ge.s32.totalorder %s3515, %s3498
                %s3517 = scalar_select %p3516, 0, %s3515
                %s3518 = smul.u32 %s3517, 8
                %s3519 = smul.u32 %s3517, 8
                %s3520 = scalar_lea.vmem %s3501, %s3518 [#allocation2]
                %s3521 = scalar_lea.vmem %s3503, %s3519
              $region60: #{tpu_custom_call.1} parent=47 // loop_footer
                %s3507 = sadd.s32 %s3505, 1
              $region61: #{tpu_custom_call.1} parent=47 // loop_footer_branch
                %3504 = sbr.rel target = $region57
              $region62: #{tpu_custom_call.1} parent=47 // loop_exit
                _
            $region48: #{tpu_custom_call.1} parent=39 // pred_fallthru
              _
          $region40: #{tpu_custom_call.1} parent=35 // pred_fallthru
            _
          %3632 = vnop
        $region36: #{tpu_custom_call.1} parent=31 // pred_fallthru
          _
      $region32: #{tpu_custom_call.1} parent=5 // pred_fallthru
        _
      %p3633 = scmp.le.s32.totalorder 2, %s9
      // Predicated region
      $region85: #{tpu_custom_call.1} parent=5 // pred_check
        %p3634 = pneg %p3633
      $region86: #{tpu_custom_call.1} parent=5 // pred_check_branch
        %3636 = sbr.rel (%p3634) target = $region88
      $region87: #{tpu_custom_call.1} parent=5 // pred_region
        %s3637 = ssub.s32 %s9, 2
        // Predicated region
        $region89: #{tpu_custom_call.1} parent=87 // pred_check
          %p3638 = pneg %p106
        $region90: #{tpu_custom_call.1} parent=87 // pred_check_branch
          %3640 = sbr.rel (%p3638) target = $region92
        $region91: #{tpu_custom_call.1} parent=87 // pred_region
          %s3641 = sand.u32 %s91, 1
          %s3642 = sand.u32 %s91, 1
          %s3643 = smul.addr %s3642, 1152
          %s3644 = scalar_lea.vmem [#allocation2], %s3643
        $region92: #{tpu_custom_call.1} parent=87 // pred_fallthru
          _
      $region88: #{tpu_custom_call.1} parent=5 // pred_fallthru
        _
    $region6: #{tpu_custom_call.1} parent=1 // loop_footer
      %s13 = sadd.s32 1, %s9
    $region7: #{tpu_custom_call.1} parent=1 // loop_footer_branch
      %8 = sbr.rel target = $region3
    $region8: #{tpu_custom_call.1} parent=1 // loop_exit
      _

</llo_original>
